<compile_context>
chip_gen: v7x
topology: tpu7x:2x2x1
jax: 0.10.0
libtpu: 0.0.40
codegen_flags: <defaults>
</compile_context>

<pallas_src>
import functools

import jax
import jax.numpy as jnp
from jax.experimental import pallas as pl
from jax.experimental.pallas import tpu as pltpu

EPS = 1e-5
LANE = 128
_VMEM_LIMIT = 32 * 1024 * 1024


# ----------------------------------------------------------------------------
# small helpers
# ----------------------------------------------------------------------------
def _round_up(x, m):
    return -(-x // m) * m


def _pad_to(a, axis, size):
    if a.shape[axis] == size:
        return a
    pads = [(0, 0)] * a.ndim
    pads[axis] = (0, size - a.shape[axis])
    return jnp.pad(a, pads)


def _pick_tile(m, target=256):
    """Largest divisor of m that is <= target and a multiple of 8 (else m).

    256 rows keeps the demo multi-tile; raise the target (512-1024) for real
    ResNet sizes (still well inside v7x's 32 MiB scoped VMEM with bf16 tiles).
    """
    for t in range(min(target, m), 7, -1):
        if m % t == 0 and t % 8 == 0:
            return t
    return m


def _cparams():
    return pltpu.CompilerParams(dimension_semantics=("parallel",),
                                vmem_limit_bytes=_VMEM_LIMIT)


def _cost(flops, nbytes):
    return pl.CostEstimate(flops=flops, transcendentals=0, bytes_accessed=nbytes)


# ----------------------------------------------------------------------------
# kernels
# ----------------------------------------------------------------------------
def _mm_stats_kernel(x_ref, w_ref, y_ref, ps_ref, pq_ref):
    """y = x @ w (bf16 in, f32 acc) + per-tile channel sum / sum-of-squares."""
    y = jnp.dot(x_ref[...], w_ref[...], preferred_element_type=jnp.float32)
    y_ref[...] = y.astype(y_ref.dtype)
    ps_ref[0] = jnp.sum(y, axis=0, keepdims=True)
    pq_ref[0] = jnp.sum(y * y, axis=0, keepdims=True)


def _bn_relu_kernel(y_ref, sc_ref, sh_ref, o_ref):
    """out = relu(y * scale + shift)  -- BN folded into one per-channel FMA."""
    a = y_ref[...].astype(jnp.float32) * sc_ref[...] + sh_ref[...]
    o_ref[...] = jnp.maximum(a, 0.0).astype(o_ref.dtype)


def _conv3x3_stats_kernel(stride, ho, wo, x_ref, w_ref, y_ref, ps_ref, pq_ref):
    """3x3/stride conv of one image as 9 shifted matmul-accumulates.

    x_ref: (1, s*s, Hp/s, Wp/s, C)  phase-split, spatially zero-padded activation
    w_ref: (9, C, Cout)             per-tap weights, resident in VMEM
    """
    c_out = y_ref.shape[-1]
    acc = jnp.zeros((ho * wo, c_out), jnp.float32)
    for dh in range(3):
        for dw in range(3):
            phase = (dh % stride) * stride + (dw % stride)
            qh, qw = dh // stride, dw // stride
            win = x_ref[0, phase, qh:qh + ho, qw:qw + wo, :]      # (ho, wo, Cin)
            acc = acc + jnp.dot(win.reshape(ho * wo, win.shape[-1]),
                                w_ref[dh * 3 + dw],
                                preferred_element_type=jnp.float32)
    y_ref[0] = acc.reshape(ho, wo, c_out).astype(y_ref.dtype)
    ps_ref[0] = jnp.sum(acc, axis=0, keepdims=True)
    pq_ref[0] = jnp.sum(acc * acc, axis=0, keepdims=True)


def _mid_kernel(y2_ref, sc2_ref, sh2_ref, w3_ref, xs_ref, ws_ref,
                y3_ref, ys_ref, p3s_ref, p3q_ref, pss_ref, psq_ref):
    """Fused: BN2-apply + ReLU, conv3 (1x1) matmul, shortcut (1x1) matmul, stats."""
    a2 = jnp.maximum(
        y2_ref[...].astype(jnp.float32) * sc2_ref[...] + sh2_ref[...], 0.0)
    y3 = jnp.dot(a2.astype(jnp.bfloat16), w3_ref[...],
                 preferred_element_type=jnp.float32)
    ys = jnp.dot(xs_ref[...], ws_ref[...], preferred_element_type=jnp.float32)
    y3_ref[...] = y3.astype(y3_ref.dtype)
    ys_ref[...] = ys.astype(ys_ref.dtype)
    p3s_ref[0] = jnp.sum(y3, axis=0, keepdims=True)
    p3q_ref[0] = jnp.sum(y3 * y3, axis=0, keepdims=True)
    pss_ref[0] = jnp.sum(ys, axis=0, keepdims=True)
    psq_ref[0] = jnp.sum(ys * ys, axis=0, keepdims=True)


def _final_kernel(y3_ref, ys_ref, sc3_ref, sh3_ref, scs_ref, shs_ref, o_ref):
    """out = relu(BN3(y3) + BN_shortcut(ys))."""
    a = y3_ref[...].astype(jnp.float32) * sc3_ref[...] + sh3_ref[...]
    b = ys_ref[...].astype(jnp.float32) * scs_ref[...] + shs_ref[...]
    o_ref[...] = jnp.maximum(a + b, 0.0).astype(o_ref.dtype)


# ----------------------------------------------------------------------------
# pallas_call wrappers
# ----------------------------------------------------------------------------
def _matmul_stats(x2d, w, tm):
    m, k = x2d.shape
    c = w.shape[1]
    g = m // tm
    return pl.pallas_call(
        _mm_stats_kernel,
        grid=(g,),
        in_specs=[pl.BlockSpec((tm, k), lambda i: (i, 0)),
                  pl.BlockSpec((k, c), lambda i: (0, 0))],
        out_specs=(pl.BlockSpec((tm, c), lambda i: (i, 0)),
                   pl.BlockSpec((1, 1, c), lambda i: (i, 0, 0)),
                   pl.BlockSpec((1, 1, c), lambda i: (i, 0, 0))),
        out_shape=(jax.ShapeDtypeStruct((m, c), jnp.bfloat16),
                   jax.ShapeDtypeStruct((g, 1, c), jnp.float32),
                   jax.ShapeDtypeStruct((g, 1, c), jnp.float32)),
        compiler_params=_cparams(),
        cost_estimate=_cost(2 * m * k * c,
                            2 * (m * k + g * k * c + m * c) + 8 * g * c),
    )(x2d, w)


def _bn_relu(y, scale, shift, tm):
    m, c = y.shape
    g = m // tm
    return pl.pallas_call(
        _bn_relu_kernel,
        grid=(g,),
        in_specs=[pl.BlockSpec((tm, c), lambda i: (i, 0)),
                  pl.BlockSpec((1, c), lambda i: (0, 0)),
                  pl.BlockSpec((1, c), lambda i: (0, 0))],
        out_specs=pl.BlockSpec((tm, c), lambda i: (i, 0)),
        out_shape=jax.ShapeDtypeStruct((m, c), jnp.bfloat16),
        compiler_params=_cparams(),
        cost_estimate=_cost(2 * m * c, 4 * m * c + 8 * c),
    )(y, scale, shift)


def _conv3x3_stats(x_phases, w_taps, stride, ho, wo):
    n, nph, hps, wps, c = x_phases.shape
    c_out = w_taps.shape[-1]
    kern = functools.partial(_conv3x3_stats_kernel, stride, ho, wo)
    return pl.pallas_call(
        kern,
        grid=(n,),
        in_specs=[pl.BlockSpec((1, nph, hps, wps, c),
                               lambda i: (i, 0, 0, 0, 0)),
                  pl.BlockSpec((9, c, c_out), lambda i: (0, 0, 0))],
        out_specs=(pl.BlockSpec((1, ho, wo, c_out), lambda i: (i, 0, 0, 0)),
                   pl.BlockSpec((1, 1, c_out), lambda i: (i, 0, 0)),
                   pl.BlockSpec((1, 1, c_out), lambda i: (i, 0, 0))),
        out_shape=(jax.ShapeDtypeStruct((n, ho, wo, c_out), jnp.bfloat16),
                   jax.ShapeDtypeStruct((n, 1, c_out), jnp.float32),
                   jax.ShapeDtypeStruct((n, 1, c_out), jnp.float32)),
        compiler_params=_cparams(),
        cost_estimate=_cost(
            2 * n * ho * wo * 9 * c * c_out,
            2 * (n * nph * hps * wps * c + 9 * c * c_out + n * ho * wo * c_out)
            + 8 * n * c_out),
    )(x_phases, w_taps)


def _mid_stage(y2f, scale2, shift2, w3, xs, ws, tm):
    m, cmid = y2f.shape
    cin = xs.shape[1]
    cout = w3.shape[1]
    g = m // tm
    return pl.pallas_call(
        _mid_kernel,
        grid=(g,),
        in_specs=[pl.BlockSpec((tm, cmid), lambda i: (i, 0)),
                  pl.BlockSpec((1, cmid), lambda i: (0, 0)),
                  pl.BlockSpec((1, cmid), lambda i: (0, 0)),
                  pl.BlockSpec((cmid, cout), lambda i: (0, 0)),
                  pl.BlockSpec((tm, cin), lambda i: (i, 0)),
                  pl.BlockSpec((cin, cout), lambda i: (0, 0))],
        out_specs=(pl.BlockSpec((tm, cout), lambda i: (i, 0)),
                   pl.BlockSpec((tm, cout), lambda i: (i, 0)),
                   pl.BlockSpec((1, 1, cout), lambda i: (i, 0, 0)),
                   pl.BlockSpec((1, 1, cout), lambda i: (i, 0, 0)),
                   pl.BlockSpec((1, 1, cout), lambda i: (i, 0, 0)),
                   pl.BlockSpec((1, 1, cout), lambda i: (i, 0, 0))),
        out_shape=(jax.ShapeDtypeStruct((m, cout), jnp.bfloat16),
                   jax.ShapeDtypeStruct((m, cout), jnp.bfloat16),
                   jax.ShapeDtypeStruct((g, 1, cout), jnp.float32),
                   jax.ShapeDtypeStruct((g, 1, cout), jnp.float32),
                   jax.ShapeDtypeStruct((g, 1, cout), jnp.float32),
                   jax.ShapeDtypeStruct((g, 1, cout), jnp.float32)),
        compiler_params=_cparams(),
        cost_estimate=_cost(
            2 * m * (cmid + cin) * cout + 3 * m * cmid,
            2 * (m * cmid + m * cin + (cmid + cin) * cout + 2 * m * cout)
            + 16 * g * cout),
    )(y2f, scale2, shift2, w3, xs, ws)


def _final_stage(y3, ys, scale3, shift3, scale_s, shift_s, tm):
    m, c = y3.shape
    g = m // tm
    return pl.pallas_call(
        _final_kernel,
        grid=(g,),
        in_specs=[pl.BlockSpec((tm, c), lambda i: (i, 0)),
                  pl.BlockSpec((tm, c), lambda i: (i, 0)),
                  pl.BlockSpec((1, c), lambda i: (0, 0)),
                  pl.BlockSpec((1, c), lambda i: (0, 0)),
                  pl.BlockSpec((1, c), lambda i: (0, 0)),
                  pl.BlockSpec((1, c), lambda i: (0, 0))],
        out_specs=pl.BlockSpec((tm, c), lambda i: (i, 0)),
        out_shape=jax.ShapeDtypeStruct((m, c), jnp.float32),
        compiler_params=_cparams(),
        cost_estimate=_cost(5 * m * c, 8 * m * c + 16 * c),
    )(y3, ys, scale3, shift3, scale_s, shift_s)


# ----------------------------------------------------------------------------
# JAX-side glue (tiny scalar/vector math + layout plumbing only)
# ----------------------------------------------------------------------------
def _finalize_bn(psum, psumsq, gamma, beta, count):
    """Fold batch mean / biased var + affine params into (scale, shift)."""
    tot = jnp.sum(psum[:, 0, :], axis=0)
    totq = jnp.sum(psumsq[:, 0, :], axis=0)
    mean = tot / count
    var = jnp.maximum(totq / count - mean * mean, 0.0)
    scale = gamma * jax.lax.rsqrt(var + EPS)
    shift = beta - mean * scale
    return scale[None].astype(jnp.float32), shift[None].astype(jnp.float32)


def _phase_split(x_pad, stride):
    """(N, Hp, Wp, C) -> (N, s*s, ceil(Hp/s), ceil(Wp/s), C), phase-major.

    Turns the strided 3x3 conv into 9 *contiguous* shifted windows in-kernel.
    """
    n, hp, wp, c = x_pad.shape
    hpr = _round_up(hp, stride)
    wpr = _round_up(wp, stride)
    x_pad = _pad_to(_pad_to(x_pad, 1, hpr), 2, wpr)
    x6 = x_pad.reshape(n, hpr // stride, stride, wpr // stride, stride, c)
    x6 = jnp.transpose(x6, (0, 2, 4, 1, 3, 5))
    return x6.reshape(n, stride * stride, hpr // stride, wpr // stride, c)


# ----------------------------------------------------------------------------
# Bottleneck forward (projection-shortcut configuration, as in the test case)
# ----------------------------------------------------------------------------
def bottleneck_forward(x_nchw, params, stride):
    n, cin, h, w = x_nchw.shape
    planes = params["w1"].shape[0]
    cout = params["w3"].shape[0]                    # expansion * planes
    cin_p = _round_up(cin, LANE)
    cmid = _round_up(planes, LANE)
    cout_p = _round_up(cout, LANE)
    ho = (h - 1) // stride + 1
    wo = (w - 1) // stride + 1
    m1 = n * h * w
    mo = n * ho * wo
    bf = jnp.bfloat16

    # NHWC, channel-padded to 128 lanes, bf16 operands for the MXU.
    x = _pad_to(jnp.transpose(x_nchw, (0, 2, 3, 1)), 3, cin_p).astype(bf)
    w1 = _pad_to(_pad_to(params["w1"].reshape(planes, cin).T, 0, cin_p),
                 1, cmid).astype(bf)
    w2 = jnp.transpose(params["w2"], (2, 3, 1, 0)).reshape(9, planes, planes)
    w2 = _pad_to(_pad_to(w2, 1, cmid), 2, cmid).astype(bf)
    w3 = _pad_to(_pad_to(params["w3"].reshape(cout, planes).T, 0, cmid),
                 1, cout_p).astype(bf)
    ws = _pad_to(_pad_to(params["ws"].reshape(cout, cin).T, 0, cin_p),
                 1, cout_p).astype(bf)
    g1 = _pad_to(params["g1"], 0, cmid); b1 = _pad_to(params["b1"], 0, cmid)
    g2 = _pad_to(params["g2"], 0, cmid); b2 = _pad_to(params["b2"], 0, cmid)
    g3 = _pad_to(params["g3"], 0, cout_p); b3 = _pad_to(params["b3"], 0, cout_p)
    gs = _pad_to(params["gs"], 0, cout_p); bs = _pad_to(params["bs"], 0, cout_p)

    # --- conv1 (1x1): tiled matmul + partial BN stats, then fused BN+ReLU -----
    tm1 = _pick_tile(m1)
    y1, s1, q1 = _matmul_stats(x.reshape(m1, cin_p), w1, tm1)
    sc1, sh1 = _finalize_bn(s1, q1, g1, b1, m1)
    out1 = _bn_relu(y1, sc1, sh1, tm1)                      # (m1, cmid) bf16

    # --- conv2 (3x3, stride, pad=1): 9 in-kernel shifted matmul-accumulates ---
    x1p = jnp.pad(out1.reshape(n, h, w, cmid), ((0, 0), (1, 1), (1, 1), (0, 0)))
    y2, s2, q2 = _conv3x3_stats(_phase_split(x1p, stride), w2, stride, ho, wo)
    sc2, sh2 = _finalize_bn(s2, q2, g2, b2, mo)

    # --- conv3 (1x1) + projection shortcut (1x1, stride), fused in one kernel -
    tmo = _pick_tile(mo)
    # TODO(synk): the strided shortcut gather below is an XLA slice; a strided
    # index_map DMA inside the fused kernel would avoid materialising it in HBM.
    xs = x[:, ::stride, ::stride, :].reshape(mo, cin_p)
    y3, ysc, s3, q3, ss, qs = _mid_stage(y2.reshape(mo, cmid), sc2, sh2,
                                         w3, xs, ws, tmo)
    sc3, sh3 = _finalize_bn(s3, q3, g3, b3, mo)
    scs, shs = _finalize_bn(ss, qs, gs, bs, mo)

    # --- BN3 + BN_shortcut + residual add + ReLU ------------------------------
    out = _final_stage(y3, ysc, sc3, sh3, scs, shs, tmo)    # (mo, cout_p) f32
    out = out.reshape(n, ho, wo, cout_p)[:, :, :, :cout]
    return jnp.transpose(out, (0, 3, 1, 2))                 # back to NCHW


# ----------------------------------------------------------------------------
# Pure-JAX reference mirroring the kernel numerics (bf16 MXU operands,
# f32 accumulation, training-mode BN with biased variance, eps=1e-5).
# ----------------------------------------------------------------------------
def bottleneck_reference(x_nchw, params, stride):
    n, cin, h, w = x_nchw.shape
    planes = params["w1"].shape[0]
    cout = params["w3"].shape[0]
    ho = (h - 1) // stride + 1
    wo = (w - 1) // stride + 1
    bf = jnp.bfloat16

    x = jnp.transpose(x_nchw, (0, 2, 3, 1)).astype(bf)

    def bn_apply(y_f32, g, b):
        mean = jnp.mean(y_f32, axis=0, keepdims=True)
        var = jnp.maximum(
            jnp.mean(y_f32 * y_f32, axis=0, keepdims=True) - mean * mean, 0.0)
        scale = g.reshape(1, -1) * jax.lax.rsqrt(var + EPS)
        shift = b.reshape(1, -1) - mean * scale
        yq = y_f32.astype(bf).astype(jnp.float32)   # kernels store y as bf16
        return yq * scale + shift

    # conv1 + bn1 + relu
    w1 = params["w1"].reshape(planes, cin).T.astype(bf)
    y1 = jnp.dot(x.reshape(-1, cin), w1, preferred_element_type=jnp.float32)
    out1 = jnp.maximum(bn_apply(y1, params["g1"], params["b1"]), 0.0).astype(bf)

    # conv2 (3x3, stride, pad=1) + bn2 + relu
    w2 = jnp.transpose(params["w2"], (2, 3, 1, 0)).astype(bf)   # (3,3,in,out)
    x1p = jnp.pad(out1.reshape(n, h, w, planes),
                  ((0, 0), (1, 1), (1, 1), (0, 0)))
    y2 = jnp.zeros((n * ho * wo, planes), jnp.float32)
    for dh in range(3):
        for dw in range(3):
            win = x1p[:, dh:dh + (ho - 1) * stride + 1:stride,
                      dw:dw + (wo - 1) * stride + 1:stride, :]
            y2 = y2 + jnp.dot(win.reshape(-1, planes), w2[dh, dw],
                              preferred_element_type=jnp.float32)
    out2 = jnp.maximum(bn_apply(y2, params["g2"], params["b2"]), 0.0).astype(bf)

    # conv3 + bn3 ; shortcut conv + bn ; add ; relu
    w3 = params["w3"].reshape(cout, planes).T.astype(bf)
    y3 = jnp.dot(out2, w3, preferred_element_type=jnp.float32)
    ws = params["ws"].reshape(cout, cin).T.astype(bf)
    xs = x[:, ::stride, ::stride, :].reshape(-1, cin)
    ys = jnp.dot(xs, ws, preferred_element_type=jnp.float32)

    o3 = bn_apply(y3, params["g3"], params["b3"])
    osh = bn_apply(ys, params["gs"], params["bs"])
    out = jnp.maximum(o3 + osh, 0.0).reshape(n, ho, wo, cout)
    return jnp.transpose(out, (0, 3, 1, 2))


# ----------------------------------------------------------------------------
if __name__ == "__main__":
    key = jax.random.PRNGKey(0)
    in_planes, planes, stride = 8, 4, 2
    expansion = 4
    cout = expansion * planes
    n, h, w = 2, 16, 16

    ks = jax.random.split(key, 12)
    params = {
        # conv weights in PyTorch OIHW layout
        "w1": jax.random.normal(ks[0], (planes, in_planes, 1, 1), jnp.float32) * 0.2,
        "w2": jax.random.normal(ks[1], (planes, planes, 3, 3), jnp.float32) * 0.2,
        "w3": jax.random.normal(ks[2], (cout, planes, 1, 1), jnp.float32) * 0.2,
        "ws": jax.random.normal(ks[3], (cout, in_planes, 1, 1), jnp.float32) * 0.2,
        # BN affine params
        "g1": jax.random.uniform(ks[4], (planes,), jnp.float32, 0.5, 1.5),
        "b1": jax.random.normal(ks[5], (planes,), jnp.float32) * 0.1,
        "g2": jax.random.uniform(ks[6], (planes,), jnp.float32, 0.5, 1.5),
        "b2": jax.random.normal(ks[7], (planes,), jnp.float32) * 0.1,
        "g3": jax.random.uniform(ks[8], (cout,), jnp.float32, 0.5, 1.5),
        "b3": jax.random.normal(ks[9], (cout,), jnp.float32) * 0.1,
        "gs": jnp.ones((cout,), jnp.float32),
        "bs": jnp.zeros((cout,), jnp.float32),
    }
    x = jax.random.normal(ks[10], (n, in_planes, h, w), jnp.float32)

    fwd = jax.jit(bottleneck_forward, static_argnums=(2,))
    out = jax.block_until_ready(fwd(x, params, stride))
    ref = jax.block_until_ready(bottleneck_reference(x, params, stride))

    ho = (h - 1) // stride + 1
    assert out.shape == (n, cout, ho, ho), out.shape
    err = float(jnp.max(jnp.abs(out - ref)))
    # bf16 MXU operands (used identically by kernels and reference) leave only
    # rounding-order noise between Pallas and the XLA reference.
    assert err < 2e-2, err
    print("KERNEL_OK")
</pallas_src>

<mosaic_0001>
module attributes {stable_mosaic.version = 11 : i64} {
  func.func @_mm_stats_kernel(%arg0: i32, %arg1: memref<256x128xbf16, #tpu.memory_space<vmem>>, %arg2: memref<128x128xbf16, #tpu.memory_space<vmem>>, %arg3: memref<256x128xbf16, #tpu.memory_space<vmem>>, %arg4: memref<1x1x128xf32, #tpu.memory_space<vmem>>, %arg5: memref<1x1x128xf32, #tpu.memory_space<vmem>>) attributes {dimension_semantics = [#tpu.dimension_semantics<parallel>], iteration_bounds = array<i64: 2>, scalar_prefetch = 0 : i64, scratch_operands = 0 : i64, tpu.core_type = #tpu.core_type<tc>, window_params = [{transform_indices = @transform_0, window_bounds = array<i64: 256, 128>}, {pipeline_mode = #tpu.pipeline_mode<synchronous>, transform_indices = @transform_1, window_bounds = array<i64: 128, 128>}, {transform_indices = @transform_2, window_bounds = array<i64: 256, 128>}, {transform_indices = @transform_3, window_bounds = array<i64: 1, 1, 128>}, {transform_indices = @transform_4, window_bounds = array<i64: 1, 1, 128>}]} {
    %c0 = arith.constant 0 : index
    %c0_0 = arith.constant 0 : index
    %0 = vector.load %arg1[%c0, %c0_0] : memref<256x128xbf16, #tpu.memory_space<vmem>>, vector<256x128xbf16>
    %c0_1 = arith.constant 0 : index
    %c0_2 = arith.constant 0 : index
    %1 = vector.load %arg2[%c0_1, %c0_2] : memref<128x128xbf16, #tpu.memory_space<vmem>>, vector<128x128xbf16>
    %cst = arith.constant dense<0.000000e+00> : vector<256x128xf32>
    %2 = tpu.matmul %0, %1, %cst {dimension_numbers = #tpu.dot_dimension_numbers<[1], [0], [0], [1], [0, 0, 1, 1], [], []>} : vector<256x128xbf16>, vector<128x128xbf16>, vector<256x128xf32> -> vector<256x128xf32>
    %3 = arith.truncf %2 : vector<256x128xf32> to vector<256x128xbf16>
    %c0_3 = arith.constant 0 : index
    %c0_4 = arith.constant 0 : index
    %4 = vector.load %arg3[%c0_3, %c0_4] : memref<256x128xbf16, #tpu.memory_space<vmem>>, vector<256x128xbf16>
    tpu.vector_store %arg3[%c0_3, %c0_4], %3 {strides = array<i32>} : memref<256x128xbf16, #tpu.memory_space<vmem>>, vector<256x128xbf16>,
    %cst_5 = arith.constant dense<0.000000e+00> : vector<128xf32>
    %5 = vector.multi_reduction <add>, %2, %cst_5 [0] : vector<256x128xf32> to vector<128xf32>
    %6 = vector.shape_cast %5 : vector<128xf32> to vector<1x128xf32>
    %c0_6 = arith.constant 0 : index
    %c0_7 = arith.constant 0 : index
    %c0_8 = arith.constant 0 : index
    %7 = vector.load %arg4[%c0_6, %c0_7, %c0_8] : memref<1x1x128xf32, #tpu.memory_space<vmem>>, vector<1x1x128xf32>
    %8 = vector.shape_cast %7 : vector<1x1x128xf32> to vector<1x128xf32>
    %9 = vector.shape_cast %6 : vector<1x128xf32> to vector<1x1x128xf32>
    tpu.vector_store %arg4[%c0_6, %c0_7, %c0_8], %9 {strides = array<i32>} : memref<1x1x128xf32, #tpu.memory_space<vmem>>, vector<1x1x128xf32>,
    %10 = arith.mulf %2, %2 : vector<256x128xf32>
    %cst_9 = arith.constant dense<0.000000e+00> : vector<128xf32>
    %11 = vector.multi_reduction <add>, %10, %cst_9 [0] : vector<256x128xf32> to vector<128xf32>
    %12 = vector.shape_cast %11 : vector<128xf32> to vector<1x128xf32>
    %c0_10 = arith.constant 0 : index
    %c0_11 = arith.constant 0 : index
    %c0_12 = arith.constant 0 : index
    %13 = vector.load %arg5[%c0_10, %c0_11, %c0_12] : memref<1x1x128xf32, #tpu.memory_space<vmem>>, vector<1x1x128xf32>
    %14 = vector.shape_cast %13 : vector<1x1x128xf32> to vector<1x128xf32>
    %15 = vector.shape_cast %12 : vector<1x128xf32> to vector<1x1x128xf32>
    tpu.vector_store %arg5[%c0_10, %c0_11, %c0_12], %15 {strides = array<i32>} : memref<1x1x128xf32, #tpu.memory_space<vmem>>, vector<1x1x128xf32>,
    return
  }
  func.func @transform_0(%arg0: i32) -> (i32, i32) {
    %c0_i32 = arith.constant 0 : i32
    %c0_i32_0 = arith.constant 0 : i32
    return %arg0, %c0_i32 : i32, i32
  }
  func.func @transform_1(%arg0: i32) -> (i32, i32) {
    %c0_i32 = arith.constant 0 : i32
    %c0_i32_0 = arith.constant 0 : i32
    %c0_i32_1 = arith.constant 0 : i32
    return %c0_i32, %c0_i32_0 : i32, i32
  }
  func.func @transform_2(%arg0: i32) -> (i32, i32) {
    %c0_i32 = arith.constant 0 : i32
    %c0_i32_0 = arith.constant 0 : i32
    return %arg0, %c0_i32 : i32, i32
  }
  func.func @transform_3(%arg0: i32) -> (i32, i32, i32) {
    %c0_i32 = arith.constant 0 : i32
    %c0_i32_0 = arith.constant 0 : i32
    %c0_i32_1 = arith.constant 0 : i32
    return %arg0, %c0_i32, %c0_i32_0 : i32, i32, i32
  }
  func.func @transform_4(%arg0: i32) -> (i32, i32, i32) {
    %c0_i32 = arith.constant 0 : i32
    %c0_i32_0 = arith.constant 0 : i32
    %c0_i32_1 = arith.constant 0 : i32
    return %arg0, %c0_i32, %c0_i32_0 : i32, i32, i32
  }
}

module attributes {stable_mosaic.version = 11 : i64} {
  func.func @_bn_relu_kernel(%arg0: i32, %arg1: memref<256x128xbf16, #tpu.memory_space<vmem>>, %arg2: memref<1x128xf32, #tpu.memory_space<vmem>>, %arg3: memref<1x128xf32, #tpu.memory_space<vmem>>, %arg4: memref<256x128xbf16, #tpu.memory_space<vmem>>) attributes {dimension_semantics = [#tpu.dimension_semantics<parallel>], iteration_bounds = array<i64: 2>, scalar_prefetch = 0 : i64, scratch_operands = 0 : i64, tpu.core_type = #tpu.core_type<tc>, window_params = [{transform_indices = @transform_0, window_bounds = array<i64: 256, 128>}, {pipeline_mode = #tpu.pipeline_mode<synchronous>, transform_indices = @transform_1, window_bounds = array<i64: 1, 128>}, {pipeline_mode = #tpu.pipeline_mode<synchronous>, transform_indices = @transform_2, window_bounds = array<i64: 1, 128>}, {transform_indices = @transform_3, window_bounds = array<i64: 256, 128>}]} {
    %c0 = arith.constant 0 : index
    %c0_0 = arith.constant 0 : index
    %0 = vector.load %arg1[%c0, %c0_0] : memref<256x128xbf16, #tpu.memory_space<vmem>>, vector<256x128xbf16>
    %1 = arith.extf %0 : vector<256x128xbf16> to vector<256x128xf32>
    %c0_1 = arith.constant 0 : index
    %c0_2 = arith.constant 0 : index
    %2 = vector.load %arg2[%c0_1, %c0_2] : memref<1x128xf32, #tpu.memory_space<vmem>>, vector<1x128xf32>
    %3 = vector.broadcast %2 : vector<1x128xf32> to vector<256x128xf32>
    %4 = arith.mulf %1, %3 : vector<256x128xf32>
    %c0_3 = arith.constant 0 : index
    %c0_4 = arith.constant 0 : index
    %5 = vector.load %arg3[%c0_3, %c0_4] : memref<1x128xf32, #tpu.memory_space<vmem>>, vector<1x128xf32>
    %6 = vector.broadcast %5 : vector<1x128xf32> to vector<256x128xf32>
    %7 = arith.addf %4, %6 : vector<256x128xf32>
    %cst = arith.constant 0.000000e+00 : f32
    %8 = vector.broadcast %cst : f32 to vector<256x128xf32>
    %9 = arith.maximumf %7, %8 : vector<256x128xf32>
    %10 = arith.truncf %9 : vector<256x128xf32> to vector<256x128xbf16>
    %c0_5 = arith.constant 0 : index
    %c0_6 = arith.constant 0 : index
    %11 = vector.load %arg4[%c0_5, %c0_6] : memref<256x128xbf16, #tpu.memory_space<vmem>>, vector<256x128xbf16>
    tpu.vector_store %arg4[%c0_5, %c0_6], %10 {strides = array<i32>} : memref<256x128xbf16, #tpu.memory_space<vmem>>, vector<256x128xbf16>,
    return
  }
  func.func @transform_0(%arg0: i32) -> (i32, i32) {
    %c0_i32 = arith.constant 0 : i32
    %c0_i32_0 = arith.constant 0 : i32
    return %arg0, %c0_i32 : i32, i32
  }
  func.func @transform_1(%arg0: i32) -> (i32, i32) {
    %c0_i32 = arith.constant 0 : i32
    %c0_i32_0 = arith.constant 0 : i32
    %c0_i32_1 = arith.constant 0 : i32
    return %c0_i32, %c0_i32_0 : i32, i32
  }
  func.func @transform_2(%arg0: i32) -> (i32, i32) {
    %c0_i32 = arith.constant 0 : i32
    %c0_i32_0 = arith.constant 0 : i32
    %c0_i32_1 = arith.constant 0 : i32
    return %c0_i32, %c0_i32_0 : i32, i32
  }
  func.func @transform_3(%arg0: i32) -> (i32, i32) {
    %c0_i32 = arith.constant 0 : i32
    %c0_i32_0 = arith.constant 0 : i32
    return %arg0, %c0_i32 : i32, i32
  }
}

module attributes {stable_mosaic.version = 11 : i64} {
  func.func @_conv3x3_stats_kernel(%arg0: i32, %arg1: memref<1x4x9x9x128xbf16, #tpu.memory_space<vmem>>, %arg2: memref<9x128x128xbf16, #tpu.memory_space<vmem>>, %arg3: memref<1x8x8x128xbf16, #tpu.memory_space<vmem>>, %arg4: memref<1x1x128xf32, #tpu.memory_space<vmem>>, %arg5: memref<1x1x128xf32, #tpu.memory_space<vmem>>) attributes {dimension_semantics = [#tpu.dimension_semantics<parallel>], iteration_bounds = array<i64: 2>, scalar_prefetch = 0 : i64, scratch_operands = 0 : i64, tpu.core_type = #tpu.core_type<tc>, window_params = [{transform_indices = @transform_0, window_bounds = array<i64: 1, 4, 9, 9, 128>}, {pipeline_mode = #tpu.pipeline_mode<synchronous>, transform_indices = @transform_1, window_bounds = array<i64: 9, 128, 128>}, {transform_indices = @transform_2, window_bounds = array<i64: 1, 8, 8, 128>}, {transform_indices = @transform_3, window_bounds = array<i64: 1, 1, 128>}, {transform_indices = @transform_4, window_bounds = array<i64: 1, 1, 128>}]} {
    %cst = arith.constant 0.000000e+00 : f32
    %0 = vector.broadcast %cst : f32 to vector<64x128xf32>
    %c0 = arith.constant 0 : index
    %c0_0 = arith.constant 0 : index
    %c0_1 = arith.constant 0 : index
    %c0_2 = arith.constant 0 : index
    %c0_3 = arith.constant 0 : index
    %1 = vector.load %arg1[%c0, %c0_0, %c0_1, %c0_2, %c0_3] : memref<1x4x9x9x128xbf16, #tpu.memory_space<vmem>>, vector<1x1x8x8x128xbf16>
    %2 = vector.shape_cast %1 : vector<1x1x8x8x128xbf16> to vector<8x8x128xbf16>
    %3 = vector.shape_cast %2 : vector<8x8x128xbf16> to vector<64x128xbf16>
    %c0_4 = arith.constant 0 : index
    %c0_5 = arith.constant 0 : index
    %c0_6 = arith.constant 0 : index
    %4 = vector.load %arg2[%c0_4, %c0_5, %c0_6] : memref<9x128x128xbf16, #tpu.memory_space<vmem>>, vector<1x128x128xbf16>
    %5 = vector.shape_cast %4 : vector<1x128x128xbf16> to vector<128x128xbf16>
    %cst_7 = arith.constant dense<0.000000e+00> : vector<64x128xf32>
    %6 = tpu.matmul %3, %5, %cst_7 {dimension_numbers = #tpu.dot_dimension_numbers<[1], [0], [0], [1], [0, 0, 1, 1], [], []>} : vector<64x128xbf16>, vector<128x128xbf16>, vector<64x128xf32> -> vector<64x128xf32>
    %7 = arith.addf %0, %6 : vector<64x128xf32>
    %c0_8 = arith.constant 0 : index
    %c1 = arith.constant 1 : index
    %c0_9 = arith.constant 0 : index
    %c0_10 = arith.constant 0 : index
    %c0_11 = arith.constant 0 : index
    %8 = vector.load %arg1[%c0_8, %c1, %c0_9, %c0_10, %c0_11] : memref<1x4x9x9x128xbf16, #tpu.memory_space<vmem>>, vector<1x1x8x8x128xbf16>
    %9 = vector.shape_cast %8 : vector<1x1x8x8x128xbf16> to vector<8x8x128xbf16>
    %10 = vector.shape_cast %9 : vector<8x8x128xbf16> to vector<64x128xbf16>
    %c1_12 = arith.constant 1 : index
    %c0_13 = arith.constant 0 : index
    %c0_14 = arith.constant 0 : index
    %11 = vector.load %arg2[%c1_12, %c0_13, %c0_14] : memref<9x128x128xbf16, #tpu.memory_space<vmem>>, vector<1x128x128xbf16>
    %12 = vector.shape_cast %11 : vector<1x128x128xbf16> to vector<128x128xbf16>
    %cst_15 = arith.constant dense<0.000000e+00> : vector<64x128xf32>
    %13 = tpu.matmul %10, %12, %cst_15 {dimension_numbers = #tpu.dot_dimension_numbers<[1], [0], [0], [1], [0, 0, 1, 1], [], []>} : vector<64x128xbf16>, vector<128x128xbf16>, vector<64x128xf32> -> vector<64x128xf32>
    %14 = arith.addf %7, %13 : vector<64x128xf32>
    %c0_16 = arith.constant 0 : index
    %c0_17 = arith.constant 0 : index
    %c0_18 = arith.constant 0 : index
    %c1_19 = arith.constant 1 : index
    %c0_20 = arith.constant 0 : index
    %15 = vector.load %arg1[%c0_16, %c0_17, %c0_18, %c1_19, %c0_20] : memref<1x4x9x9x128xbf16, #tpu.memory_space<vmem>>, vector<1x1x8x8x128xbf16>
    %16 = vector.shape_cast %15 : vector<1x1x8x8x128xbf16> to vector<8x8x128xbf16>
    %17 = vector.shape_cast %16 : vector<8x8x128xbf16> to vector<64x128xbf16>
    %c2 = arith.constant 2 : index
    %c0_21 = arith.constant 0 : index
    %c0_22 = arith.constant 0 : index
    %18 = vector.load %arg2[%c2, %c0_21, %c0_22] : memref<9x128x128xbf16, #tpu.memory_space<vmem>>, vector<1x128x128xbf16>
    %19 = vector.shape_cast %18 : vector<1x128x128xbf16> to vector<128x128xbf16>
    %cst_23 = arith.constant dense<0.000000e+00> : vector<64x128xf32>
    %20 = tpu.matmul %17, %19, %cst_23 {dimension_numbers = #tpu.dot_dimension_numbers<[1], [0], [0], [1], [0, 0, 1, 1], [], []>} : vector<64x128xbf16>, vector<128x128xbf16>, vector<64x128xf32> -> vector<64x128xf32>
    %21 = arith.addf %14, %20 : vector<64x128xf32>
    %c0_24 = arith.constant 0 : index
    %c2_25 = arith.constant 2 : index
    %c0_26 = arith.constant 0 : index
    %c0_27 = arith.constant 0 : index
    %c0_28 = arith.constant 0 : index
    %22 = vector.load %arg1[%c0_24, %c2_25, %c0_26, %c0_27, %c0_28] : memref<1x4x9x9x128xbf16, #tpu.memory_space<vmem>>, vector<1x1x8x8x128xbf16>
    %23 = vector.shape_cast %22 : vector<1x1x8x8x128xbf16> to vector<8x8x128xbf16>
    %24 = vector.shape_cast %23 : vector<8x8x128xbf16> to vector<64x128xbf16>
    %c3 = arith.constant 3 : index
    %c0_29 = arith.constant 0 : index
    %c0_30 = arith.constant 0 : index
    %25 = vector.load %arg2[%c3, %c0_29, %c0_30] : memref<9x128x128xbf16, #tpu.memory_space<vmem>>, vector<1x128x128xbf16>
    %26 = vector.shape_cast %25 : vector<1x128x128xbf16> to vector<128x128xbf16>
    %cst_31 = arith.constant dense<0.000000e+00> : vector<64x128xf32>
    %27 = tpu.matmul %24, %26, %cst_31 {dimension_numbers = #tpu.dot_dimension_numbers<[1], [0], [0], [1], [0, 0, 1, 1], [], []>} : vector<64x128xbf16>, vector<128x128xbf16>, vector<64x128xf32> -> vector<64x128xf32>
    %28 = arith.addf %21, %27 : vector<64x128xf32>
    %c0_32 = arith.constant 0 : index
    %c3_33 = arith.constant 3 : index
    %c0_34 = arith.constant 0 : index
    %c0_35 = arith.constant 0 : index
    %c0_36 = arith.constant 0 : index
    %29 = vector.load %arg1[%c0_32, %c3_33, %c0_34, %c0_35, %c0_36] : memref<1x4x9x9x128xbf16, #tpu.memory_space<vmem>>, vector<1x1x8x8x128xbf16>
    %30 = vector.shape_cast %29 : vector<1x1x8x8x128xbf16> to vector<8x8x128xbf16>
    %31 = vector.shape_cast %30 : vector<8x8x128xbf16> to vector<64x128xbf16>
    %c4 = arith.constant 4 : index
    %c0_37 = arith.constant 0 : index
    %c0_38 = arith.constant 0 : index
    %32 = vector.load %arg2[%c4, %c0_37, %c0_38] : memref<9x128x128xbf16, #tpu.memory_space<vmem>>, vector<1x128x128xbf16>
    %33 = vector.shape_cast %32 : vector<1x128x128xbf16> to vector<128x128xbf16>
    %cst_39 = arith.constant dense<0.000000e+00> : vector<64x128xf32>
    %34 = tpu.matmul %31, %33, %cst_39 {dimension_numbers = #tpu.dot_dimension_numbers<[1], [0], [0], [1], [0, 0, 1, 1], [], []>} : vector<64x128xbf16>, vector<128x128xbf16>, vector<64x128xf32> -> vector<64x128xf32>
    %35 = arith.addf %28, %34 : vector<64x128xf32>
    %c0_40 = arith.constant 0 : index
    %c2_41 = arith.constant 2 : index
    %c0_42 = arith.constant 0 : index
    %c1_43 = arith.constant 1 : index
    %c0_44 = arith.constant 0 : index
    %36 = vector.load %arg1[%c0_40, %c2_41, %c0_42, %c1_43, %c0_44] : memref<1x4x9x9x128xbf16, #tpu.memory_space<vmem>>, vector<1x1x8x8x128xbf16>
    %37 = vector.shape_cast %36 : vector<1x1x8x8x128xbf16> to vector<8x8x128xbf16>
    %38 = vector.shape_cast %37 : vector<8x8x128xbf16> to vector<64x128xbf16>
    %c5 = arith.constant 5 : index
    %c0_45 = arith.constant 0 : index
    %c0_46 = arith.constant 0 : index
    %39 = vector.load %arg2[%c5, %c0_45, %c0_46] : memref<9x128x128xbf16, #tpu.memory_space<vmem>>, vector<1x128x128xbf16>
    %40 = vector.shape_cast %39 : vector<1x128x128xbf16> to vector<128x128xbf16>
    %cst_47 = arith.constant dense<0.000000e+00> : vector<64x128xf32>
    %41 = tpu.matmul %38, %40, %cst_47 {dimension_numbers = #tpu.dot_dimension_numbers<[1], [0], [0], [1], [0, 0, 1, 1], [], []>} : vector<64x128xbf16>, vector<128x128xbf16>, vector<64x128xf32> -> vector<64x128xf32>
    %42 = arith.addf %35, %41 : vector<64x128xf32>
    %c0_48 = arith.constant 0 : index
    %c0_49 = arith.constant 0 : index
    %c1_50 = arith.constant 1 : index
    %c0_51 = arith.constant 0 : index
    %c0_52 = arith.constant 0 : index
    %43 = vector.load %arg1[%c0_48, %c0_49, %c1_50, %c0_51, %c0_52] : memref<1x4x9x9x128xbf16, #tpu.memory_space<vmem>>, vector<1x1x8x8x128xbf16>
    %44 = vector.shape_cast %43 : vector<1x1x8x8x128xbf16> to vector<8x8x128xbf16>
    %45 = vector.shape_cast %44 : vector<8x8x128xbf16> to vector<64x128xbf16>
    %c6 = arith.constant 6 : index
    %c0_53 = arith.constant 0 : index
    %c0_54 = arith.constant 0 : index
    %46 = vector.load %arg2[%c6, %c0_53, %c0_54] : memref<9x128x128xbf16, #tpu.memory_space<vmem>>, vector<1x128x128xbf16>
    %47 = vector.shape_cast %46 : vector<1x128x128xbf16> to vector<128x128xbf16>
    %cst_55 = arith.constant dense<0.000000e+00> : vector<64x128xf32>
    %48 = tpu.matmul %45, %47, %cst_55 {dimension_numbers = #tpu.dot_dimension_numbers<[1], [0], [0], [1], [0, 0, 1, 1], [], []>} : vector<64x128xbf16>, vector<128x128xbf16>, vector<64x128xf32> -> vector<64x128xf32>
    %49 = arith.addf %42, %48 : vector<64x128xf32>
    %c0_56 = arith.constant 0 : index
    %c1_57 = arith.constant 1 : index
    %c1_58 = arith.constant 1 : index
    %c0_59 = arith.constant 0 : index
    %c0_60 = arith.constant 0 : index
    %50 = vector.load %arg1[%c0_56, %c1_57, %c1_58, %c0_59, %c0_60] : memref<1x4x9x9x128xbf16, #tpu.memory_space<vmem>>, vector<1x1x8x8x128xbf16>
    %51 = vector.shape_cast %50 : vector<1x1x8x8x128xbf16> to vector<8x8x128xbf16>
    %52 = vector.shape_cast %51 : vector<8x8x128xbf16> to vector<64x128xbf16>
    %c7 = arith.constant 7 : index
    %c0_61 = arith.constant 0 : index
    %c0_62 = arith.constant 0 : index
    %53 = vector.load %arg2[%c7, %c0_61, %c0_62] : memref<9x128x128xbf16, #tpu.memory_space<vmem>>, vector<1x128x128xbf16>
    %54 = vector.shape_cast %53 : vector<1x128x128xbf16> to vector<128x128xbf16>
    %cst_63 = arith.constant dense<0.000000e+00> : vector<64x128xf32>
    %55 = tpu.matmul %52, %54, %cst_63 {dimension_numbers = #tpu.dot_dimension_numbers<[1], [0], [0], [1], [0, 0, 1, 1], [], []>} : vector<64x128xbf16>, vector<128x128xbf16>, vector<64x128xf32> -> vector<64x128xf32>
    %56 = arith.addf %49, %55 : vector<64x128xf32>
    %c0_64 = arith.constant 0 : index
    %c0_65 = arith.constant 0 : index
    %c1_66 = arith.constant 1 : index
    %c1_67 = arith.constant 1 : index
    %c0_68 = arith.constant 0 : index
    %57 = vector.load %arg1[%c0_64, %c0_65, %c1_66, %c1_67, %c0_68] : memref<1x4x9x9x128xbf16, #tpu.memory_space<vmem>>, vector<1x1x8x8x128xbf16>
    %58 = vector.shape_cast %57 : vector<1x1x8x8x128xbf16> to vector<8x8x128xbf16>
    %59 = vector.shape_cast %58 : vector<8x8x128xbf16> to vector<64x128xbf16>
    %c8 = arith.constant 8 : index
    %c0_69 = arith.constant 0 : index
    %c0_70 = arith.constant 0 : index
    %60 = vector.load %arg2[%c8, %c0_69, %c0_70] : memref<9x128x128xbf16, #tpu.memory_space<vmem>>, vector<1x128x128xbf16>
    %61 = vector.shape_cast %60 : vector<1x128x128xbf16> to vector<128x128xbf16>
    %cst_71 = arith.constant dense<0.000000e+00> : vector<64x128xf32>
    %62 = tpu.matmul %59, %61, %cst_71 {dimension_numbers = #tpu.dot_dimension_numbers<[1], [0], [0], [1], [0, 0, 1, 1], [], []>} : vector<64x128xbf16>, vector<128x128xbf16>, vector<64x128xf32> -> vector<64x128xf32>
    %63 = arith.addf %56, %62 : vector<64x128xf32>
    %64 = vector.shape_cast %63 : vector<64x128xf32> to vector<8x8x128xf32>
    %65 = arith.truncf %64 : vector<8x8x128xf32> to vector<8x8x128xbf16>
    %c0_72 = arith.constant 0 : index
    %c0_73 = arith.constant 0 : index
    %c0_74 = arith.constant 0 : index
    %c0_75 = arith.constant 0 : index
    %66 = vector.load %arg3[%c0_72, %c0_73, %c0_74, %c0_75] : memref<1x8x8x128xbf16, #tpu.memory_space<vmem>>, vector<1x8x8x128xbf16>
    %67 = vector.shape_cast %66 : vector<1x8x8x128xbf16> to vector<8x8x128xbf16>
    %68 = vector.shape_cast %65 : vector<8x8x128xbf16> to vector<1x8x8x128xbf16>
    tpu.vector_store %arg3[%c0_72, %c0_73, %c0_74, %c0_75], %68 {strides = array<i32>} : memref<1x8x8x128xbf16, #tpu.memory_space<vmem>>, vector<1x8x8x128xbf16>,
    %cst_76 = arith.constant dense<0.000000e+00> : vector<128xf32>
    %69 = vector.multi_reduction <add>, %63, %cst_76 [0] : vector<64x128xf32> to vector<128xf32>
    %70 = vector.shape_cast %69 : vector<128xf32> to vector<1x128xf32>
    %c0_77 = arith.constant 0 : index
    %c0_78 = arith.constant 0 : index
    %c0_79 = arith.constant 0 : index
    %71 = vector.load %arg4[%c0_77, %c0_78, %c0_79] : memref<1x1x128xf32, #tpu.memory_space<vmem>>, vector<1x1x128xf32>
    %72 = vector.shape_cast %71 : vector<1x1x128xf32> to vector<1x128xf32>
    %73 = vector.shape_cast %70 : vector<1x128xf32> to vector<1x1x128xf32>
    tpu.vector_store %arg4[%c0_77, %c0_78, %c0_79], %73 {strides = array<i32>} : memref<1x1x128xf32, #tpu.memory_space<vmem>>, vector<1x1x128xf32>,
    %74 = arith.mulf %63, %63 : vector<64x128xf32>
    %cst_80 = arith.constant dense<0.000000e+00> : vector<128xf32>
    %75 = vector.multi_reduction <add>, %74, %cst_80 [0] : vector<64x128xf32> to vector<128xf32>
    %76 = vector.shape_cast %75 : vector<128xf32> to vector<1x128xf32>
    %c0_81 = arith.constant 0 : index
    %c0_82 = arith.constant 0 : index
    %c0_83 = arith.constant 0 : index
    %77 = vector.load %arg5[%c0_81, %c0_82, %c0_83] : memref<1x1x128xf32, #tpu.memory_space<vmem>>, vector<1x1x128xf32>
    %78 = vector.shape_cast %77 : vector<1x1x128xf32> to vector<1x128xf32>
    %79 = vector.shape_cast %76 : vector<1x128xf32> to vector<1x1x128xf32>
    tpu.vector_store %arg5[%c0_81, %c0_82, %c0_83], %79 {strides = array<i32>} : memref<1x1x128xf32, #tpu.memory_space<vmem>>, vector<1x1x128xf32>,
    return
  }
  func.func @transform_0(%arg0: i32) -> (i32, i32, i32, i32, i32) {
    %c0_i32 = arith.constant 0 : i32
    %c0_i32_0 = arith.constant 0 : i32
    %c0_i32_1 = arith.constant 0 : i32
    %c0_i32_2 = arith.constant 0 : i32
    %c0_i32_3 = arith.constant 0 : i32
    return %arg0, %c0_i32, %c0_i32_0, %c0_i32_1, %c0_i32_2 : i32, i32, i32, i32, i32
  }
  func.func @transform_1(%arg0: i32) -> (i32, i32, i32) {
    %c0_i32 = arith.constant 0 : i32
    %c0_i32_0 = arith.constant 0 : i32
    %c0_i32_1 = arith.constant 0 : i32
    %c0_i32_2 = arith.constant 0 : i32
    return %c0_i32, %c0_i32_0, %c0_i32_1 : i32, i32, i32
  }
  func.func @transform_2(%arg0: i32) -> (i32, i32, i32, i32) {
    %c0_i32 = arith.constant 0 : i32
    %c0_i32_0 = arith.constant 0 : i32
    %c0_i32_1 = arith.constant 0 : i32
    %c0_i32_2 = arith.constant 0 : i32
    return %arg0, %c0_i32, %c0_i32_0, %c0_i32_1 : i32, i32, i32, i32
  }
  func.func @transform_3(%arg0: i32) -> (i32, i32, i32) {
    %c0_i32 = arith.constant 0 : i32
    %c0_i32_0 = arith.constant 0 : i32
    %c0_i32_1 = arith.constant 0 : i32
    return %arg0, %c0_i32, %c0_i32_0 : i32, i32, i32
  }
  func.func @transform_4(%arg0: i32) -> (i32, i32, i32) {
    %c0_i32 = arith.constant 0 : i32
    %c0_i32_0 = arith.constant 0 : i32
    %c0_i32_1 = arith.constant 0 : i32
    return %arg0, %c0_i32, %c0_i32_0 : i32, i32, i32
  }
}

module attributes {stable_mosaic.version = 11 : i64} {
  func.func @_mid_kernel(%arg0: i32, %arg1: memref<128x128xbf16, #tpu.memory_space<vmem>>, %arg2: memref<1x128xf32, #tpu.memory_space<vmem>>, %arg3: memref<1x128xf32, #tpu.memory_space<vmem>>, %arg4: memref<128x128xbf16, #tpu.memory_space<vmem>>, %arg5: memref<128x128xbf16, #tpu.memory_space<vmem>>, %arg6: memref<128x128xbf16, #tpu.memory_space<vmem>>, %arg7: memref<128x128xbf16, #tpu.memory_space<vmem>>, %arg8: memref<128x128xbf16, #tpu.memory_space<vmem>>, %arg9: memref<1x1x128xf32, #tpu.memory_space<vmem>>, %arg10: memref<1x1x128xf32, #tpu.memory_space<vmem>>, %arg11: memref<1x1x128xf32, #tpu.memory_space<vmem>>, %arg12: memref<1x1x128xf32, #tpu.memory_space<vmem>>) attributes {dimension_semantics = [#tpu.dimension_semantics<parallel>], iteration_bounds = array<i64: 1>, scalar_prefetch = 0 : i64, scratch_operands = 0 : i64, tpu.core_type = #tpu.core_type<tc>, window_params = [{transform_indices = @transform_0, window_bounds = array<i64: 128, 128>}, {pipeline_mode = #tpu.pipeline_mode<synchronous>, transform_indices = @transform_1, window_bounds = array<i64: 1, 128>}, {pipeline_mode = #tpu.pipeline_mode<synchronous>, transform_indices = @transform_2, window_bounds = array<i64: 1, 128>}, {pipeline_mode = #tpu.pipeline_mode<synchronous>, transform_indices = @transform_3, window_bounds = array<i64: 128, 128>}, {transform_indices = @transform_4, window_bounds = array<i64: 128, 128>}, {pipeline_mode = #tpu.pipeline_mode<synchronous>, transform_indices = @transform_5, window_bounds = array<i64: 128, 128>}, {transform_indices = @transform_6, window_bounds = array<i64: 128, 128>}, {transform_indices = @transform_7, window_bounds = array<i64: 128, 128>}, {transform_indices = @transform_8, window_bounds = array<i64: 1, 1, 128>}, {transform_indices = @transform_9, window_bounds = array<i64: 1, 1, 128>}, {transform_indices = @transform_10, window_bounds = array<i64: 1, 1, 128>}, {transform_indices = @transform_11, window_bounds = array<i64: 1, 1, 128>}]} {
    %c0 = arith.constant 0 : index
    %c0_0 = arith.constant 0 : index
    %0 = vector.load %arg1[%c0, %c0_0] : memref<128x128xbf16, #tpu.memory_space<vmem>>, vector<128x128xbf16>
    %1 = arith.extf %0 : vector<128x128xbf16> to vector<128x128xf32>
    %c0_1 = arith.constant 0 : index
    %c0_2 = arith.constant 0 : index
    %2 = vector.load %arg2[%c0_1, %c0_2] : memref<1x128xf32, #tpu.memory_space<vmem>>, vector<1x128xf32>
    %3 = vector.broadcast %2 : vector<1x128xf32> to vector<128x128xf32>
    %4 = arith.mulf %1, %3 : vector<128x128xf32>
    %c0_3 = arith.constant 0 : index
    %c0_4 = arith.constant 0 : index
    %5 = vector.load %arg3[%c0_3, %c0_4] : memref<1x128xf32, #tpu.memory_space<vmem>>, vector<1x128xf32>
    %6 = vector.broadcast %5 : vector<1x128xf32> to vector<128x128xf32>
    %7 = arith.addf %4, %6 : vector<128x128xf32>
    %cst = arith.constant 0.000000e+00 : f32
    %8 = vector.broadcast %cst : f32 to vector<128x128xf32>
    %9 = arith.maximumf %7, %8 : vector<128x128xf32>
    %10 = arith.truncf %9 : vector<128x128xf32> to vector<128x128xbf16>
    %c0_5 = arith.constant 0 : index
    %c0_6 = arith.constant 0 : index
    %11 = vector.load %arg4[%c0_5, %c0_6] : memref<128x128xbf16, #tpu.memory_space<vmem>>, vector<128x128xbf16>
    %cst_7 = arith.constant dense<0.000000e+00> : vector<128x128xf32>
    %12 = tpu.matmul %10, %11, %cst_7 {dimension_numbers = #tpu.dot_dimension_numbers<[1], [0], [0], [1], [0, 0, 1, 1], [], []>} : vector<128x128xbf16>, vector<128x128xbf16>, vector<128x128xf32> -> vector<128x128xf32>
    %c0_8 = arith.constant 0 : index
    %c0_9 = arith.constant 0 : index
    %13 = vector.load %arg5[%c0_8, %c0_9] : memref<128x128xbf16, #tpu.memory_space<vmem>>, vector<128x128xbf16>
    %c0_10 = arith.constant 0 : index
    %c0_11 = arith.constant 0 : index
    %14 = vector.load %arg6[%c0_10, %c0_11] : memref<128x128xbf16, #tpu.memory_space<vmem>>, vector<128x128xbf16>
    %cst_12 = arith.constant dense<0.000000e+00> : vector<128x128xf32>
    %15 = tpu.matmul %13, %14, %cst_12 {dimension_numbers = #tpu.dot_dimension_numbers<[1], [0], [0], [1], [0, 0, 1, 1], [], []>} : vector<128x128xbf16>, vector<128x128xbf16>, vector<128x128xf32> -> vector<128x128xf32>
    %16 = arith.truncf %12 : vector<128x128xf32> to vector<128x128xbf16>
    %c0_13 = arith.constant 0 : index
    %c0_14 = arith.constant 0 : index
    %17 = vector.load %arg7[%c0_13, %c0_14] : memref<128x128xbf16, #tpu.memory_space<vmem>>, vector<128x128xbf16>
    tpu.vector_store %arg7[%c0_13, %c0_14], %16 {strides = array<i32>} : memref<128x128xbf16, #tpu.memory_space<vmem>>, vector<128x128xbf16>,
    %18 = arith.truncf %15 : vector<128x128xf32> to vector<128x128xbf16>
    %c0_15 = arith.constant 0 : index
    %c0_16 = arith.constant 0 : index
    %19 = vector.load %arg8[%c0_15, %c0_16] : memref<128x128xbf16, #tpu.memory_space<vmem>>, vector<128x128xbf16>
    tpu.vector_store %arg8[%c0_15, %c0_16], %18 {strides = array<i32>} : memref<128x128xbf16, #tpu.memory_space<vmem>>, vector<128x128xbf16>,
    %cst_17 = arith.constant dense<0.000000e+00> : vector<128xf32>
    %20 = vector.multi_reduction <add>, %12, %cst_17 [0] : vector<128x128xf32> to vector<128xf32>
    %21 = vector.shape_cast %20 : vector<128xf32> to vector<1x128xf32>
    %c0_18 = arith.constant 0 : index
    %c0_19 = arith.constant 0 : index
    %c0_20 = arith.constant 0 : index
    %22 = vector.load %arg9[%c0_18, %c0_19, %c0_20] : memref<1x1x128xf32, #tpu.memory_space<vmem>>, vector<1x1x128xf32>
    %23 = vector.shape_cast %22 : vector<1x1x128xf32> to vector<1x128xf32>
    %24 = vector.shape_cast %21 : vector<1x128xf32> to vector<1x1x128xf32>
    tpu.vector_store %arg9[%c0_18, %c0_19, %c0_20], %24 {strides = array<i32>} : memref<1x1x128xf32, #tpu.memory_space<vmem>>, vector<1x1x128xf32>,
    %25 = arith.mulf %12, %12 : vector<128x128xf32>
    %cst_21 = arith.constant dense<0.000000e+00> : vector<128xf32>
    %26 = vector.multi_reduction <add>, %25, %cst_21 [0] : vector<128x128xf32> to vector<128xf32>
    %27 = vector.shape_cast %26 : vector<128xf32> to vector<1x128xf32>
    %c0_22 = arith.constant 0 : index
    %c0_23 = arith.constant 0 : index
    %c0_24 = arith.constant 0 : index
    %28 = vector.load %arg10[%c0_22, %c0_23, %c0_24] : memref<1x1x128xf32, #tpu.memory_space<vmem>>, vector<1x1x128xf32>
    %29 = vector.shape_cast %28 : vector<1x1x128xf32> to vector<1x128xf32>
    %30 = vector.shape_cast %27 : vector<1x128xf32> to vector<1x1x128xf32>
    tpu.vector_store %arg10[%c0_22, %c0_23, %c0_24], %30 {strides = array<i32>} : memref<1x1x128xf32, #tpu.memory_space<vmem>>, vector<1x1x128xf32>,
    %cst_25 = arith.constant dense<0.000000e+00> : vector<128xf32>
    %31 = vector.multi_reduction <add>, %15, %cst_25 [0] : vector<128x128xf32> to vector<128xf32>
    %32 = vector.shape_cast %31 : vector<128xf32> to vector<1x128xf32>
    %c0_26 = arith.constant 0 : index
    %c0_27 = arith.constant 0 : index
    %c0_28 = arith.constant 0 : index
    %33 = vector.load %arg11[%c0_26, %c0_27, %c0_28] : memref<1x1x128xf32, #tpu.memory_space<vmem>>, vector<1x1x128xf32>
    %34 = vector.shape_cast %33 : vector<1x1x128xf32> to vector<1x128xf32>
    %35 = vector.shape_cast %32 : vector<1x128xf32> to vector<1x1x128xf32>
    tpu.vector_store %arg11[%c0_26, %c0_27, %c0_28], %35 {strides = array<i32>} : memref<1x1x128xf32, #tpu.memory_space<vmem>>, vector<1x1x128xf32>,
    %36 = arith.mulf %15, %15 : vector<128x128xf32>
    %cst_29 = arith.constant dense<0.000000e+00> : vector<128xf32>
    %37 = vector.multi_reduction <add>, %36, %cst_29 [0] : vector<128x128xf32> to vector<128xf32>
    %38 = vector.shape_cast %37 : vector<128xf32> to vector<1x128xf32>
    %c0_30 = arith.constant 0 : index
    %c0_31 = arith.constant 0 : index
    %c0_32 = arith.constant 0 : index
    %39 = vector.load %arg12[%c0_30, %c0_31, %c0_32] : memref<1x1x128xf32, #tpu.memory_space<vmem>>, vector<1x1x128xf32>
    %40 = vector.shape_cast %39 : vector<1x1x128xf32> to vector<1x128xf32>
    %41 = vector.shape_cast %38 : vector<1x128xf32> to vector<1x1x128xf32>
    tpu.vector_store %arg12[%c0_30, %c0_31, %c0_32], %41 {strides = array<i32>} : memref<1x1x128xf32, #tpu.memory_space<vmem>>, vector<1x1x128xf32>,
    return
  }
  func.func @transform_0(%arg0: i32) -> (i32, i32) {
    %c0_i32 = arith.constant 0 : i32
    %c0_i32_0 = arith.constant 0 : i32
    return %arg0, %c0_i32 : i32, i32
  }
  func.func @transform_1(%arg0: i32) -> (i32, i32) {
    %c0_i32 = arith.constant 0 : i32
    %c0_i32_0 = arith.constant 0 : i32
    %c0_i32_1 = arith.constant 0 : i32
    return %c0_i32, %c0_i32_0 : i32, i32
  }
  func.func @transform_2(%arg0: i32) -> (i32, i32) {
    %c0_i32 = arith.constant 0 : i32
    %c0_i32_0 = arith.constant 0 : i32
    %c0_i32_1 = arith.constant 0 : i32
    return %c0_i32, %c0_i32_0 : i32, i32
  }
  func.func @transform_3(%arg0: i32) -> (i32, i32) {
    %c0_i32 = arith.constant 0 : i32
    %c0_i32_0 = arith.constant 0 : i32
    %c0_i32_1 = arith.constant 0 : i32
    return %c0_i32, %c0_i32_0 : i32, i32
  }
  func.func @transform_4(%arg0: i32) -> (i32, i32) {
    %c0_i32 = arith.constant 0 : i32
    %c0_i32_0 = arith.constant 0 : i32
    return %arg0, %c0_i32 : i32, i32
  }
  func.func @transform_5(%arg0: i32) -> (i32, i32) {
    %c0_i32 = arith.constant 0 : i32
    %c0_i32_0 = arith.constant 0 : i32
    %c0_i32_1 = arith.constant 0 : i32
    return %c0_i32, %c0_i32_0 : i32, i32
  }
  func.func @transform_6(%arg0: i32) -> (i32, i32) {
    %c0_i32 = arith.constant 0 : i32
    %c0_i32_0 = arith.constant 0 : i32
    return %arg0, %c0_i32 : i32, i32
  }
  func.func @transform_7(%arg0: i32) -> (i32, i32) {
    %c0_i32 = arith.constant 0 : i32
    %c0_i32_0 = arith.constant 0 : i32
    return %arg0, %c0_i32 : i32, i32
  }
  func.func @transform_8(%arg0: i32) -> (i32, i32, i32) {
    %c0_i32 = arith.constant 0 : i32
    %c0_i32_0 = arith.constant 0 : i32
    %c0_i32_1 = arith.constant 0 : i32
    return %arg0, %c0_i32, %c0_i32_0 : i32, i32, i32
  }
  func.func @transform_9(%arg0: i32) -> (i32, i32, i32) {
    %c0_i32 = arith.constant 0 : i32
    %c0_i32_0 = arith.constant 0 : i32
    %c0_i32_1 = arith.constant 0 : i32
    return %arg0, %c0_i32, %c0_i32_0 : i32, i32, i32
  }
  func.func @transform_10(%arg0: i32) -> (i32, i32, i32) {
    %c0_i32 = arith.constant 0 : i32
    %c0_i32_0 = arith.constant 0 : i32
    %c0_i32_1 = arith.constant 0 : i32
    return %arg0, %c0_i32, %c0_i32_0 : i32, i32, i32
  }
  func.func @transform_11(%arg0: i32) -> (i32, i32, i32) {
    %c0_i32 = arith.constant 0 : i32
    %c0_i32_0 = arith.constant 0 : i32
    %c0_i32_1 = arith.constant 0 : i32
    return %arg0, %c0_i32, %c0_i32_0 : i32, i32, i32
  }
}

module attributes {stable_mosaic.version = 11 : i64} {
  func.func @_final_kernel(%arg0: i32, %arg1: memref<128x128xbf16, #tpu.memory_space<vmem>>, %arg2: memref<128x128xbf16, #tpu.memory_space<vmem>>, %arg3: memref<1x128xf32, #tpu.memory_space<vmem>>, %arg4: memref<1x128xf32, #tpu.memory_space<vmem>>, %arg5: memref<1x128xf32, #tpu.memory_space<vmem>>, %arg6: memref<1x128xf32, #tpu.memory_space<vmem>>, %arg7: memref<128x128xf32, #tpu.memory_space<vmem>>) attributes {dimension_semantics = [#tpu.dimension_semantics<parallel>], iteration_bounds = array<i64: 1>, scalar_prefetch = 0 : i64, scratch_operands = 0 : i64, tpu.core_type = #tpu.core_type<tc>, window_params = [{transform_indices = @transform_0, window_bounds = array<i64: 128, 128>}, {transform_indices = @transform_1, window_bounds = array<i64: 128, 128>}, {pipeline_mode = #tpu.pipeline_mode<synchronous>, transform_indices = @transform_2, window_bounds = array<i64: 1, 128>}, {pipeline_mode = #tpu.pipeline_mode<synchronous>, transform_indices = @transform_3, window_bounds = array<i64: 1, 128>}, {pipeline_mode = #tpu.pipeline_mode<synchronous>, transform_indices = @transform_4, window_bounds = array<i64: 1, 128>}, {pipeline_mode = #tpu.pipeline_mode<synchronous>, transform_indices = @transform_5, window_bounds = array<i64: 1, 128>}, {transform_indices = @transform_6, window_bounds = array<i64: 128, 128>}]} {
    %c0 = arith.constant 0 : index
    %c0_0 = arith.constant 0 : index
    %0 = vector.load %arg1[%c0, %c0_0] : memref<128x128xbf16, #tpu.memory_space<vmem>>, vector<128x128xbf16>
    %1 = arith.extf %0 : vector<128x128xbf16> to vector<128x128xf32>
    %c0_1 = arith.constant 0 : index
    %c0_2 = arith.constant 0 : index
    %2 = vector.load %arg3[%c0_1, %c0_2] : memref<1x128xf32, #tpu.memory_space<vmem>>, vector<1x128xf32>
    %3 = vector.broadcast %2 : vector<1x128xf32> to vector<128x128xf32>
    %4 = arith.mulf %1, %3 : vector<128x128xf32>
    %c0_3 = arith.constant 0 : index
    %c0_4 = arith.constant 0 : index
    %5 = vector.load %arg4[%c0_3, %c0_4] : memref<1x128xf32, #tpu.memory_space<vmem>>, vector<1x128xf32>
    %6 = vector.broadcast %5 : vector<1x128xf32> to vector<128x128xf32>
    %7 = arith.addf %4, %6 : vector<128x128xf32>
    %c0_5 = arith.constant 0 : index
    %c0_6 = arith.constant 0 : index
    %8 = vector.load %arg2[%c0_5, %c0_6] : memref<128x128xbf16, #tpu.memory_space<vmem>>, vector<128x128xbf16>
    %9 = arith.extf %8 : vector<128x128xbf16> to vector<128x128xf32>
    %c0_7 = arith.constant 0 : index
    %c0_8 = arith.constant 0 : index
    %10 = vector.load %arg5[%c0_7, %c0_8] : memref<1x128xf32, #tpu.memory_space<vmem>>, vector<1x128xf32>
    %11 = vector.broadcast %10 : vector<1x128xf32> to vector<128x128xf32>
    %12 = arith.mulf %9, %11 : vector<128x128xf32>
    %c0_9 = arith.constant 0 : index
    %c0_10 = arith.constant 0 : index
    %13 = vector.load %arg6[%c0_9, %c0_10] : memref<1x128xf32, #tpu.memory_space<vmem>>, vector<1x128xf32>
    %14 = vector.broadcast %13 : vector<1x128xf32> to vector<128x128xf32>
    %15 = arith.addf %12, %14 : vector<128x128xf32>
    %16 = arith.addf %7, %15 : vector<128x128xf32>
    %cst = arith.constant 0.000000e+00 : f32
    %17 = vector.broadcast %cst : f32 to vector<128x128xf32>
    %18 = arith.maximumf %16, %17 : vector<128x128xf32>
    %c0_11 = arith.constant 0 : index
    %c0_12 = arith.constant 0 : index
    %19 = vector.load %arg7[%c0_11, %c0_12] : memref<128x128xf32, #tpu.memory_space<vmem>>, vector<128x128xf32>
    tpu.vector_store %arg7[%c0_11, %c0_12], %18 {strides = array<i32>} : memref<128x128xf32, #tpu.memory_space<vmem>>, vector<128x128xf32>,
    return
  }
  func.func @transform_0(%arg0: i32) -> (i32, i32) {
    %c0_i32 = arith.constant 0 : i32
    %c0_i32_0 = arith.constant 0 : i32
    return %arg0, %c0_i32 : i32, i32
  }
  func.func @transform_1(%arg0: i32) -> (i32, i32) {
    %c0_i32 = arith.constant 0 : i32
    %c0_i32_0 = arith.constant 0 : i32
    return %arg0, %c0_i32 : i32, i32
  }
  func.func @transform_2(%arg0: i32) -> (i32, i32) {
    %c0_i32 = arith.constant 0 : i32
    %c0_i32_0 = arith.constant 0 : i32
    %c0_i32_1 = arith.constant 0 : i32
    return %c0_i32, %c0_i32_0 : i32, i32
  }
  func.func @transform_3(%arg0: i32) -> (i32, i32) {
    %c0_i32 = arith.constant 0 : i32
    %c0_i32_0 = arith.constant 0 : i32
    %c0_i32_1 = arith.constant 0 : i32
    return %c0_i32, %c0_i32_0 : i32, i32
  }
  func.func @transform_4(%arg0: i32) -> (i32, i32) {
    %c0_i32 = arith.constant 0 : i32
    %c0_i32_0 = arith.constant 0 : i32
    %c0_i32_1 = arith.constant 0 : i32
    return %c0_i32, %c0_i32_0 : i32, i32
  }
  func.func @transform_5(%arg0: i32) -> (i32, i32) {
    %c0_i32 = arith.constant 0 : i32
    %c0_i32_0 = arith.constant 0 : i32
    %c0_i32_1 = arith.constant 0 : i32
    return %c0_i32, %c0_i32_0 : i32, i32
  }
  func.func @transform_6(%arg0: i32) -> (i32, i32) {
    %c0_i32 = arith.constant 0 : i32
    %c0_i32_0 = arith.constant 0 : i32
    return %arg0, %c0_i32 : i32, i32
  }
}

</mosaic_0001>

<llo_original>
// kernel: bottleneck_forward.6
$region0: #{bottleneck_forward.6}
  #allocation0 [shape = 'u32[]', space=smem, size = 0x4, offset = 0x4, fixed_abs, tag = 'smem constant byte address 0x4 - core index']
  #allocation1 [shape = 'u32[144,128]{1,0:T(1,128)}', space=vmem, size = 0x12000, scoped, tag = 'internal scratch']
  %s0 = inlined_call_operand.vmem [shape: bf16[512,128], index: 0, kind: input, shape index: {}]
  %s1 = inlined_call_operand.vmem [shape: f32[1,128], index: 1, kind: input, shape index: {}]
  %s2 = inlined_call_operand.vmem [shape: f32[1,128], index: 2, kind: input, shape index: {}]
  %s3 = inlined_call_operand.vmem [shape: bf16[512,128], index: 3, kind: output, shape index: {}]
  %s4 = sld [smem:[#allocation0]]
  $region45: #{bottleneck_forward.6} parent=0
    _
  %s6 = ssub.s32 1, %s4
  %s7 = scalar_select 0, %s6, %s4
  loop: start=0, step=1, limit=4
  $region2: #{bottleneck_forward.6} parent=0 // loop_pre_header
    _
  $region3: #{bottleneck_forward.6} parent=0 // loop_header
    %s9 = sphi 0, %s13
    %p10 = scmp.ge.s32.totalorder %s9, 4
    %s19 = sphi 0, %s21
    %s22 = sphi 0, %s19
    %s23 = sphi 0, %s22
    %s39 = sphi 0, %s23
    %s43 = sphi 0, %s43
    %s45 = sphi 0, %s43
    %s46 = sphi 0, %s45
    %s60 = sphi 0, %s46
    %s64 = sphi 0, %s64
    %s66 = sphi 0, %s64
    %s67 = sphi 0, %s66
    %s81 = sphi 0, %s67
    %s87 = sphi 0, %s89
    %s90 = sphi 0, %s87
    %s91 = sphi 0, %s90
    %s107 = sphi 0, %s91
  $region4: #{bottleneck_forward.6} parent=0 // loop_header_branch
    %12 = sbr.rel (%p10) target = $region8
  $region5: #{bottleneck_forward.6} parent=0 // loop_body
    %s14 = ssub.s32 %s9, 1
    %s15 = ssub.s32 %s9, 2
    %s16 = sadd.s32 %s9, 1
    %s17 = ssub.s32 %s9, %s16
    %p18 = scmp.eq.s32.totalorder %s17, 0
    %s20 = sadd.s32 %s19, 1
    %s21 = scalar_select %p18, %s19, %s20
    %p24 = pneg %p18
    %p25 = scmp.eq.s32.totalorder %s9, 1
    %p26 = por %p24, %p25
    %p27 = scmp.ne.s32.totalorder %s19, %s22
    %p28 = scmp.eq.s32.totalorder %s9, 0
    %p29 = por %p27, %p28
    %p30 = scmp.ne.s32.totalorder %s19, %s22
    %p31 = scmp.eq.s32.totalorder %s14, 1
    %p32 = por %p30, %p31
    %p33 = scmp.ne.s32.totalorder %s22, %s23
    %p34 = scmp.eq.s32.totalorder %s14, 0
    %p35 = por %p33, %p34
    %p36 = scmp.ne.s32.totalorder %s22, %s23
    %p37 = scmp.eq.s32.totalorder %s15, 1
    %p38 = por %p36, %p37
    %p40 = scmp.ne.s32.totalorder %s23, %s39
    %p41 = scmp.eq.s32.totalorder %s15, 0
    %p42 = por %p40, %p41
    %s44 = sadd.s32 %s43, 1
    %p47 = scmp.eq.s32.totalorder %s9, 1
    %p48 = scmp.ne.s32.totalorder %s43, %s45
    %p49 = scmp.eq.s32.totalorder %s9, 0
    %p50 = por %p48, %p49
    %p51 = scmp.ne.s32.totalorder %s43, %s45
    %p52 = scmp.eq.s32.totalorder %s14, 1
    %p53 = por %p51, %p52
    %p54 = scmp.ne.s32.totalorder %s45, %s46
    %p55 = scmp.eq.s32.totalorder %s14, 0
    %p56 = por %p54, %p55
    %p57 = scmp.ne.s32.totalorder %s45, %s46
    %p58 = scmp.eq.s32.totalorder %s15, 1
    %p59 = por %p57, %p58
    %p61 = scmp.ne.s32.totalorder %s46, %s60
    %p62 = scmp.eq.s32.totalorder %s15, 0
    %p63 = por %p61, %p62
    %s65 = sadd.s32 %s64, 1
    %p68 = scmp.eq.s32.totalorder %s9, 1
    %p69 = scmp.ne.s32.totalorder %s64, %s66
    %p70 = scmp.eq.s32.totalorder %s9, 0
    %p71 = por %p69, %p70
    %p72 = scmp.ne.s32.totalorder %s64, %s66
    %p73 = scmp.eq.s32.totalorder %s14, 1
    %p74 = por %p72, %p73
    %p75 = scmp.ne.s32.totalorder %s66, %s67
    %p76 = scmp.eq.s32.totalorder %s14, 0
    %p77 = por %p75, %p76
    %p78 = scmp.ne.s32.totalorder %s66, %s67
    %p79 = scmp.eq.s32.totalorder %s15, 1
    %p80 = por %p78, %p79
    %p82 = scmp.ne.s32.totalorder %s67, %s81
    %p83 = scmp.eq.s32.totalorder %s15, 0
    %p84 = por %p82, %p83
    %s85 = ssub.s32 %s9, %s16
    %p86 = scmp.eq.s32.totalorder %s85, 0
    %s88 = sadd.s32 %s87, 1
    %s89 = scalar_select %p86, %s87, %s88
    %p92 = pneg %p86
    %p93 = scmp.eq.s32.totalorder %s9, 1
    %p94 = por %p92, %p93
    %p95 = scmp.ne.s32.totalorder %s87, %s90
    %p96 = scmp.eq.s32.totalorder %s9, 0
    %p97 = por %p95, %p96
    %p98 = scmp.ne.s32.totalorder %s87, %s90
    %p99 = scmp.eq.s32.totalorder %s14, 1
    %p100 = por %p98, %p99
    %p101 = scmp.ne.s32.totalorder %s90, %s91
    %p102 = scmp.eq.s32.totalorder %s14, 0
    %p103 = por %p101, %p102
    %p104 = scmp.ne.s32.totalorder %s90, %s91
    %p105 = scmp.eq.s32.totalorder %s15, 1
    %p106 = por %p104, %p105
    %p108 = scmp.ne.s32.totalorder %s91, %s107
    %p109 = scmp.eq.s32.totalorder %s15, 0
    %p110 = por %p108, %p109
    %p111 = scmp.le.s32.totalorder 1, %s9
    %p112 = scmp.lt.s32.totalorder %s9, 3
    %p113 = pnand %p111, %p112
    %p114 = pneg %p113
    // Predicated region
    $region9: #{bottleneck_forward.6} parent=5 // pred_check
      _
    $region10: #{bottleneck_forward.6} parent=5 // pred_check_branch
      %116 = sbr.rel (%p113) target = $region12
    $region11: #{bottleneck_forward.6} parent=5 // pred_region
      %s117 = ssub.s32 %s9, 1
      // Predicated region
      $region13: #{bottleneck_forward.6} parent=11 // pred_check
        %p118 = pneg %p56
      $region14: #{bottleneck_forward.6} parent=11 // pred_check_branch
        %120 = sbr.rel (%p118) target = $region16
      $region15: #{bottleneck_forward.6} parent=11 // pred_region
        _
      $region16: #{bottleneck_forward.6} parent=11 // pred_fallthru
        _
      // Predicated region
      $region17: #{bottleneck_forward.6} parent=11 // pred_check
        %p121 = pneg %p77
      $region18: #{bottleneck_forward.6} parent=11 // pred_check_branch
        %123 = sbr.rel (%p121) target = $region20
      $region19: #{bottleneck_forward.6} parent=11 // pred_region
        _
      $region20: #{bottleneck_forward.6} parent=11 // pred_fallthru
        _
    $region12: #{bottleneck_forward.6} parent=5 // pred_fallthru
      _
    %p124 = scmp.lt.s32.totalorder %s9, 2
    // Predicated region
    $region21: #{bottleneck_forward.6} parent=5 // pred_check
      %p125 = pneg %p124
    $region22: #{bottleneck_forward.6} parent=5 // pred_check_branch
      %127 = sbr.rel (%p125) target = $region24
    $region23: #{bottleneck_forward.6} parent=5 // pred_region
      // Predicated region
      $region25: #{bottleneck_forward.6} parent=23 // pred_check
        %p128 = pneg %p29
      $region26: #{bottleneck_forward.6} parent=23 // pred_check_branch
        %130 = sbr.rel (%p128) target = $region28
      $region27: #{bottleneck_forward.6} parent=23 // pred_region
        %s131 = smul.u32 32, %s9
        %p132 = scmp.lt.s32.totalorder %s131, 63
        %s133 = scalar_select %p132, %s131, 63
        %s134 = smul.addr %s133, 4
        %s135 = scalar_lea.vmem %s0, %s134
        %s136 = smul.u32 32, %s9
      $region28: #{bottleneck_forward.6} parent=23 // pred_fallthru
        _
    $region24: #{bottleneck_forward.6} parent=5 // pred_fallthru
      _
    %p137 = scmp.le.s32.totalorder 1, %s9
    %p138 = scmp.lt.s32.totalorder %s9, 3
    %p139 = pnand %p137, %p138
    %p140 = pneg %p139
    // Predicated region
    $region29: #{bottleneck_forward.6} parent=5 // pred_check
      _
    $region30: #{bottleneck_forward.6} parent=5 // pred_check_branch
      %142 = sbr.rel (%p139) target = $region32
    $region31: #{bottleneck_forward.6} parent=5 // pred_region
      %s143 = ssub.s32 %s9, 1
      %s144 = smul.u32 32, %s14
      %p145 = scmp.lt.s32.totalorder %s144, 63
      %s146 = scalar_select %p145, %s144, 63
      %s147 = smul.addr %s146, 4
      %s148 = scalar_lea.vmem %s0, %s147
      %p149 = pneg %p35
      %p150 = pneg %p32
      %p151 = pneg %p56
      %p152 = pneg %p53
      %p153 = pneg %p77
      %p154 = pneg %p74
      %p155 = pneg %p103
      %p156 = pneg %p100
      %s157 = smul.u32 32, %s14
      %p158 = scmp.lt.s32.totalorder %s157, 63
      %s159 = scalar_select %p158, %s157, 63
      %s160 = smul.addr %s159, 4
      %s161 = scalar_lea.vmem %s3, %s160
      %s162 = smul.u32 32, %s14
      %p163 = scmp.lt.s32.totalorder %s162, 63
      %s164 = scalar_select %p163, %s162, 63
      %s165 = smul.addr %s164, 4
      %s166 = scalar_lea.vmem %s0, %s165
      %s167 = smul.u32 32, %s14
      %s168 = smul.u32 32, %s14
      %p169 = scmp.lt.s32.totalorder %s168, 63
      %s170 = scalar_select %p169, %s168, 63
      %s171 = smul.addr %s170, 4
      %s172 = scalar_lea.vmem %s3, %s171
      %s173 = smul.u32 32, %s14
      %v174 = vld [vmem:[%s166] sm:$0xf]
      %v175 = vld [vmem:[%s166 + $0x4] sm:$0xf]
      %v176 = vld [vmem:[%s166 + $0x8] sm:$0xf]
      %v177 = vld [vmem:[%s166 + $0xc] sm:$0xf]
      %v178 = vld [vmem:[%s166 + $0x10] sm:$0xf]
      %v179 = vld [vmem:[%s166 + $0x14] sm:$0xf]
      %v180 = vld [vmem:[%s166 + $0x18] sm:$0xf]
      %v181 = vld [vmem:[%s166 + $0x1c] sm:$0xf]
      %v182 = vld [vmem:[%s166 + $0x20] sm:$0xf]
      %v183 = vld [vmem:[%s166 + $0x24] sm:$0xf]
      %v184 = vld [vmem:[%s166 + $0x28] sm:$0xf]
      %v185 = vld [vmem:[%s166 + $0x2c] sm:$0xf]
      %v186 = vld [vmem:[%s166 + $0x30] sm:$0xf]
      %v187 = vld [vmem:[%s166 + $0x34] sm:$0xf]
      %v188 = vld [vmem:[%s166 + $0x38] sm:$0xf]
      %v189 = vld [vmem:[%s166 + $0x3c] sm:$0xf]
      %v190 = vld [vmem:[%s166 + $0x40] sm:$0xf]
      %v191 = vld [vmem:[%s166 + $0x44] sm:$0xf]
      %v192 = vld [vmem:[%s166 + $0x48] sm:$0xf]
      %v193 = vld [vmem:[%s166 + $0x4c] sm:$0xf]
      %v194 = vld [vmem:[%s166 + $0x50] sm:$0xf]
      %v195 = vld [vmem:[%s166 + $0x54] sm:$0xf]
      %v196 = vld [vmem:[%s166 + $0x58] sm:$0xf]
      %v197 = vld [vmem:[%s166 + $0x5c] sm:$0xf]
      %v198 = vld [vmem:[%s166 + $0x60] sm:$0xf]
      %v199 = vld [vmem:[%s166 + $0x64] sm:$0xf]
      %v200 = vld [vmem:[%s166 + $0x68] sm:$0xf]
      %v201 = vld [vmem:[%s166 + $0x6c] sm:$0xf]
      %v202 = vld [vmem:[%s166 + $0x70] sm:$0xf]
      %v203 = vld [vmem:[%s166 + $0x74] sm:$0xf]
      %v204 = vld [vmem:[%s166 + $0x78] sm:$0xf]
      %v205 = vld [vmem:[%s166 + $0x7c] sm:$0xf]
      %v206 = vunpack.c.l.bf16 %v174
      %v207 = vunpack.c.l.bf16 %v175
      %v208 = vunpack.c.l.bf16 %v176
      %v209 = vunpack.c.l.bf16 %v177
      %v210 = vunpack.c.l.bf16 %v178
      %v211 = vunpack.c.l.bf16 %v179
      %v212 = vunpack.c.l.bf16 %v180
      %v213 = vunpack.c.l.bf16 %v181
      %v214 = vunpack.c.l.bf16 %v182
      %v215 = vunpack.c.l.bf16 %v183
      %v216 = vunpack.c.l.bf16 %v184
      %v217 = vunpack.c.l.bf16 %v185
      %v218 = vunpack.c.l.bf16 %v186
      %v219 = vunpack.c.l.bf16 %v187
      %v220 = vunpack.c.l.bf16 %v188
      %v221 = vunpack.c.l.bf16 %v189
      %v222 = vunpack.c.l.bf16 %v190
      %v223 = vunpack.c.l.bf16 %v191
      %v224 = vunpack.c.l.bf16 %v192
      %v225 = vunpack.c.l.bf16 %v193
      %v226 = vunpack.c.l.bf16 %v194
      %v227 = vunpack.c.l.bf16 %v195
      %v228 = vunpack.c.l.bf16 %v196
      %v229 = vunpack.c.l.bf16 %v197
      %v230 = vunpack.c.l.bf16 %v198
      %v231 = vunpack.c.l.bf16 %v199
      %v232 = vunpack.c.l.bf16 %v200
      %v233 = vunpack.c.l.bf16 %v201
      %v234 = vunpack.c.l.bf16 %v202
      %v235 = vunpack.c.l.bf16 %v203
      %v236 = vunpack.c.l.bf16 %v204
      %v237 = vunpack.c.l.bf16 %v205
      %v238 = vld [vmem:[%s1] sm:$0x1]
      %v240 = vlaneseq
      %v241 = vshrl.u32 %v240, 7
      %v242 = vsub.s32 0, %v241
      %v243 = vrot.slane %v238, %v242
      %v245 = vmul.f32 %v206, %v243
      %v246 = vmul.f32 %v207, %v243
      %v247 = vmul.f32 %v208, %v243
      %v248 = vmul.f32 %v209, %v243
      %v249 = vmul.f32 %v210, %v243
      %v250 = vmul.f32 %v211, %v243
      %v251 = vmul.f32 %v212, %v243
      %v252 = vmul.f32 %v213, %v243
      %v253 = vmul.f32 %v214, %v243
      %v254 = vmul.f32 %v215, %v243
      %v255 = vmul.f32 %v216, %v243
      %v256 = vmul.f32 %v217, %v243
      %v257 = vmul.f32 %v218, %v243
      %v258 = vmul.f32 %v219, %v243
      %v259 = vmul.f32 %v220, %v243
      %v260 = vmul.f32 %v221, %v243
      %v261 = vmul.f32 %v222, %v243
      %v262 = vmul.f32 %v223, %v243
      %v263 = vmul.f32 %v224, %v243
      %v264 = vmul.f32 %v225, %v243
      %v265 = vmul.f32 %v226, %v243
      %v266 = vmul.f32 %v227, %v243
      %v267 = vmul.f32 %v228, %v243
      %v268 = vmul.f32 %v229, %v243
      %v269 = vmul.f32 %v230, %v243
      %v270 = vmul.f32 %v231, %v243
      %v271 = vmul.f32 %v232, %v243
      %v272 = vmul.f32 %v233, %v243
      %v273 = vmul.f32 %v234, %v243
      %v274 = vmul.f32 %v235, %v243
      %v275 = vmul.f32 %v236, %v243
      %v276 = vmul.f32 %v237, %v243
      %v277 = vld [vmem:[%s2] sm:$0x1]
      %v279 = vlaneseq
      %v280 = vshrl.u32 %v279, 7
      %v281 = vsub.s32 0, %v280
      %v282 = vrot.slane %v277, %v281
      %v284 = vadd.f32 %v245, %v282
      %v285 = vadd.f32 %v246, %v282
      %v286 = vadd.f32 %v247, %v282
      %v287 = vadd.f32 %v248, %v282
      %v288 = vadd.f32 %v249, %v282
      %v289 = vadd.f32 %v250, %v282
      %v290 = vadd.f32 %v251, %v282
      %v291 = vadd.f32 %v252, %v282
      %v292 = vadd.f32 %v253, %v282
      %v293 = vadd.f32 %v254, %v282
      %v294 = vadd.f32 %v255, %v282
      %v295 = vadd.f32 %v256, %v282
      %v296 = vadd.f32 %v257, %v282
      %v297 = vadd.f32 %v258, %v282
      %v298 = vadd.f32 %v259, %v282
      %v299 = vadd.f32 %v260, %v282
      %v300 = vadd.f32 %v261, %v282
      %v301 = vadd.f32 %v262, %v282
      %v302 = vadd.f32 %v263, %v282
      %v303 = vadd.f32 %v264, %v282
      %v304 = vadd.f32 %v265, %v282
      %v305 = vadd.f32 %v266, %v282
      %v306 = vadd.f32 %v267, %v282
      %v307 = vadd.f32 %v268, %v282
      %v308 = vadd.f32 %v269, %v282
      %v309 = vadd.f32 %v270, %v282
      %v310 = vadd.f32 %v271, %v282
      %v311 = vadd.f32 %v272, %v282
      %v312 = vadd.f32 %v273, %v282
      %v313 = vadd.f32 %v274, %v282
      %v314 = vadd.f32 %v275, %v282
      %v315 = vadd.f32 %v276, %v282
      %v316 = vmax.f32 %v284, 0.0
      %v317 = vmax.f32 %v285, 0.0
      %v318 = vmax.f32 %v286, 0.0
      %v319 = vmax.f32 %v287, 0.0
      %v320 = vmax.f32 %v288, 0.0
      %v321 = vmax.f32 %v289, 0.0
      %v322 = vmax.f32 %v290, 0.0
      %v323 = vmax.f32 %v291, 0.0
      %v324 = vmax.f32 %v292, 0.0
      %v325 = vmax.f32 %v293, 0.0
      %v326 = vmax.f32 %v294, 0.0
      %v327 = vmax.f32 %v295, 0.0
      %v328 = vmax.f32 %v296, 0.0
      %v329 = vmax.f32 %v297, 0.0
      %v330 = vmax.f32 %v298, 0.0
      %v331 = vmax.f32 %v299, 0.0
      %v332 = vmax.f32 %v300, 0.0
      %v333 = vmax.f32 %v301, 0.0
      %v334 = vmax.f32 %v302, 0.0
      %v335 = vmax.f32 %v303, 0.0
      %v336 = vmax.f32 %v304, 0.0
      %v337 = vmax.f32 %v305, 0.0
      %v338 = vmax.f32 %v306, 0.0
      %v339 = vmax.f32 %v307, 0.0
      %v340 = vmax.f32 %v308, 0.0
      %v341 = vmax.f32 %v309, 0.0
      %v342 = vmax.f32 %v310, 0.0
      %v343 = vmax.f32 %v311, 0.0
      %v344 = vmax.f32 %v312, 0.0
      %v345 = vmax.f32 %v313, 0.0
      %v346 = vmax.f32 %v314, 0.0
      %v347 = vmax.f32 %v315, 0.0
      %v348 = vpack.c.bf16 %v317, %v316
      %v349 = vpack.c.bf16 %v319, %v318
      %v350 = vpack.c.bf16 %v321, %v320
      %v351 = vpack.c.bf16 %v323, %v322
      %v352 = vpack.c.bf16 %v325, %v324
      %v353 = vpack.c.bf16 %v327, %v326
      %v354 = vpack.c.bf16 %v329, %v328
      %v355 = vpack.c.bf16 %v331, %v330
      %v356 = vpack.c.bf16 %v333, %v332
      %v357 = vpack.c.bf16 %v335, %v334
      %v358 = vpack.c.bf16 %v337, %v336
      %v359 = vpack.c.bf16 %v339, %v338
      %v360 = vpack.c.bf16 %v341, %v340
      %v361 = vpack.c.bf16 %v343, %v342
      %v362 = vpack.c.bf16 %v345, %v344
      %v363 = vpack.c.bf16 %v347, %v346
      %v380 = vunpack.c.l.b16 %v348
      %v381 = vunpack.c.h.b16 %v348
      %v382 = vunpack.c.l.b16 %v349
      %v383 = vunpack.c.h.b16 %v349
      %v384 = vunpack.c.l.b16 %v350
      %v385 = vunpack.c.h.b16 %v350
      %v386 = vunpack.c.l.b16 %v351
      %v387 = vunpack.c.h.b16 %v351
      %v388 = vunpack.c.l.b16 %v352
      %v389 = vunpack.c.h.b16 %v352
      %v390 = vunpack.c.l.b16 %v353
      %v391 = vunpack.c.h.b16 %v353
      %v392 = vunpack.c.l.b16 %v354
      %v393 = vunpack.c.h.b16 %v354
      %v394 = vunpack.c.l.b16 %v355
      %v395 = vunpack.c.h.b16 %v355
      %v396 = vunpack.c.l.b16 %v356
      %v397 = vunpack.c.h.b16 %v356
      %v398 = vunpack.c.l.b16 %v357
      %v399 = vunpack.c.h.b16 %v357
      %v400 = vunpack.c.l.b16 %v358
      %v401 = vunpack.c.h.b16 %v358
      %v402 = vunpack.c.l.b16 %v359
      %v403 = vunpack.c.h.b16 %v359
      %v404 = vunpack.c.l.b16 %v360
      %v405 = vunpack.c.h.b16 %v360
      %v406 = vunpack.c.l.b16 %v361
      %v407 = vunpack.c.h.b16 %v361
      %v408 = vunpack.c.l.b16 %v362
      %v409 = vunpack.c.h.b16 %v362
      %v410 = vunpack.c.l.b16 %v363
      %v411 = vunpack.c.h.b16 %v363
      %v412 = vpack.c.b16 %v380, %v380
      %v413 = vpack.c.b16 %v381, %v381
      %v414 = vpack.c.b16 %v382, %v382
      %v415 = vpack.c.b16 %v383, %v383
      %v416 = vpack.c.b16 %v384, %v384
      %v417 = vpack.c.b16 %v385, %v385
      %v418 = vpack.c.b16 %v386, %v386
      %v419 = vpack.c.b16 %v387, %v387
      %v420 = vpack.c.b16 %v388, %v388
      %v421 = vpack.c.b16 %v389, %v389
      %v422 = vpack.c.b16 %v390, %v390
      %v423 = vpack.c.b16 %v391, %v391
      %v424 = vpack.c.b16 %v392, %v392
      %v425 = vpack.c.b16 %v393, %v393
      %v426 = vpack.c.b16 %v394, %v394
      %v427 = vpack.c.b16 %v395, %v395
      %v428 = vpack.c.b16 %v396, %v396
      %v429 = vpack.c.b16 %v397, %v397
      %v430 = vpack.c.b16 %v398, %v398
      %v431 = vpack.c.b16 %v399, %v399
      %v432 = vpack.c.b16 %v400, %v400
      %v433 = vpack.c.b16 %v401, %v401
      %v434 = vpack.c.b16 %v402, %v402
      %v435 = vpack.c.b16 %v403, %v403
      %v436 = vpack.c.b16 %v404, %v404
      %v437 = vpack.c.b16 %v405, %v405
      %v438 = vpack.c.b16 %v406, %v406
      %v439 = vpack.c.b16 %v407, %v407
      %v440 = vpack.c.b16 %v408, %v408
      %v441 = vpack.c.b16 %v409, %v409
      %v442 = vpack.c.b16 %v410, %v410
      %v443 = vpack.c.b16 %v411, %v411
      %476 = vst [vmem:[%s172] sm:$0xf] %v412
      %477 = vst [vmem:[%s172 + $0x4] sm:$0xf] %v413
      %478 = vst [vmem:[%s172 + $0x8] sm:$0xf] %v414
      %479 = vst [vmem:[%s172 + $0xc] sm:$0xf] %v415
      %480 = vst [vmem:[%s172 + $0x10] sm:$0xf] %v416
      %481 = vst [vmem:[%s172 + $0x14] sm:$0xf] %v417
      %482 = vst [vmem:[%s172 + $0x18] sm:$0xf] %v418
      %483 = vst [vmem:[%s172 + $0x1c] sm:$0xf] %v419
      %484 = vst [vmem:[%s172 + $0x20] sm:$0xf] %v420
      %485 = vst [vmem:[%s172 + $0x24] sm:$0xf] %v421
      %486 = vst [vmem:[%s172 + $0x28] sm:$0xf] %v422
      %487 = vst [vmem:[%s172 + $0x2c] sm:$0xf] %v423
      %488 = vst [vmem:[%s172 + $0x30] sm:$0xf] %v424
      %489 = vst [vmem:[%s172 + $0x34] sm:$0xf] %v425
      %490 = vst [vmem:[%s172 + $0x38] sm:$0xf] %v426
      %491 = vst [vmem:[%s172 + $0x3c] sm:$0xf] %v427
      %492 = vst [vmem:[%s172 + $0x40] sm:$0xf] %v428
      %493 = vst [vmem:[%s172 + $0x44] sm:$0xf] %v429
      %494 = vst [vmem:[%s172 + $0x48] sm:$0xf] %v430
      %495 = vst [vmem:[%s172 + $0x4c] sm:$0xf] %v431
      %496 = vst [vmem:[%s172 + $0x50] sm:$0xf] %v432
      %497 = vst [vmem:[%s172 + $0x54] sm:$0xf] %v433
      %498 = vst [vmem:[%s172 + $0x58] sm:$0xf] %v434
      %499 = vst [vmem:[%s172 + $0x5c] sm:$0xf] %v435
      %500 = vst [vmem:[%s172 + $0x60] sm:$0xf] %v436
      %501 = vst [vmem:[%s172 + $0x64] sm:$0xf] %v437
      %502 = vst [vmem:[%s172 + $0x68] sm:$0xf] %v438
      %503 = vst [vmem:[%s172 + $0x6c] sm:$0xf] %v439
      %504 = vst [vmem:[%s172 + $0x70] sm:$0xf] %v440
      %505 = vst [vmem:[%s172 + $0x74] sm:$0xf] %v441
      %506 = vst [vmem:[%s172 + $0x78] sm:$0xf] %v442
      %507 = vst [vmem:[%s172 + $0x7c] sm:$0xf] %v443
      %s508 = smul.u32 32, %s14
      %p509 = scmp.lt.s32.totalorder %s508, 63
      %s510 = scalar_select %p509, %s508, 63
      %s511 = smul.addr %s510, 4
      %s512 = scalar_lea.vmem %s3, %s511
      // Predicated region
      $region33: #{bottleneck_forward.6} parent=31 // pred_check
        %p513 = pneg %p100
      $region34: #{bottleneck_forward.6} parent=31 // pred_check_branch
        %515 = sbr.rel (%p513) target = $region36
      $region35: #{bottleneck_forward.6} parent=31 // pred_region
        %s516 = smul.u32 32, %s14
      $region36: #{bottleneck_forward.6} parent=31 // pred_fallthru
        _
    $region32: #{bottleneck_forward.6} parent=5 // pred_fallthru
      _
    %p517 = scmp.le.s32.totalorder 2, %s9
    // Predicated region
    $region37: #{bottleneck_forward.6} parent=5 // pred_check
      %p518 = pneg %p517
    $region38: #{bottleneck_forward.6} parent=5 // pred_check_branch
      %520 = sbr.rel (%p518) target = $region40
    $region39: #{bottleneck_forward.6} parent=5 // pred_region
      %s521 = ssub.s32 %s9, 2
      // Predicated region
      $region41: #{bottleneck_forward.6} parent=39 // pred_check
        %p522 = pneg %p106
      $region42: #{bottleneck_forward.6} parent=39 // pred_check_branch
        %524 = sbr.rel (%p522) target = $region44
      $region43: #{bottleneck_forward.6} parent=39 // pred_region
        %s525 = smul.u32 32, %s15
        %p526 = scmp.lt.s32.totalorder %s525, 63
        %s527 = scalar_select %p526, %s525, 63
        %s528 = smul.addr %s527, 4
        %s529 = scalar_lea.vmem %s3, %s528
      $region44: #{bottleneck_forward.6} parent=39 // pred_fallthru
        _
    $region40: #{bottleneck_forward.6} parent=5 // pred_fallthru
      _
  $region6: #{bottleneck_forward.6} parent=0 // loop_footer
    %s13 = sadd.s32 1, %s9
  $region7: #{bottleneck_forward.6} parent=0 // loop_footer_branch
    %8 = sbr.rel target = $region3
  $region8: #{bottleneck_forward.6} parent=0 // loop_exit
    _

// kernel: bottleneck_forward.5
$region0: #{bottleneck_forward.5}
  #allocation0 [shape = 'u32[]', space=smem, size = 0x4, offset = 0x4, fixed_abs, tag = 'smem constant byte address 0x4 - core index']
  #allocation1 [shape = 'u32[144,128]{1,0:T(1,128)}', space=vmem, size = 0x12000, scoped, tag = 'internal scratch']
  %s0 = inlined_call_operand.vmem [shape: bf16[512,128], index: 0, kind: input, shape index: {}]
  %s1 = inlined_call_operand.vmem [shape: bf16[128,128], index: 1, kind: input, shape index: {}]
  %s2 = inlined_call_operand.vmem [shape: bf16[512,128], index: 2, kind: output, shape index: {0}]
  %s3 = inlined_call_operand.vmem [shape: f32[2,1,128], index: 3, kind: output, shape index: {1}]
  %s4 = inlined_call_operand.vmem [shape: f32[2,1,128], index: 4, kind: output, shape index: {2}]
  %5 = xla_tuple %s2, %s3, %s4
  %s6 = sld [smem:[#allocation0]]
  $region57: #{bottleneck_forward.5} parent=0
    _
  %s8 = ssub.s32 1, %s6
  %s9 = scalar_select 0, %s8, %s6
  loop: start=0, step=1, limit=4
  $region2: #{bottleneck_forward.5} parent=0 // loop_pre_header
    _
  $region3: #{bottleneck_forward.5} parent=0 // loop_header
    %s11 = sphi 0, %s15
    %p12 = scmp.ge.s32.totalorder %s11, 4
    %s21 = sphi 0, %s23
    %s24 = sphi 0, %s21
    %s25 = sphi 0, %s24
    %s41 = sphi 0, %s25
    %s45 = sphi 0, %s45
    %s47 = sphi 0, %s45
    %s48 = sphi 0, %s47
    %s62 = sphi 0, %s48
    %s68 = sphi 0, %s70
    %s71 = sphi 0, %s68
    %s72 = sphi 0, %s71
    %s88 = sphi 0, %s72
    %s94 = sphi 0, %s96
    %s97 = sphi 0, %s94
    %s98 = sphi 0, %s97
    %s114 = sphi 0, %s98
    %s120 = sphi 0, %s122
    %s123 = sphi 0, %s120
    %s124 = sphi 0, %s123
    %s140 = sphi 0, %s124
  $region4: #{bottleneck_forward.5} parent=0 // loop_header_branch
    %14 = sbr.rel (%p12) target = $region8
  $region5: #{bottleneck_forward.5} parent=0 // loop_body
    %s16 = ssub.s32 %s11, 1
    %s17 = ssub.s32 %s11, 2
    %s18 = sadd.s32 %s11, 1
    %s19 = ssub.s32 %s11, %s18
    %p20 = scmp.eq.s32.totalorder %s19, 0
    %s22 = sadd.s32 %s21, 1
    %s23 = scalar_select %p20, %s21, %s22
    %p26 = pneg %p20
    %p27 = scmp.eq.s32.totalorder %s11, 1
    %p28 = por %p26, %p27
    %p29 = scmp.ne.s32.totalorder %s21, %s24
    %p30 = scmp.eq.s32.totalorder %s11, 0
    %p31 = por %p29, %p30
    %p32 = scmp.ne.s32.totalorder %s21, %s24
    %p33 = scmp.eq.s32.totalorder %s16, 1
    %p34 = por %p32, %p33
    %p35 = scmp.ne.s32.totalorder %s24, %s25
    %p36 = scmp.eq.s32.totalorder %s16, 0
    %p37 = por %p35, %p36
    %p38 = scmp.ne.s32.totalorder %s24, %s25
    %p39 = scmp.eq.s32.totalorder %s17, 1
    %p40 = por %p38, %p39
    %p42 = scmp.ne.s32.totalorder %s25, %s41
    %p43 = scmp.eq.s32.totalorder %s17, 0
    %p44 = por %p42, %p43
    %s46 = sadd.s32 %s45, 1
    %p49 = scmp.eq.s32.totalorder %s11, 1
    %p50 = scmp.ne.s32.totalorder %s45, %s47
    %p51 = scmp.eq.s32.totalorder %s11, 0
    %p52 = por %p50, %p51
    %p53 = scmp.ne.s32.totalorder %s45, %s47
    %p54 = scmp.eq.s32.totalorder %s16, 1
    %p55 = por %p53, %p54
    %p56 = scmp.ne.s32.totalorder %s47, %s48
    %p57 = scmp.eq.s32.totalorder %s16, 0
    %p58 = por %p56, %p57
    %p59 = scmp.ne.s32.totalorder %s47, %s48
    %p60 = scmp.eq.s32.totalorder %s17, 1
    %p61 = por %p59, %p60
    %p63 = scmp.ne.s32.totalorder %s48, %s62
    %p64 = scmp.eq.s32.totalorder %s17, 0
    %p65 = por %p63, %p64
    %s66 = ssub.s32 %s11, %s18
    %p67 = scmp.eq.s32.totalorder %s66, 0
    %s69 = sadd.s32 %s68, 1
    %s70 = scalar_select %p67, %s68, %s69
    %p73 = pneg %p67
    %p74 = scmp.eq.s32.totalorder %s11, 1
    %p75 = por %p73, %p74
    %p76 = scmp.ne.s32.totalorder %s68, %s71
    %p77 = scmp.eq.s32.totalorder %s11, 0
    %p78 = por %p76, %p77
    %p79 = scmp.ne.s32.totalorder %s68, %s71
    %p80 = scmp.eq.s32.totalorder %s16, 1
    %p81 = por %p79, %p80
    %p82 = scmp.ne.s32.totalorder %s71, %s72
    %p83 = scmp.eq.s32.totalorder %s16, 0
    %p84 = por %p82, %p83
    %p85 = scmp.ne.s32.totalorder %s71, %s72
    %p86 = scmp.eq.s32.totalorder %s17, 1
    %p87 = por %p85, %p86
    %p89 = scmp.ne.s32.totalorder %s72, %s88
    %p90 = scmp.eq.s32.totalorder %s17, 0
    %p91 = por %p89, %p90
    %s92 = ssub.s32 %s11, %s18
    %p93 = scmp.eq.s32.totalorder %s92, 0
    %s95 = sadd.s32 %s94, 1
    %s96 = scalar_select %p93, %s94, %s95
    %p99 = pneg %p93
    %p100 = scmp.eq.s32.totalorder %s11, 1
    %p101 = por %p99, %p100
    %p102 = scmp.ne.s32.totalorder %s94, %s97
    %p103 = scmp.eq.s32.totalorder %s11, 0
    %p104 = por %p102, %p103
    %p105 = scmp.ne.s32.totalorder %s94, %s97
    %p106 = scmp.eq.s32.totalorder %s16, 1
    %p107 = por %p105, %p106
    %p108 = scmp.ne.s32.totalorder %s97, %s98
    %p109 = scmp.eq.s32.totalorder %s16, 0
    %p110 = por %p108, %p109
    %p111 = scmp.ne.s32.totalorder %s97, %s98
    %p112 = scmp.eq.s32.totalorder %s17, 1
    %p113 = por %p111, %p112
    %p115 = scmp.ne.s32.totalorder %s98, %s114
    %p116 = scmp.eq.s32.totalorder %s17, 0
    %p117 = por %p115, %p116
    %s118 = ssub.s32 %s11, %s18
    %p119 = scmp.eq.s32.totalorder %s118, 0
    %s121 = sadd.s32 %s120, 1
    %s122 = scalar_select %p119, %s120, %s121
    %p125 = pneg %p119
    %p126 = scmp.eq.s32.totalorder %s11, 1
    %p127 = por %p125, %p126
    %p128 = scmp.ne.s32.totalorder %s120, %s123
    %p129 = scmp.eq.s32.totalorder %s11, 0
    %p130 = por %p128, %p129
    %p131 = scmp.ne.s32.totalorder %s120, %s123
    %p132 = scmp.eq.s32.totalorder %s16, 1
    %p133 = por %p131, %p132
    %p134 = scmp.ne.s32.totalorder %s123, %s124
    %p135 = scmp.eq.s32.totalorder %s16, 0
    %p136 = por %p134, %p135
    %p137 = scmp.ne.s32.totalorder %s123, %s124
    %p138 = scmp.eq.s32.totalorder %s17, 1
    %p139 = por %p137, %p138
    %p141 = scmp.ne.s32.totalorder %s124, %s140
    %p142 = scmp.eq.s32.totalorder %s17, 0
    %p143 = por %p141, %p142
    %p144 = scmp.le.s32.totalorder 1, %s11
    %p145 = scmp.lt.s32.totalorder %s11, 3
    %p146 = pnand %p144, %p145
    %p147 = pneg %p146
    // Predicated region
    $region9: #{bottleneck_forward.5} parent=5 // pred_check
      _
    $region10: #{bottleneck_forward.5} parent=5 // pred_check_branch
      %149 = sbr.rel (%p146) target = $region12
    $region11: #{bottleneck_forward.5} parent=5 // pred_region
      %s150 = ssub.s32 %s11, 1
      // Predicated region
      $region13: #{bottleneck_forward.5} parent=11 // pred_check
        %p151 = pneg %p58
      $region14: #{bottleneck_forward.5} parent=11 // pred_check_branch
        %153 = sbr.rel (%p151) target = $region16
      $region15: #{bottleneck_forward.5} parent=11 // pred_region
        _
      $region16: #{bottleneck_forward.5} parent=11 // pred_fallthru
        _
    $region12: #{bottleneck_forward.5} parent=5 // pred_fallthru
      _
    %p154 = scmp.lt.s32.totalorder %s11, 2
    // Predicated region
    $region17: #{bottleneck_forward.5} parent=5 // pred_check
      %p155 = pneg %p154
    $region18: #{bottleneck_forward.5} parent=5 // pred_check_branch
      %157 = sbr.rel (%p155) target = $region20
    $region19: #{bottleneck_forward.5} parent=5 // pred_region
      // Predicated region
      $region21: #{bottleneck_forward.5} parent=19 // pred_check
        %p158 = pneg %p31
      $region22: #{bottleneck_forward.5} parent=19 // pred_check_branch
        %160 = sbr.rel (%p158) target = $region24
      $region23: #{bottleneck_forward.5} parent=19 // pred_region
        %s161 = smul.u32 32, %s11
        %p162 = scmp.lt.s32.totalorder %s161, 63
        %s163 = scalar_select %p162, %s161, 63
        %s164 = smul.addr %s163, 4
        %s165 = scalar_lea.vmem %s0, %s164
        %s166 = smul.u32 32, %s11
      $region24: #{bottleneck_forward.5} parent=19 // pred_fallthru
        _
    $region20: #{bottleneck_forward.5} parent=5 // pred_fallthru
      _
    %p167 = scmp.le.s32.totalorder 1, %s11
    %p168 = scmp.lt.s32.totalorder %s11, 3
    %p169 = pnand %p167, %p168
    %p170 = pneg %p169
    // Predicated region
    $region25: #{bottleneck_forward.5} parent=5 // pred_check
      _
    $region26: #{bottleneck_forward.5} parent=5 // pred_check_branch
      %172 = sbr.rel (%p169) target = $region28
    $region27: #{bottleneck_forward.5} parent=5 // pred_region
      %s173 = ssub.s32 %s11, 1
      %s174 = smul.u32 32, %s16
      %p175 = scmp.lt.s32.totalorder %s174, 63
      %s176 = scalar_select %p175, %s174, 63
      %s177 = smul.addr %s176, 4
      %s178 = scalar_lea.vmem %s0, %s177
      %p179 = pneg %p37
      %p180 = pneg %p34
      %p181 = pneg %p58
      %p182 = pneg %p55
      %p183 = pneg %p84
      %p184 = pneg %p81
      %s185 = smul.u32 32, %s16
      %p186 = scmp.lt.s32.totalorder %s185, 63
      %s187 = scalar_select %p186, %s185, 63
      %s188 = smul.addr %s187, 4
      %s189 = scalar_lea.vmem %s2, %s188
      %p190 = pneg %p110
      %p191 = pneg %p107
      %p192 = scmp.lt.s32.totalorder %s16, 1
      %s193 = scalar_select %p192, %s16, 1
      %s194 = scalar_lea.vmem %s3, %s193
      %p195 = pneg %p136
      %p196 = pneg %p133
      %p197 = scmp.lt.s32.totalorder %s16, 1
      %s198 = scalar_select %p197, %s16, 1
      %s199 = scalar_lea.vmem %s4, %s198
      %s200 = smul.u32 32, %s16
      %p201 = scmp.lt.s32.totalorder %s200, 63
      %s202 = scalar_select %p201, %s200, 63
      %s203 = smul.addr %s202, 4
      %s204 = scalar_lea.vmem %s0, %s203
      %s205 = smul.u32 32, %s16
      %s206 = smul.u32 32, %s16
      %p207 = scmp.lt.s32.totalorder %s206, 63
      %s208 = scalar_select %p207, %s206, 63
      %s209 = smul.addr %s208, 4
      %s210 = scalar_lea.vmem %s2, %s209
      %s211 = smul.u32 32, %s16
      %p212 = scmp.lt.s32.totalorder %s16, 1
      %s213 = scalar_select %p212, %s16, 1
      %s214 = scalar_lea.vmem %s3, %s213
      %p215 = scmp.lt.s32.totalorder %s16, 1
      %s216 = scalar_select %p215, %s16, 1
      %s217 = scalar_lea.vmem %s4, %s216
      %v219 = vld [vmem:[%s204] sm:$0xf]
      %v220 = vld [vmem:[%s204 + $0x4] sm:$0xf]
      %v221 = vld [vmem:[%s204 + $0x8] sm:$0xf]
      %v222 = vld [vmem:[%s204 + $0xc] sm:$0xf]
      %v223 = vld [vmem:[%s204 + $0x10] sm:$0xf]
      %v224 = vld [vmem:[%s204 + $0x14] sm:$0xf]
      %v225 = vld [vmem:[%s204 + $0x18] sm:$0xf]
      %v226 = vld [vmem:[%s204 + $0x1c] sm:$0xf]
      %v227 = vld [vmem:[%s204 + $0x20] sm:$0xf]
      %v228 = vld [vmem:[%s204 + $0x24] sm:$0xf]
      %v229 = vld [vmem:[%s204 + $0x28] sm:$0xf]
      %v230 = vld [vmem:[%s204 + $0x2c] sm:$0xf]
      %v231 = vld [vmem:[%s204 + $0x30] sm:$0xf]
      %v232 = vld [vmem:[%s204 + $0x34] sm:$0xf]
      %v233 = vld [vmem:[%s204 + $0x38] sm:$0xf]
      %v234 = vld [vmem:[%s204 + $0x3c] sm:$0xf]
      %v235 = vld [vmem:[%s204 + $0x40] sm:$0xf]
      %v236 = vld [vmem:[%s204 + $0x44] sm:$0xf]
      %v237 = vld [vmem:[%s204 + $0x48] sm:$0xf]
      %v238 = vld [vmem:[%s204 + $0x4c] sm:$0xf]
      %v239 = vld [vmem:[%s204 + $0x50] sm:$0xf]
      %v240 = vld [vmem:[%s204 + $0x54] sm:$0xf]
      %v241 = vld [vmem:[%s204 + $0x58] sm:$0xf]
      %v242 = vld [vmem:[%s204 + $0x5c] sm:$0xf]
      %v243 = vld [vmem:[%s204 + $0x60] sm:$0xf]
      %v244 = vld [vmem:[%s204 + $0x64] sm:$0xf]
      %v245 = vld [vmem:[%s204 + $0x68] sm:$0xf]
      %v246 = vld [vmem:[%s204 + $0x6c] sm:$0xf]
      %v247 = vld [vmem:[%s204 + $0x70] sm:$0xf]
      %v248 = vld [vmem:[%s204 + $0x74] sm:$0xf]
      %v249 = vld [vmem:[%s204 + $0x78] sm:$0xf]
      %v250 = vld [vmem:[%s204 + $0x7c] sm:$0xf]
      %v251 = vld [vmem:[%s1] sm:$0xf]
      %v252 = vld [vmem:[%s1 + $0x4] sm:$0xf]
      %v253 = vld [vmem:[%s1 + $0x8] sm:$0xf]
      %v254 = vld [vmem:[%s1 + $0xc] sm:$0xf]
      %v255 = vld [vmem:[%s1 + $0x10] sm:$0xf]
      %v256 = vld [vmem:[%s1 + $0x14] sm:$0xf]
      %v257 = vld [vmem:[%s1 + $0x18] sm:$0xf]
      %v258 = vld [vmem:[%s1 + $0x1c] sm:$0xf]
      %v259 = vld [vmem:[%s1 + $0x20] sm:$0xf]
      %v260 = vld [vmem:[%s1 + $0x24] sm:$0xf]
      %v261 = vld [vmem:[%s1 + $0x28] sm:$0xf]
      %v262 = vld [vmem:[%s1 + $0x2c] sm:$0xf]
      %v263 = vld [vmem:[%s1 + $0x30] sm:$0xf]
      %v264 = vld [vmem:[%s1 + $0x34] sm:$0xf]
      %v265 = vld [vmem:[%s1 + $0x38] sm:$0xf]
      %v266 = vld [vmem:[%s1 + $0x3c] sm:$0xf]
      %v299 = vunpack.c.l.b16 %v219
      %v300 = vunpack.c.l.b16 %v220
      %v301 = vunpack.c.l.b16 %v221
      %v302 = vunpack.c.l.b16 %v222
      %v303 = vunpack.c.l.b16 %v223
      %v304 = vunpack.c.l.b16 %v224
      %v305 = vunpack.c.l.b16 %v225
      %v306 = vunpack.c.l.b16 %v226
      %v307 = vunpack.c.l.b16 %v227
      %v308 = vunpack.c.l.b16 %v228
      %v309 = vunpack.c.l.b16 %v229
      %v310 = vunpack.c.l.b16 %v230
      %v311 = vunpack.c.l.b16 %v231
      %v312 = vunpack.c.l.b16 %v232
      %v313 = vunpack.c.l.b16 %v233
      %v314 = vunpack.c.l.b16 %v234
      %v315 = vunpack.c.l.b16 %v235
      %v316 = vunpack.c.l.b16 %v236
      %v317 = vunpack.c.l.b16 %v237
      %v318 = vunpack.c.l.b16 %v238
      %v319 = vunpack.c.l.b16 %v239
      %v320 = vunpack.c.l.b16 %v240
      %v321 = vunpack.c.l.b16 %v241
      %v322 = vunpack.c.l.b16 %v242
      %v323 = vunpack.c.l.b16 %v243
      %v324 = vunpack.c.l.b16 %v244
      %v325 = vunpack.c.l.b16 %v245
      %v326 = vunpack.c.l.b16 %v246
      %v327 = vunpack.c.l.b16 %v247
      %v328 = vunpack.c.l.b16 %v248
      %v329 = vunpack.c.l.b16 %v249
      %v330 = vunpack.c.l.b16 %v250
      %v331 = vpack.c.b16 %v300, %v299
      %v332 = vpack.c.b16 %v302, %v301
      %v333 = vpack.c.b16 %v304, %v303
      %v334 = vpack.c.b16 %v306, %v305
      %v335 = vpack.c.b16 %v308, %v307
      %v336 = vpack.c.b16 %v310, %v309
      %v337 = vpack.c.b16 %v312, %v311
      %v338 = vpack.c.b16 %v314, %v313
      %v339 = vpack.c.b16 %v316, %v315
      %v340 = vpack.c.b16 %v318, %v317
      %v341 = vpack.c.b16 %v320, %v319
      %v342 = vpack.c.b16 %v322, %v321
      %v343 = vpack.c.b16 %v324, %v323
      %v344 = vpack.c.b16 %v326, %v325
      %v345 = vpack.c.b16 %v328, %v327
      %v346 = vpack.c.b16 %v330, %v329
      %v379 = vunpack.c.l.b16 %v251
      %v380 = vunpack.c.l.b16 %v252
      %v381 = vunpack.c.l.b16 %v253
      %v382 = vunpack.c.l.b16 %v254
      %v383 = vunpack.c.l.b16 %v255
      %v384 = vunpack.c.l.b16 %v256
      %v385 = vunpack.c.l.b16 %v257
      %v386 = vunpack.c.l.b16 %v258
      %v387 = vunpack.c.l.b16 %v259
      %v388 = vunpack.c.l.b16 %v260
      %v389 = vunpack.c.l.b16 %v261
      %v390 = vunpack.c.l.b16 %v262
      %v391 = vunpack.c.l.b16 %v263
      %v392 = vunpack.c.l.b16 %v264
      %v393 = vunpack.c.l.b16 %v265
      %v394 = vunpack.c.l.b16 %v266
      %v395 = vpack.c.b16 %v380, %v379
      %v396 = vpack.c.b16 %v382, %v381
      %v397 = vpack.c.b16 %v384, %v383
      %v398 = vpack.c.b16 %v386, %v385
      %v399 = vpack.c.b16 %v388, %v387
      %v400 = vpack.c.b16 %v390, %v389
      %v401 = vpack.c.b16 %v392, %v391
      %v402 = vpack.c.b16 %v394, %v393
      %411 = vmatprep.subr.bf16.mxu0 0
      %412 = vmatpush1.bf16.msra.mxu0 %v395
      %413 = vmatprep.subr.bf16.mxu0 0
      %414 = vmatpush1.bf16.msra.mxu0 %v396
      %415 = vmatprep.subr.bf16.mxu0 0
      %416 = vmatpush1.bf16.msra.mxu0 %v397
      %417 = vmatprep.subr.bf16.mxu0 0
      %418 = vmatpush1.bf16.msra.mxu0 %v398
      %419 = vmatprep.subr.bf16.mxu0 0
      %420 = vmatpush1.bf16.msra.mxu0 %v399
      %421 = vmatprep.subr.bf16.mxu0 0
      %422 = vmatpush1.bf16.msra.mxu0 %v400
      %423 = vmatprep.subr.bf16.mxu0 0
      %424 = vmatpush1.bf16.msra.mxu0 %v401
      %425 = vmatprep.subr.bf16.mxu0 0
      %426 = vmatpush1.bf16.msra.mxu0 %v402
      %427 = vmatprep.subr.bf16.mxu0 0
      %428 = vmatpush1.bf16.msra.mxu0 0
      %429 = vmatprep.subr.bf16.mxu0 0
      %430 = vmatpush1.bf16.msra.mxu0 0
      %431 = vmatprep.subr.bf16.mxu0 0
      %432 = vmatpush1.bf16.msra.mxu0 0
      %433 = vmatprep.subr.bf16.mxu0 0
      %434 = vmatpush1.bf16.msra.mxu0 0
      %435 = vmatprep.subr.bf16.mxu0 0
      %436 = vmatpush1.bf16.msra.mxu0 0
      %437 = vmatprep.subr.bf16.mxu0 0
      %438 = vmatpush1.bf16.msra.mxu0 0
      %439 = vmatprep.subr.bf16.mxu0 0
      %440 = vmatpush1.bf16.msra.mxu0 0
      %441 = vmatprep.subr.bf16.mxu0 0
      %442 = vmatpush1.bf16.msra.mxu0 0
      %443 = vmatprep.mubr.bf16.mxu0 0
      %444 = vmatmul.mubr.bf16.gmra.mrb[0].mxu0 %v331
      %v445 = vpop.f32.mrb[0].mxu0
      %v446 = vadd.f32 0.0, %v445
      %v447 = vpop.f32.mrb[0].mxu0
      %v448 = vpop.f32.mrb[0].mxu0
      %v449 = vadd.f32 0.0, %v448
      %v450 = vpop.f32.mrb[0].mxu0
      %451 = vmatprep.mubr.bf16.mxu0 0
      %452 = vmatmul.mubr.bf16.gmra.mrb[0].mxu0 %v332
      %v453 = vpop.f32.mrb[0].mxu0
      %v454 = vadd.f32 0.0, %v453
      %v455 = vpop.f32.mrb[0].mxu0
      %v456 = vpop.f32.mrb[0].mxu0
      %v457 = vadd.f32 0.0, %v456
      %v458 = vpop.f32.mrb[0].mxu0
      %459 = vmatprep.mubr.bf16.mxu0 0
      %460 = vmatmul.mubr.bf16.gmra.mrb[0].mxu0 %v333
      %v461 = vpop.f32.mrb[0].mxu0
      %v462 = vadd.f32 0.0, %v461
      %v463 = vpop.f32.mrb[0].mxu0
      %v464 = vpop.f32.mrb[0].mxu0
      %v465 = vadd.f32 0.0, %v464
      %v466 = vpop.f32.mrb[0].mxu0
      %467 = vmatprep.mubr.bf16.mxu0 0
      %468 = vmatmul.mubr.bf16.gmra.mrb[0].mxu0 %v334
      %v469 = vpop.f32.mrb[0].mxu0
      %v470 = vadd.f32 0.0, %v469
      %v471 = vpop.f32.mrb[0].mxu0
      %v472 = vpop.f32.mrb[0].mxu0
      %v473 = vadd.f32 0.0, %v472
      %v474 = vpop.f32.mrb[0].mxu0
      %475 = vmatprep.mubr.bf16.mxu0 0
      %476 = vmatmul.mubr.bf16.gmra.mrb[0].mxu0 %v335
      %v477 = vpop.f32.mrb[0].mxu0
      %v478 = vadd.f32 0.0, %v477
      %v479 = vpop.f32.mrb[0].mxu0
      %v480 = vpop.f32.mrb[0].mxu0
      %v481 = vadd.f32 0.0, %v480
      %v482 = vpop.f32.mrb[0].mxu0
      %483 = vmatprep.mubr.bf16.mxu0 0
      %484 = vmatmul.mubr.bf16.gmra.mrb[0].mxu0 %v336
      %v485 = vpop.f32.mrb[0].mxu0
      %v486 = vadd.f32 0.0, %v485
      %v487 = vpop.f32.mrb[0].mxu0
      %v488 = vpop.f32.mrb[0].mxu0
      %v489 = vadd.f32 0.0, %v488
      %v490 = vpop.f32.mrb[0].mxu0
      %491 = vmatprep.mubr.bf16.mxu0 0
      %492 = vmatmul.mubr.bf16.gmra.mrb[0].mxu0 %v337
      %v493 = vpop.f32.mrb[0].mxu0
      %v494 = vadd.f32 0.0, %v493
      %v495 = vpop.f32.mrb[0].mxu0
      %v496 = vpop.f32.mrb[0].mxu0
      %v497 = vadd.f32 0.0, %v496
      %v498 = vpop.f32.mrb[0].mxu0
      %499 = vmatprep.mubr.bf16.mxu0 0
      %500 = vmatmul.mubr.bf16.gmra.mrb[0].mxu0 %v338
      %v501 = vpop.f32.mrb[0].mxu0
      %v502 = vadd.f32 0.0, %v501
      %v503 = vpop.f32.mrb[0].mxu0
      %v504 = vpop.f32.mrb[0].mxu0
      %v505 = vadd.f32 0.0, %v504
      %v506 = vpop.f32.mrb[0].mxu0
      %507 = vmatprep.mubr.bf16.mxu0 0
      %508 = vmatmul.mubr.bf16.gmra.mrb[0].mxu0 %v339
      %v509 = vpop.f32.mrb[0].mxu0
      %v510 = vadd.f32 0.0, %v509
      %v511 = vpop.f32.mrb[0].mxu0
      %v512 = vpop.f32.mrb[0].mxu0
      %v513 = vadd.f32 0.0, %v512
      %v514 = vpop.f32.mrb[0].mxu0
      %515 = vmatprep.mubr.bf16.mxu0 0
      %516 = vmatmul.mubr.bf16.gmra.mrb[0].mxu0 %v340
      %v517 = vpop.f32.mrb[0].mxu0
      %v518 = vadd.f32 0.0, %v517
      %v519 = vpop.f32.mrb[0].mxu0
      %v520 = vpop.f32.mrb[0].mxu0
      %v521 = vadd.f32 0.0, %v520
      %v522 = vpop.f32.mrb[0].mxu0
      %523 = vmatprep.mubr.bf16.mxu0 0
      %524 = vmatmul.mubr.bf16.gmra.mrb[0].mxu0 %v341
      %v525 = vpop.f32.mrb[0].mxu0
      %v526 = vadd.f32 0.0, %v525
      %v527 = vpop.f32.mrb[0].mxu0
      %v528 = vpop.f32.mrb[0].mxu0
      %v529 = vadd.f32 0.0, %v528
      %v530 = vpop.f32.mrb[0].mxu0
      %531 = vmatprep.mubr.bf16.mxu0 0
      %532 = vmatmul.mubr.bf16.gmra.mrb[0].mxu0 %v342
      %v533 = vpop.f32.mrb[0].mxu0
      %v534 = vadd.f32 0.0, %v533
      %v535 = vpop.f32.mrb[0].mxu0
      %v536 = vpop.f32.mrb[0].mxu0
      %v537 = vadd.f32 0.0, %v536
      %v538 = vpop.f32.mrb[0].mxu0
      %539 = vmatprep.mubr.bf16.mxu0 0
      %540 = vmatmul.mubr.bf16.gmra.mrb[0].mxu0 %v343
      %v541 = vpop.f32.mrb[0].mxu0
      %v542 = vadd.f32 0.0, %v541
      %v543 = vpop.f32.mrb[0].mxu0
      %v544 = vpop.f32.mrb[0].mxu0
      %v545 = vadd.f32 0.0, %v544
      %v546 = vpop.f32.mrb[0].mxu0
      %547 = vmatprep.mubr.bf16.mxu0 0
      %548 = vmatmul.mubr.bf16.gmra.mrb[0].mxu0 %v344
      %v549 = vpop.f32.mrb[0].mxu0
      %v550 = vadd.f32 0.0, %v549
      %v551 = vpop.f32.mrb[0].mxu0
      %v552 = vpop.f32.mrb[0].mxu0
      %v553 = vadd.f32 0.0, %v552
      %v554 = vpop.f32.mrb[0].mxu0
      %555 = vmatprep.mubr.bf16.mxu0 0
      %556 = vmatmul.mubr.bf16.gmra.mrb[0].mxu0 %v345
      %v557 = vpop.f32.mrb[0].mxu0
      %v558 = vadd.f32 0.0, %v557
      %v559 = vpop.f32.mrb[0].mxu0
      %v560 = vpop.f32.mrb[0].mxu0
      %v561 = vadd.f32 0.0, %v560
      %v562 = vpop.f32.mrb[0].mxu0
      %563 = vmatprep.mubr.bf16.mxu0 0
      %564 = vmatmul.mubr.bf16.gmra.mrb[0].mxu0 %v346
      %v565 = vpop.f32.mrb[0].mxu0
      %v566 = vadd.f32 0.0, %v565
      %v567 = vpop.f32.mrb[0].mxu0
      %v568 = vpop.f32.mrb[0].mxu0
      %v569 = vadd.f32 0.0, %v568
      %v570 = vpop.f32.mrb[0].mxu0
      %571 = vdwg.mxu0
      %v572 = vpack.c.bf16 %v449, %v446
      %v573 = vpack.c.bf16 %v457, %v454
      %v574 = vpack.c.bf16 %v465, %v462
      %v575 = vpack.c.bf16 %v473, %v470
      %v576 = vpack.c.bf16 %v481, %v478
      %v577 = vpack.c.bf16 %v489, %v486
      %v578 = vpack.c.bf16 %v497, %v494
      %v579 = vpack.c.bf16 %v505, %v502
      %v580 = vpack.c.bf16 %v513, %v510
      %v581 = vpack.c.bf16 %v521, %v518
      %v582 = vpack.c.bf16 %v529, %v526
      %v583 = vpack.c.bf16 %v537, %v534
      %v584 = vpack.c.bf16 %v545, %v542
      %v585 = vpack.c.bf16 %v553, %v550
      %v586 = vpack.c.bf16 %v561, %v558
      %v587 = vpack.c.bf16 %v569, %v566
      %v604 = vunpack.c.l.b16 %v572
      %v605 = vunpack.c.h.b16 %v572
      %v606 = vunpack.c.l.b16 %v573
      %v607 = vunpack.c.h.b16 %v573
      %v608 = vunpack.c.l.b16 %v574
      %v609 = vunpack.c.h.b16 %v574
      %v610 = vunpack.c.l.b16 %v575
      %v611 = vunpack.c.h.b16 %v575
      %v612 = vunpack.c.l.b16 %v576
      %v613 = vunpack.c.h.b16 %v576
      %v614 = vunpack.c.l.b16 %v577
      %v615 = vunpack.c.h.b16 %v577
      %v616 = vunpack.c.l.b16 %v578
      %v617 = vunpack.c.h.b16 %v578
      %v618 = vunpack.c.l.b16 %v579
      %v619 = vunpack.c.h.b16 %v579
      %v620 = vunpack.c.l.b16 %v580
      %v621 = vunpack.c.h.b16 %v580
      %v622 = vunpack.c.l.b16 %v581
      %v623 = vunpack.c.h.b16 %v581
      %v624 = vunpack.c.l.b16 %v582
      %v625 = vunpack.c.h.b16 %v582
      %v626 = vunpack.c.l.b16 %v583
      %v627 = vunpack.c.h.b16 %v583
      %v628 = vunpack.c.l.b16 %v584
      %v629 = vunpack.c.h.b16 %v584
      %v630 = vunpack.c.l.b16 %v585
      %v631 = vunpack.c.h.b16 %v585
      %v632 = vunpack.c.l.b16 %v586
      %v633 = vunpack.c.h.b16 %v586
      %v634 = vunpack.c.l.b16 %v587
      %v635 = vunpack.c.h.b16 %v587
      %v636 = vpack.c.b16 %v604, %v604
      %v637 = vpack.c.b16 %v605, %v605
      %v638 = vpack.c.b16 %v606, %v606
      %v639 = vpack.c.b16 %v607, %v607
      %v640 = vpack.c.b16 %v608, %v608
      %v641 = vpack.c.b16 %v609, %v609
      %v642 = vpack.c.b16 %v610, %v610
      %v643 = vpack.c.b16 %v611, %v611
      %v644 = vpack.c.b16 %v612, %v612
      %v645 = vpack.c.b16 %v613, %v613
      %v646 = vpack.c.b16 %v614, %v614
      %v647 = vpack.c.b16 %v615, %v615
      %v648 = vpack.c.b16 %v616, %v616
      %v649 = vpack.c.b16 %v617, %v617
      %v650 = vpack.c.b16 %v618, %v618
      %v651 = vpack.c.b16 %v619, %v619
      %v652 = vpack.c.b16 %v620, %v620
      %v653 = vpack.c.b16 %v621, %v621
      %v654 = vpack.c.b16 %v622, %v622
      %v655 = vpack.c.b16 %v623, %v623
      %v656 = vpack.c.b16 %v624, %v624
      %v657 = vpack.c.b16 %v625, %v625
      %v658 = vpack.c.b16 %v626, %v626
      %v659 = vpack.c.b16 %v627, %v627
      %v660 = vpack.c.b16 %v628, %v628
      %v661 = vpack.c.b16 %v629, %v629
      %v662 = vpack.c.b16 %v630, %v630
      %v663 = vpack.c.b16 %v631, %v631
      %v664 = vpack.c.b16 %v632, %v632
      %v665 = vpack.c.b16 %v633, %v633
      %v666 = vpack.c.b16 %v634, %v634
      %v667 = vpack.c.b16 %v635, %v635
      %700 = vst [vmem:[%s210] sm:$0xf] %v636
      %701 = vst [vmem:[%s210 + $0x4] sm:$0xf] %v637
      %702 = vst [vmem:[%s210 + $0x8] sm:$0xf] %v638
      %703 = vst [vmem:[%s210 + $0xc] sm:$0xf] %v639
      %704 = vst [vmem:[%s210 + $0x10] sm:$0xf] %v640
      %705 = vst [vmem:[%s210 + $0x14] sm:$0xf] %v641
      %706 = vst [vmem:[%s210 + $0x18] sm:$0xf] %v642
      %707 = vst [vmem:[%s210 + $0x1c] sm:$0xf] %v643
      %708 = vst [vmem:[%s210 + $0x20] sm:$0xf] %v644
      %709 = vst [vmem:[%s210 + $0x24] sm:$0xf] %v645
      %710 = vst [vmem:[%s210 + $0x28] sm:$0xf] %v646
      %711 = vst [vmem:[%s210 + $0x2c] sm:$0xf] %v647
      %712 = vst [vmem:[%s210 + $0x30] sm:$0xf] %v648
      %713 = vst [vmem:[%s210 + $0x34] sm:$0xf] %v649
      %714 = vst [vmem:[%s210 + $0x38] sm:$0xf] %v650
      %715 = vst [vmem:[%s210 + $0x3c] sm:$0xf] %v651
      %716 = vst [vmem:[%s210 + $0x40] sm:$0xf] %v652
      %717 = vst [vmem:[%s210 + $0x44] sm:$0xf] %v653
      %718 = vst [vmem:[%s210 + $0x48] sm:$0xf] %v654
      %719 = vst [vmem:[%s210 + $0x4c] sm:$0xf] %v655
      %720 = vst [vmem:[%s210 + $0x50] sm:$0xf] %v656
      %721 = vst [vmem:[%s210 + $0x54] sm:$0xf] %v657
      %722 = vst [vmem:[%s210 + $0x58] sm:$0xf] %v658
      %723 = vst [vmem:[%s210 + $0x5c] sm:$0xf] %v659
      %724 = vst [vmem:[%s210 + $0x60] sm:$0xf] %v660
      %725 = vst [vmem:[%s210 + $0x64] sm:$0xf] %v661
      %726 = vst [vmem:[%s210 + $0x68] sm:$0xf] %v662
      %727 = vst [vmem:[%s210 + $0x6c] sm:$0xf] %v663
      %728 = vst [vmem:[%s210 + $0x70] sm:$0xf] %v664
      %729 = vst [vmem:[%s210 + $0x74] sm:$0xf] %v665
      %730 = vst [vmem:[%s210 + $0x78] sm:$0xf] %v666
      %731 = vst [vmem:[%s210 + $0x7c] sm:$0xf] %v667
      %v732 = vadd.f32 %v446, %v449
      %v733 = vadd.f32 %v732, %v454
      %v734 = vadd.f32 %v733, %v457
      %v735 = vadd.f32 %v734, %v462
      %v736 = vadd.f32 %v735, %v465
      %v737 = vadd.f32 %v736, %v470
      %v738 = vadd.f32 %v737, %v473
      %v739 = vadd.f32 %v738, %v478
      %v740 = vadd.f32 %v739, %v481
      %v741 = vadd.f32 %v740, %v486
      %v742 = vadd.f32 %v741, %v489
      %v743 = vadd.f32 %v742, %v494
      %v744 = vadd.f32 %v743, %v497
      %v745 = vadd.f32 %v744, %v502
      %v746 = vadd.f32 %v745, %v505
      %v747 = vadd.f32 %v746, %v510
      %v748 = vadd.f32 %v747, %v513
      %v749 = vadd.f32 %v748, %v518
      %v750 = vadd.f32 %v749, %v521
      %v751 = vadd.f32 %v750, %v526
      %v752 = vadd.f32 %v751, %v529
      %v753 = vadd.f32 %v752, %v534
      %v754 = vadd.f32 %v753, %v537
      %v755 = vadd.f32 %v754, %v542
      %v756 = vadd.f32 %v755, %v545
      %v757 = vadd.f32 %v756, %v550
      %v758 = vadd.f32 %v757, %v553
      %v759 = vadd.f32 %v758, %v558
      %v760 = vadd.f32 %v759, %v561
      %v761 = vadd.f32 %v760, %v566
      %v762 = vadd.f32 %v761, %v569
      %v763 = vrot.slane %v762, 4
      %v764 = vadd.f32 %v762, %v763
      %v765 = vrot.slane %v764, 2
      %v766 = vadd.f32 %v764, %v765
      %v767 = vrot.slane %v766, 1
      %v768 = vadd.f32 %v766, %v767
      %769 = vst [vmem:[%s214] sm:$0x1] %v768
      %v770 = vmul.f32 %v446, %v446
      %v771 = vmul.f32 %v449, %v449
      %v772 = vmul.f32 %v454, %v454
      %v773 = vmul.f32 %v457, %v457
      %v774 = vmul.f32 %v462, %v462
      %v775 = vmul.f32 %v465, %v465
      %v776 = vmul.f32 %v470, %v470
      %v777 = vmul.f32 %v473, %v473
      %v778 = vmul.f32 %v478, %v478
      %v779 = vmul.f32 %v481, %v481
      %v780 = vmul.f32 %v486, %v486
      %v781 = vmul.f32 %v489, %v489
      %v782 = vmul.f32 %v494, %v494
      %v783 = vmul.f32 %v497, %v497
      %v784 = vmul.f32 %v502, %v502
      %v785 = vmul.f32 %v505, %v505
      %v786 = vmul.f32 %v510, %v510
      %v787 = vmul.f32 %v513, %v513
      %v788 = vmul.f32 %v518, %v518
      %v789 = vmul.f32 %v521, %v521
      %v790 = vmul.f32 %v526, %v526
      %v791 = vmul.f32 %v529, %v529
      %v792 = vmul.f32 %v534, %v534
      %v793 = vmul.f32 %v537, %v537
      %v794 = vmul.f32 %v542, %v542
      %v795 = vmul.f32 %v545, %v545
      %v796 = vmul.f32 %v550, %v550
      %v797 = vmul.f32 %v553, %v553
      %v798 = vmul.f32 %v558, %v558
      %v799 = vmul.f32 %v561, %v561
      %v800 = vmul.f32 %v566, %v566
      %v801 = vmul.f32 %v569, %v569
      %v802 = vadd.f32 %v770, %v771
      %v803 = vadd.f32 %v802, %v772
      %v804 = vadd.f32 %v803, %v773
      %v805 = vadd.f32 %v804, %v774
      %v806 = vadd.f32 %v805, %v775
      %v807 = vadd.f32 %v806, %v776
      %v808 = vadd.f32 %v807, %v777
      %v809 = vadd.f32 %v808, %v778
      %v810 = vadd.f32 %v809, %v779
      %v811 = vadd.f32 %v810, %v780
      %v812 = vadd.f32 %v811, %v781
      %v813 = vadd.f32 %v812, %v782
      %v814 = vadd.f32 %v813, %v783
      %v815 = vadd.f32 %v814, %v784
      %v816 = vadd.f32 %v815, %v785
      %v817 = vadd.f32 %v816, %v786
      %v818 = vadd.f32 %v817, %v787
      %v819 = vadd.f32 %v818, %v788
      %v820 = vadd.f32 %v819, %v789
      %v821 = vadd.f32 %v820, %v790
      %v822 = vadd.f32 %v821, %v791
      %v823 = vadd.f32 %v822, %v792
      %v824 = vadd.f32 %v823, %v793
      %v825 = vadd.f32 %v824, %v794
      %v826 = vadd.f32 %v825, %v795
      %v827 = vadd.f32 %v826, %v796
      %v828 = vadd.f32 %v827, %v797
      %v829 = vadd.f32 %v828, %v798
      %v830 = vadd.f32 %v829, %v799
      %v831 = vadd.f32 %v830, %v800
      %v832 = vadd.f32 %v831, %v801
      %v833 = vrot.slane %v832, 4
      %v834 = vadd.f32 %v832, %v833
      %v835 = vrot.slane %v834, 2
      %v836 = vadd.f32 %v834, %v835
      %v837 = vrot.slane %v836, 1
      %v838 = vadd.f32 %v836, %v837
      %839 = vst [vmem:[%s217] sm:$0x1] %v838
      %s840 = smul.u32 32, %s16
      %p841 = scmp.lt.s32.totalorder %s840, 63
      %s842 = scalar_select %p841, %s840, 63
      %s843 = smul.addr %s842, 4
      %s844 = scalar_lea.vmem %s2, %s843
      %p845 = scmp.lt.s32.totalorder %s16, 1
      %s846 = scalar_select %p845, %s16, 1
      %s847 = scalar_lea.vmem %s3, %s846
      %p848 = scmp.lt.s32.totalorder %s16, 1
      %s849 = scalar_select %p848, %s16, 1
      %s850 = scalar_lea.vmem %s4, %s849
      // Predicated region
      $region29: #{bottleneck_forward.5} parent=27 // pred_check
        %p851 = pneg %p81
      $region30: #{bottleneck_forward.5} parent=27 // pred_check_branch
        %853 = sbr.rel (%p851) target = $region32
      $region31: #{bottleneck_forward.5} parent=27 // pred_region
        %s854 = smul.u32 32, %s16
      $region32: #{bottleneck_forward.5} parent=27 // pred_fallthru
        _
      // Predicated region
      $region33: #{bottleneck_forward.5} parent=27 // pred_check
        %p855 = pneg %p107
      $region34: #{bottleneck_forward.5} parent=27 // pred_check_branch
        %857 = sbr.rel (%p855) target = $region36
      $region35: #{bottleneck_forward.5} parent=27 // pred_region
        _
      $region36: #{bottleneck_forward.5} parent=27 // pred_fallthru
        _
      // Predicated region
      $region37: #{bottleneck_forward.5} parent=27 // pred_check
        %p858 = pneg %p133
      $region38: #{bottleneck_forward.5} parent=27 // pred_check_branch
        %860 = sbr.rel (%p858) target = $region40
      $region39: #{bottleneck_forward.5} parent=27 // pred_region
        _
      $region40: #{bottleneck_forward.5} parent=27 // pred_fallthru
        _
    $region28: #{bottleneck_forward.5} parent=5 // pred_fallthru
      _
    %p861 = scmp.le.s32.totalorder 2, %s11
    // Predicated region
    $region41: #{bottleneck_forward.5} parent=5 // pred_check
      %p862 = pneg %p861
    $region42: #{bottleneck_forward.5} parent=5 // pred_check_branch
      %864 = sbr.rel (%p862) target = $region44
    $region43: #{bottleneck_forward.5} parent=5 // pred_region
      %s865 = ssub.s32 %s11, 2
      // Predicated region
      $region45: #{bottleneck_forward.5} parent=43 // pred_check
        %p866 = pneg %p87
      $region46: #{bottleneck_forward.5} parent=43 // pred_check_branch
        %868 = sbr.rel (%p866) target = $region48
      $region47: #{bottleneck_forward.5} parent=43 // pred_region
        %s869 = smul.u32 32, %s17
        %p870 = scmp.lt.s32.totalorder %s869, 63
        %s871 = scalar_select %p870, %s869, 63
        %s872 = smul.addr %s871, 4
        %s873 = scalar_lea.vmem %s2, %s872
      $region48: #{bottleneck_forward.5} parent=43 // pred_fallthru
        _
      // Predicated region
      $region49: #{bottleneck_forward.5} parent=43 // pred_check
        %p874 = pneg %p113
      $region50: #{bottleneck_forward.5} parent=43 // pred_check_branch
        %876 = sbr.rel (%p874) target = $region52
      $region51: #{bottleneck_forward.5} parent=43 // pred_region
        %p877 = scmp.lt.s32.totalorder %s17, 1
        %s878 = scalar_select %p877, %s17, 1
        %s879 = scalar_lea.vmem %s3, %s878
      $region52: #{bottleneck_forward.5} parent=43 // pred_fallthru
        _
      // Predicated region
      $region53: #{bottleneck_forward.5} parent=43 // pred_check
        %p880 = pneg %p139
      $region54: #{bottleneck_forward.5} parent=43 // pred_check_branch
        %882 = sbr.rel (%p880) target = $region56
      $region55: #{bottleneck_forward.5} parent=43 // pred_region
        %p883 = scmp.lt.s32.totalorder %s17, 1
        %s884 = scalar_select %p883, %s17, 1
        %s885 = scalar_lea.vmem %s4, %s884
      $region56: #{bottleneck_forward.5} parent=43 // pred_fallthru
        _
    $region44: #{bottleneck_forward.5} parent=5 // pred_fallthru
      _
  $region6: #{bottleneck_forward.5} parent=0 // loop_footer
    %s15 = sadd.s32 1, %s11
  $region7: #{bottleneck_forward.5} parent=0 // loop_footer_branch
    %10 = sbr.rel target = $region3
  $region8: #{bottleneck_forward.5} parent=0 // loop_exit
    _

// kernel: bottleneck_forward.7
$region0: #{bottleneck_forward.7}
  #allocation0 [shape = 'u32[]', space=smem, size = 0x4, offset = 0x4, fixed_abs, tag = 'smem constant byte address 0x4 - core index']
  #allocation1 [shape = 'u32[144,128]{1,0:T(1,128)}', space=vmem, size = 0x12000, scoped, tag = 'internal scratch']
  %s0 = inlined_call_operand.vmem [shape: bf16[2,4,9,9,128], index: 0, kind: input, shape index: {}]
  %s1 = inlined_call_operand.vmem [shape: bf16[9,128,128], index: 1, kind: input, shape index: {}]
  %s2 = inlined_call_operand.vmem [shape: bf16[2,8,8,128], index: 2, kind: output, shape index: {0}]
  %s3 = inlined_call_operand.vmem [shape: f32[2,1,128], index: 3, kind: output, shape index: {1}]
  %s4 = inlined_call_operand.vmem [shape: f32[2,1,128], index: 4, kind: output, shape index: {2}]
  %5 = xla_tuple %s2, %s3, %s4
  %s6 = sld [smem:[#allocation0]]
  $region57: #{bottleneck_forward.7} parent=0
    _
  %s8 = ssub.s32 1, %s6
  %s9 = scalar_select 0, %s8, %s6
  loop: start=0, step=1, limit=4
  $region2: #{bottleneck_forward.7} parent=0 // loop_pre_header
    _
  $region3: #{bottleneck_forward.7} parent=0 // loop_header
    %s11 = sphi 0, %s15
    %p12 = scmp.ge.s32.totalorder %s11, 4
    %s21 = sphi 0, %s23
    %s24 = sphi 0, %s21
    %s25 = sphi 0, %s24
    %s41 = sphi 0, %s25
    %s45 = sphi 0, %s45
    %s47 = sphi 0, %s45
    %s48 = sphi 0, %s47
    %s62 = sphi 0, %s48
    %s68 = sphi 0, %s70
    %s71 = sphi 0, %s68
    %s72 = sphi 0, %s71
    %s88 = sphi 0, %s72
    %s94 = sphi 0, %s96
    %s97 = sphi 0, %s94
    %s98 = sphi 0, %s97
    %s114 = sphi 0, %s98
    %s120 = sphi 0, %s122
    %s123 = sphi 0, %s120
    %s124 = sphi 0, %s123
    %s140 = sphi 0, %s124
  $region4: #{bottleneck_forward.7} parent=0 // loop_header_branch
    %14 = sbr.rel (%p12) target = $region8
  $region5: #{bottleneck_forward.7} parent=0 // loop_body
    %s16 = ssub.s32 %s11, 1
    %s17 = ssub.s32 %s11, 2
    %s18 = sadd.s32 %s11, 1
    %s19 = ssub.s32 %s11, %s18
    %p20 = scmp.eq.s32.totalorder %s19, 0
    %s22 = sadd.s32 %s21, 1
    %s23 = scalar_select %p20, %s21, %s22
    %p26 = pneg %p20
    %p27 = scmp.eq.s32.totalorder %s11, 1
    %p28 = por %p26, %p27
    %p29 = scmp.ne.s32.totalorder %s21, %s24
    %p30 = scmp.eq.s32.totalorder %s11, 0
    %p31 = por %p29, %p30
    %p32 = scmp.ne.s32.totalorder %s21, %s24
    %p33 = scmp.eq.s32.totalorder %s16, 1
    %p34 = por %p32, %p33
    %p35 = scmp.ne.s32.totalorder %s24, %s25
    %p36 = scmp.eq.s32.totalorder %s16, 0
    %p37 = por %p35, %p36
    %p38 = scmp.ne.s32.totalorder %s24, %s25
    %p39 = scmp.eq.s32.totalorder %s17, 1
    %p40 = por %p38, %p39
    %p42 = scmp.ne.s32.totalorder %s25, %s41
    %p43 = scmp.eq.s32.totalorder %s17, 0
    %p44 = por %p42, %p43
    %s46 = sadd.s32 %s45, 1
    %p49 = scmp.eq.s32.totalorder %s11, 1
    %p50 = scmp.ne.s32.totalorder %s45, %s47
    %p51 = scmp.eq.s32.totalorder %s11, 0
    %p52 = por %p50, %p51
    %p53 = scmp.ne.s32.totalorder %s45, %s47
    %p54 = scmp.eq.s32.totalorder %s16, 1
    %p55 = por %p53, %p54
    %p56 = scmp.ne.s32.totalorder %s47, %s48
    %p57 = scmp.eq.s32.totalorder %s16, 0
    %p58 = por %p56, %p57
    %p59 = scmp.ne.s32.totalorder %s47, %s48
    %p60 = scmp.eq.s32.totalorder %s17, 1
    %p61 = por %p59, %p60
    %p63 = scmp.ne.s32.totalorder %s48, %s62
    %p64 = scmp.eq.s32.totalorder %s17, 0
    %p65 = por %p63, %p64
    %s66 = ssub.s32 %s11, %s18
    %p67 = scmp.eq.s32.totalorder %s66, 0
    %s69 = sadd.s32 %s68, 1
    %s70 = scalar_select %p67, %s68, %s69
    %p73 = pneg %p67
    %p74 = scmp.eq.s32.totalorder %s11, 1
    %p75 = por %p73, %p74
    %p76 = scmp.ne.s32.totalorder %s68, %s71
    %p77 = scmp.eq.s32.totalorder %s11, 0
    %p78 = por %p76, %p77
    %p79 = scmp.ne.s32.totalorder %s68, %s71
    %p80 = scmp.eq.s32.totalorder %s16, 1
    %p81 = por %p79, %p80
    %p82 = scmp.ne.s32.totalorder %s71, %s72
    %p83 = scmp.eq.s32.totalorder %s16, 0
    %p84 = por %p82, %p83
    %p85 = scmp.ne.s32.totalorder %s71, %s72
    %p86 = scmp.eq.s32.totalorder %s17, 1
    %p87 = por %p85, %p86
    %p89 = scmp.ne.s32.totalorder %s72, %s88
    %p90 = scmp.eq.s32.totalorder %s17, 0
    %p91 = por %p89, %p90
    %s92 = ssub.s32 %s11, %s18
    %p93 = scmp.eq.s32.totalorder %s92, 0
    %s95 = sadd.s32 %s94, 1
    %s96 = scalar_select %p93, %s94, %s95
    %p99 = pneg %p93
    %p100 = scmp.eq.s32.totalorder %s11, 1
    %p101 = por %p99, %p100
    %p102 = scmp.ne.s32.totalorder %s94, %s97
    %p103 = scmp.eq.s32.totalorder %s11, 0
    %p104 = por %p102, %p103
    %p105 = scmp.ne.s32.totalorder %s94, %s97
    %p106 = scmp.eq.s32.totalorder %s16, 1
    %p107 = por %p105, %p106
    %p108 = scmp.ne.s32.totalorder %s97, %s98
    %p109 = scmp.eq.s32.totalorder %s16, 0
    %p110 = por %p108, %p109
    %p111 = scmp.ne.s32.totalorder %s97, %s98
    %p112 = scmp.eq.s32.totalorder %s17, 1
    %p113 = por %p111, %p112
    %p115 = scmp.ne.s32.totalorder %s98, %s114
    %p116 = scmp.eq.s32.totalorder %s17, 0
    %p117 = por %p115, %p116
    %s118 = ssub.s32 %s11, %s18
    %p119 = scmp.eq.s32.totalorder %s118, 0
    %s121 = sadd.s32 %s120, 1
    %s122 = scalar_select %p119, %s120, %s121
    %p125 = pneg %p119
    %p126 = scmp.eq.s32.totalorder %s11, 1
    %p127 = por %p125, %p126
    %p128 = scmp.ne.s32.totalorder %s120, %s123
    %p129 = scmp.eq.s32.totalorder %s11, 0
    %p130 = por %p128, %p129
    %p131 = scmp.ne.s32.totalorder %s120, %s123
    %p132 = scmp.eq.s32.totalorder %s16, 1
    %p133 = por %p131, %p132
    %p134 = scmp.ne.s32.totalorder %s123, %s124
    %p135 = scmp.eq.s32.totalorder %s16, 0
    %p136 = por %p134, %p135
    %p137 = scmp.ne.s32.totalorder %s123, %s124
    %p138 = scmp.eq.s32.totalorder %s17, 1
    %p139 = por %p137, %p138
    %p141 = scmp.ne.s32.totalorder %s124, %s140
    %p142 = scmp.eq.s32.totalorder %s17, 0
    %p143 = por %p141, %p142
    %p144 = scmp.le.s32.totalorder 1, %s11
    %p145 = scmp.lt.s32.totalorder %s11, 3
    %p146 = pnand %p144, %p145
    %p147 = pneg %p146
    // Predicated region
    $region9: #{bottleneck_forward.7} parent=5 // pred_check
      _
    $region10: #{bottleneck_forward.7} parent=5 // pred_check_branch
      %149 = sbr.rel (%p146) target = $region12
    $region11: #{bottleneck_forward.7} parent=5 // pred_region
      %s150 = ssub.s32 %s11, 1
      // Predicated region
      $region13: #{bottleneck_forward.7} parent=11 // pred_check
        %p151 = pneg %p58
      $region14: #{bottleneck_forward.7} parent=11 // pred_check_branch
        %153 = sbr.rel (%p151) target = $region16
      $region15: #{bottleneck_forward.7} parent=11 // pred_region
        _
      $region16: #{bottleneck_forward.7} parent=11 // pred_fallthru
        _
    $region12: #{bottleneck_forward.7} parent=5 // pred_fallthru
      _
    %p154 = scmp.lt.s32.totalorder %s11, 2
    // Predicated region
    $region17: #{bottleneck_forward.7} parent=5 // pred_check
      %p155 = pneg %p154
    $region18: #{bottleneck_forward.7} parent=5 // pred_check_branch
      %157 = sbr.rel (%p155) target = $region20
    $region19: #{bottleneck_forward.7} parent=5 // pred_region
      // Predicated region
      $region21: #{bottleneck_forward.7} parent=19 // pred_check
        %p158 = pneg %p31
      $region22: #{bottleneck_forward.7} parent=19 // pred_check_branch
        %160 = sbr.rel (%p158) target = $region24
      $region23: #{bottleneck_forward.7} parent=19 // pred_region
        %p161 = scmp.lt.s32.totalorder %s11, 1
        %s162 = scalar_select %p161, %s11, 1
        %s163 = smul.addr %s162, 72
        %s164 = smul.addr %s163, 4
        %s165 = scalar_lea.vmem %s0, %s164
      $region24: #{bottleneck_forward.7} parent=19 // pred_fallthru
        _
    $region20: #{bottleneck_forward.7} parent=5 // pred_fallthru
      _
    %p166 = scmp.le.s32.totalorder 1, %s11
    %p167 = scmp.lt.s32.totalorder %s11, 3
    %p168 = pnand %p166, %p167
    %p169 = pneg %p168
    // Predicated region
    $region25: #{bottleneck_forward.7} parent=5 // pred_check
      _
    $region26: #{bottleneck_forward.7} parent=5 // pred_check_branch
      %171 = sbr.rel (%p168) target = $region28
    $region27: #{bottleneck_forward.7} parent=5 // pred_region
      %s172 = ssub.s32 %s11, 1
      %p173 = scmp.lt.s32.totalorder %s16, 1
      %s174 = scalar_select %p173, %s16, 1
      %s175 = smul.addr %s174, 72
      %s176 = smul.addr %s175, 4
      %s177 = scalar_lea.vmem %s0, %s176
      %p178 = pneg %p37
      %p179 = pneg %p34
      %p180 = pneg %p58
      %p181 = pneg %p55
      %p182 = pneg %p84
      %p183 = pneg %p81
      %p184 = scmp.lt.s32.totalorder %s16, 1
      %s185 = scalar_select %p184, %s16, 1
      %s186 = smul.addr %s185, 8
      %s187 = smul.addr %s186, 4
      %s188 = scalar_lea.vmem %s2, %s187
      %p189 = pneg %p110
      %p190 = pneg %p107
      %p191 = scmp.lt.s32.totalorder %s16, 1
      %s192 = scalar_select %p191, %s16, 1
      %s193 = scalar_lea.vmem %s3, %s192
      %p194 = pneg %p136
      %p195 = pneg %p133
      %p196 = scmp.lt.s32.totalorder %s16, 1
      %s197 = scalar_select %p196, %s16, 1
      %s198 = scalar_lea.vmem %s4, %s197
      %p199 = scmp.lt.s32.totalorder %s16, 1
      %s200 = scalar_select %p199, %s16, 1
      %s201 = smul.addr %s200, 72
      %s202 = smul.addr %s201, 4
      %s203 = scalar_lea.vmem %s0, %s202
      %p204 = scmp.lt.s32.totalorder %s16, 1
      %s205 = scalar_select %p204, %s16, 1
      %s206 = smul.addr %s205, 8
      %s207 = smul.addr %s206, 4
      %s208 = scalar_lea.vmem %s2, %s207
      %p209 = scmp.lt.s32.totalorder %s16, 1
      %s210 = scalar_select %p209, %s16, 1
      %s211 = scalar_lea.vmem %s3, %s210
      %p212 = scmp.lt.s32.totalorder %s16, 1
      %s213 = scalar_select %p212, %s16, 1
      %s214 = scalar_lea.vmem %s4, %s213
      %v216 = vld [vmem:[%s203] sm:$0xf]
      %v217 = vld [vmem:[%s203 + $0x8] sm:$0xf]
      %v218 = vld [vmem:[%s203 + $0x10] sm:$0xf]
      %v219 = vld [vmem:[%s203 + $0x18] sm:$0xf]
      %v220 = vld [vmem:[%s203 + $0x20] sm:$0xf]
      %v221 = vld [vmem:[%s203 + $0x28] sm:$0xf]
      %v222 = vld [vmem:[%s203 + $0x30] sm:$0xf]
      %v223 = vld [vmem:[%s203 + $0x38] sm:$0xf]
      %v224 = vld [vmem:[%s1] sm:$0xf]
      %v225 = vld [vmem:[%s1 + $0x4] sm:$0xf]
      %v226 = vld [vmem:[%s1 + $0x8] sm:$0xf]
      %v227 = vld [vmem:[%s1 + $0xc] sm:$0xf]
      %v228 = vld [vmem:[%s1 + $0x10] sm:$0xf]
      %v229 = vld [vmem:[%s1 + $0x14] sm:$0xf]
      %v230 = vld [vmem:[%s1 + $0x18] sm:$0xf]
      %v231 = vld [vmem:[%s1 + $0x1c] sm:$0xf]
      %v232 = vld [vmem:[%s1 + $0x20] sm:$0xf]
      %v233 = vld [vmem:[%s1 + $0x24] sm:$0xf]
      %v234 = vld [vmem:[%s1 + $0x28] sm:$0xf]
      %v235 = vld [vmem:[%s1 + $0x2c] sm:$0xf]
      %v236 = vld [vmem:[%s1 + $0x30] sm:$0xf]
      %v237 = vld [vmem:[%s1 + $0x34] sm:$0xf]
      %v238 = vld [vmem:[%s1 + $0x38] sm:$0xf]
      %v239 = vld [vmem:[%s1 + $0x3c] sm:$0xf]
      %s240 = scalar_lea.vmem %s203, 72
      %v241 = vld [vmem:[%s240] sm:$0xf]
      %v242 = vld [vmem:[%s240 + $0x8] sm:$0xf]
      %v243 = vld [vmem:[%s240 + $0x10] sm:$0xf]
      %v244 = vld [vmem:[%s240 + $0x18] sm:$0xf]
      %v245 = vld [vmem:[%s240 + $0x20] sm:$0xf]
      %v246 = vld [vmem:[%s240 + $0x28] sm:$0xf]
      %v247 = vld [vmem:[%s240 + $0x30] sm:$0xf]
      %v248 = vld [vmem:[%s240 + $0x38] sm:$0xf]
      %s249 = scalar_lea.vmem %s1, 64
      %v250 = vld [vmem:[%s249] sm:$0xf]
      %v251 = vld [vmem:[%s249 + $0x4] sm:$0xf]
      %v252 = vld [vmem:[%s249 + $0x8] sm:$0xf]
      %v253 = vld [vmem:[%s249 + $0xc] sm:$0xf]
      %v254 = vld [vmem:[%s249 + $0x10] sm:$0xf]
      %v255 = vld [vmem:[%s249 + $0x14] sm:$0xf]
      %v256 = vld [vmem:[%s249 + $0x18] sm:$0xf]
      %v257 = vld [vmem:[%s249 + $0x1c] sm:$0xf]
      %v258 = vld [vmem:[%s249 + $0x20] sm:$0xf]
      %v259 = vld [vmem:[%s249 + $0x24] sm:$0xf]
      %v260 = vld [vmem:[%s249 + $0x28] sm:$0xf]
      %v261 = vld [vmem:[%s249 + $0x2c] sm:$0xf]
      %v262 = vld [vmem:[%s249 + $0x30] sm:$0xf]
      %v263 = vld [vmem:[%s249 + $0x34] sm:$0xf]
      %v264 = vld [vmem:[%s249 + $0x38] sm:$0xf]
      %v265 = vld [vmem:[%s249 + $0x3c] sm:$0xf]
      %v274 = vunpack.c.l.b16 %v241
      %v275 = vunpack.c.l.b16 %v242
      %v276 = vunpack.c.l.b16 %v243
      %v277 = vunpack.c.l.b16 %v244
      %v278 = vunpack.c.l.b16 %v245
      %v279 = vunpack.c.l.b16 %v246
      %v280 = vunpack.c.l.b16 %v247
      %v281 = vunpack.c.l.b16 %v248
      %v282 = vpack.c.b16 %v275, %v274
      %v283 = vpack.c.b16 %v277, %v276
      %v284 = vpack.c.b16 %v279, %v278
      %v285 = vpack.c.b16 %v281, %v280
      %v306 = vunpack.c.l.b16 %v250
      %v307 = vunpack.c.l.b16 %v251
      %v308 = vunpack.c.l.b16 %v252
      %v309 = vunpack.c.l.b16 %v253
      %v310 = vunpack.c.l.b16 %v254
      %v311 = vunpack.c.l.b16 %v255
      %v312 = vunpack.c.l.b16 %v256
      %v313 = vunpack.c.l.b16 %v257
      %v314 = vunpack.c.l.b16 %v258
      %v315 = vunpack.c.l.b16 %v259
      %v316 = vunpack.c.l.b16 %v260
      %v317 = vunpack.c.l.b16 %v261
      %v318 = vunpack.c.l.b16 %v262
      %v319 = vunpack.c.l.b16 %v263
      %v320 = vunpack.c.l.b16 %v264
      %v321 = vunpack.c.l.b16 %v265
      %v322 = vpack.c.b16 %v307, %v306
      %v323 = vpack.c.b16 %v309, %v308
      %v324 = vpack.c.b16 %v311, %v310
      %v325 = vpack.c.b16 %v313, %v312
      %v326 = vpack.c.b16 %v315, %v314
      %v327 = vpack.c.b16 %v317, %v316
      %v328 = vpack.c.b16 %v319, %v318
      %v329 = vpack.c.b16 %v321, %v320
      %338 = vmatprep.subr.bf16.mxu0 0
      %339 = vmatpush1.bf16.msra.mxu0 %v322
      %340 = vmatprep.subr.bf16.mxu0 0
      %341 = vmatpush1.bf16.msra.mxu0 %v323
      %342 = vmatprep.subr.bf16.mxu0 0
      %343 = vmatpush1.bf16.msra.mxu0 %v324
      %344 = vmatprep.subr.bf16.mxu0 0
      %345 = vmatpush1.bf16.msra.mxu0 %v325
      %346 = vmatprep.subr.bf16.mxu0 0
      %347 = vmatpush1.bf16.msra.mxu0 %v326
      %348 = vmatprep.subr.bf16.mxu0 0
      %349 = vmatpush1.bf16.msra.mxu0 %v327
      %350 = vmatprep.subr.bf16.mxu0 0
      %351 = vmatpush1.bf16.msra.mxu0 %v328
      %352 = vmatprep.subr.bf16.mxu0 0
      %353 = vmatpush1.bf16.msra.mxu0 %v329
      %354 = vmatprep.subr.bf16.mxu0 0
      %355 = vmatpush1.bf16.msra.mxu0 0
      %356 = vmatprep.subr.bf16.mxu0 0
      %357 = vmatpush1.bf16.msra.mxu0 0
      %358 = vmatprep.subr.bf16.mxu0 0
      %359 = vmatpush1.bf16.msra.mxu0 0
      %360 = vmatprep.subr.bf16.mxu0 0
      %361 = vmatpush1.bf16.msra.mxu0 0
      %362 = vmatprep.subr.bf16.mxu0 0
      %363 = vmatpush1.bf16.msra.mxu0 0
      %364 = vmatprep.subr.bf16.mxu0 0
      %365 = vmatpush1.bf16.msra.mxu0 0
      %366 = vmatprep.subr.bf16.mxu0 0
      %367 = vmatpush1.bf16.msra.mxu0 0
      %368 = vmatprep.subr.bf16.mxu0 0
      %369 = vmatpush1.bf16.msra.mxu0 0
      %370 = vmatprep.mubr.bf16.mxu0 0
      %371 = vmatmul.mubr.bf16.gmra.mrb[0].mxu0 %v282
      %v372 = vpop.f32.mrb[0].mxu0
      %v373 = vadd.f32 0.0, %v372
      %v374 = vpop.f32.mrb[0].mxu0
      %v375 = vpop.f32.mrb[0].mxu0
      %v376 = vadd.f32 0.0, %v375
      %v377 = vpop.f32.mrb[0].mxu0
      %378 = vmatprep.mubr.bf16.mxu0 0
      %379 = vmatmul.mubr.bf16.gmra.mrb[0].mxu0 %v283
      %v380 = vpop.f32.mrb[0].mxu0
      %v381 = vadd.f32 0.0, %v380
      %v382 = vpop.f32.mrb[0].mxu0
      %v383 = vpop.f32.mrb[0].mxu0
      %v384 = vadd.f32 0.0, %v383
      %v385 = vpop.f32.mrb[0].mxu0
      %386 = vmatprep.mubr.bf16.mxu0 0
      %387 = vmatmul.mubr.bf16.gmra.mrb[0].mxu0 %v284
      %v388 = vpop.f32.mrb[0].mxu0
      %v389 = vadd.f32 0.0, %v388
      %v390 = vpop.f32.mrb[0].mxu0
      %v391 = vpop.f32.mrb[0].mxu0
      %v392 = vadd.f32 0.0, %v391
      %v393 = vpop.f32.mrb[0].mxu0
      %394 = vmatprep.mubr.bf16.mxu0 0
      %395 = vmatmul.mubr.bf16.gmra.mrb[0].mxu0 %v285
      %v396 = vpop.f32.mrb[0].mxu0
      %v397 = vadd.f32 0.0, %v396
      %v398 = vpop.f32.mrb[0].mxu0
      %v399 = vpop.f32.mrb[0].mxu0
      %v400 = vadd.f32 0.0, %v399
      %v401 = vpop.f32.mrb[0].mxu0
      %402 = vdwg.mxu0
      %v411 = vunpack.c.l.b16 %v216
      %v412 = vunpack.c.l.b16 %v217
      %v413 = vunpack.c.l.b16 %v218
      %v414 = vunpack.c.l.b16 %v219
      %v415 = vunpack.c.l.b16 %v220
      %v416 = vunpack.c.l.b16 %v221
      %v417 = vunpack.c.l.b16 %v222
      %v418 = vunpack.c.l.b16 %v223
      %v419 = vpack.c.b16 %v412, %v411
      %v420 = vpack.c.b16 %v414, %v413
      %v421 = vpack.c.b16 %v416, %v415
      %v422 = vpack.c.b16 %v418, %v417
      %v443 = vunpack.c.l.b16 %v224
      %v444 = vunpack.c.l.b16 %v225
      %v445 = vunpack.c.l.b16 %v226
      %v446 = vunpack.c.l.b16 %v227
      %v447 = vunpack.c.l.b16 %v228
      %v448 = vunpack.c.l.b16 %v229
      %v449 = vunpack.c.l.b16 %v230
      %v450 = vunpack.c.l.b16 %v231
      %v451 = vunpack.c.l.b16 %v232
      %v452 = vunpack.c.l.b16 %v233
      %v453 = vunpack.c.l.b16 %v234
      %v454 = vunpack.c.l.b16 %v235
      %v455 = vunpack.c.l.b16 %v236
      %v456 = vunpack.c.l.b16 %v237
      %v457 = vunpack.c.l.b16 %v238
      %v458 = vunpack.c.l.b16 %v239
      %v459 = vpack.c.b16 %v444, %v443
      %v460 = vpack.c.b16 %v446, %v445
      %v461 = vpack.c.b16 %v448, %v447
      %v462 = vpack.c.b16 %v450, %v449
      %v463 = vpack.c.b16 %v452, %v451
      %v464 = vpack.c.b16 %v454, %v453
      %v465 = vpack.c.b16 %v456, %v455
      %v466 = vpack.c.b16 %v458, %v457
      %475 = vmatprep.subr.bf16.mxu0 0
      %476 = vmatpush1.bf16.msra.mxu0 %v459
      %477 = vmatprep.subr.bf16.mxu0 0
      %478 = vmatpush1.bf16.msra.mxu0 %v460
      %479 = vmatprep.subr.bf16.mxu0 0
      %480 = vmatpush1.bf16.msra.mxu0 %v461
      %481 = vmatprep.subr.bf16.mxu0 0
      %482 = vmatpush1.bf16.msra.mxu0 %v462
      %483 = vmatprep.subr.bf16.mxu0 0
      %484 = vmatpush1.bf16.msra.mxu0 %v463
      %485 = vmatprep.subr.bf16.mxu0 0
      %486 = vmatpush1.bf16.msra.mxu0 %v464
      %487 = vmatprep.subr.bf16.mxu0 0
      %488 = vmatpush1.bf16.msra.mxu0 %v465
      %489 = vmatprep.subr.bf16.mxu0 0
      %490 = vmatpush1.bf16.msra.mxu0 %v466
      %491 = vmatprep.subr.bf16.mxu0 0
      %492 = vmatpush1.bf16.msra.mxu0 0
      %493 = vmatprep.subr.bf16.mxu0 0
      %494 = vmatpush1.bf16.msra.mxu0 0
      %495 = vmatprep.subr.bf16.mxu0 0
      %496 = vmatpush1.bf16.msra.mxu0 0
      %497 = vmatprep.subr.bf16.mxu0 0
      %498 = vmatpush1.bf16.msra.mxu0 0
      %499 = vmatprep.subr.bf16.mxu0 0
      %500 = vmatpush1.bf16.msra.mxu0 0
      %501 = vmatprep.subr.bf16.mxu0 0
      %502 = vmatpush1.bf16.msra.mxu0 0
      %503 = vmatprep.subr.bf16.mxu0 0
      %504 = vmatpush1.bf16.msra.mxu0 0
      %505 = vmatprep.subr.bf16.mxu0 0
      %506 = vmatpush1.bf16.msra.mxu0 0
      %507 = vmatprep.mubr.bf16.mxu0 0
      %508 = vmatmul.mubr.bf16.gmra.mrb[0].mxu0 %v419
      %v509 = vpop.f32.mrb[0].mxu0
      %v510 = vadd.f32 %v373, %v509
      %v511 = vpop.f32.mrb[0].mxu0
      %v512 = vpop.f32.mrb[0].mxu0
      %v513 = vadd.f32 %v376, %v512
      %v514 = vpop.f32.mrb[0].mxu0
      %515 = vmatprep.mubr.bf16.mxu0 0
      %516 = vmatmul.mubr.bf16.gmra.mrb[0].mxu0 %v420
      %v517 = vpop.f32.mrb[0].mxu0
      %v518 = vadd.f32 %v381, %v517
      %v519 = vpop.f32.mrb[0].mxu0
      %v520 = vpop.f32.mrb[0].mxu0
      %v521 = vadd.f32 %v384, %v520
      %v522 = vpop.f32.mrb[0].mxu0
      %523 = vmatprep.mubr.bf16.mxu0 0
      %524 = vmatmul.mubr.bf16.gmra.mrb[0].mxu0 %v421
      %v525 = vpop.f32.mrb[0].mxu0
      %v526 = vadd.f32 %v389, %v525
      %v527 = vpop.f32.mrb[0].mxu0
      %v528 = vpop.f32.mrb[0].mxu0
      %v529 = vadd.f32 %v392, %v528
      %v530 = vpop.f32.mrb[0].mxu0
      %531 = vmatprep.mubr.bf16.mxu0 0
      %532 = vmatmul.mubr.bf16.gmra.mrb[0].mxu0 %v422
      %v533 = vpop.f32.mrb[0].mxu0
      %v534 = vadd.f32 %v397, %v533
      %v535 = vpop.f32.mrb[0].mxu0
      %v536 = vpop.f32.mrb[0].mxu0
      %v537 = vadd.f32 %v400, %v536
      %v538 = vpop.f32.mrb[0].mxu0
      %539 = vdwg.mxu0
      %v540 = vld [vmem:[%s203] sm:$0xf]
      %v541 = vld [vmem:[%s203 + $0x4] sm:$0x1]
      %v542 = vld [vmem:[%s203 + $0x8] sm:$0xf]
      %v543 = vld [vmem:[%s203 + $0xc] sm:$0x1]
      %v544 = vld [vmem:[%s203 + $0x10] sm:$0xf]
      %v545 = vld [vmem:[%s203 + $0x14] sm:$0x1]
      %v546 = vld [vmem:[%s203 + $0x18] sm:$0xf]
      %v547 = vld [vmem:[%s203 + $0x1c] sm:$0x1]
      %v548 = vld [vmem:[%s203 + $0x20] sm:$0xf]
      %v549 = vld [vmem:[%s203 + $0x24] sm:$0x1]
      %v550 = vld [vmem:[%s203 + $0x28] sm:$0xf]
      %v551 = vld [vmem:[%s203 + $0x2c] sm:$0x1]
      %v552 = vld [vmem:[%s203 + $0x30] sm:$0xf]
      %v553 = vld [vmem:[%s203 + $0x34] sm:$0x1]
      %v554 = vld [vmem:[%s203 + $0x38] sm:$0xf]
      %v555 = vld [vmem:[%s203 + $0x3c] sm:$0x1]
      %vm556 = vsmask.f32 3328
      %vm557 = vsmask.f32 7440
      %vm558 = vmor %vm556, %vm557
      %v560 = vshrl.u32 %v540, 16
      %v562 = vrot.slane %v560, 4
      %v563 = vshll.u32 %v540, 16
      %v565 = vrot.slane %v563, 5
      %v566 = vor.u32 %v562, %v565
      %v567 = vrot.slane %v566, 4
      %v569 = vshll.u32 %v541, 16
      %v571 = vrot.slane %v569, 5
      %v572 = vsel %vm558, %v567, %v571
      %v574 = vshrl.u32 %v542, 16
      %v576 = vrot.slane %v574, 4
      %v577 = vshll.u32 %v542, 16
      %v579 = vrot.slane %v577, 5
      %v580 = vor.u32 %v576, %v579
      %v581 = vrot.slane %v580, 4
      %v583 = vshll.u32 %v543, 16
      %v585 = vrot.slane %v583, 5
      %v586 = vsel %vm558, %v581, %v585
      %v588 = vshrl.u32 %v544, 16
      %v590 = vrot.slane %v588, 4
      %v591 = vshll.u32 %v544, 16
      %v593 = vrot.slane %v591, 5
      %v594 = vor.u32 %v590, %v593
      %v595 = vrot.slane %v594, 4
      %v597 = vshll.u32 %v545, 16
      %v599 = vrot.slane %v597, 5
      %v600 = vsel %vm558, %v595, %v599
      %v602 = vshrl.u32 %v546, 16
      %v604 = vrot.slane %v602, 4
      %v605 = vshll.u32 %v546, 16
      %v607 = vrot.slane %v605, 5
      %v608 = vor.u32 %v604, %v607
      %v609 = vrot.slane %v608, 4
      %v611 = vshll.u32 %v547, 16
      %v613 = vrot.slane %v611, 5
      %v614 = vsel %vm558, %v609, %v613
      %v616 = vshrl.u32 %v548, 16
      %v618 = vrot.slane %v616, 4
      %v619 = vshll.u32 %v548, 16
      %v621 = vrot.slane %v619, 5
      %v622 = vor.u32 %v618, %v621
      %v623 = vrot.slane %v622, 4
      %v625 = vshll.u32 %v549, 16
      %v627 = vrot.slane %v625, 5
      %v628 = vsel %vm558, %v623, %v627
      %v630 = vshrl.u32 %v550, 16
      %v632 = vrot.slane %v630, 4
      %v633 = vshll.u32 %v550, 16
      %v635 = vrot.slane %v633, 5
      %v636 = vor.u32 %v632, %v635
      %v637 = vrot.slane %v636, 4
      %v639 = vshll.u32 %v551, 16
      %v641 = vrot.slane %v639, 5
      %v642 = vsel %vm558, %v637, %v641
      %v644 = vshrl.u32 %v552, 16
      %v646 = vrot.slane %v644, 4
      %v647 = vshll.u32 %v552, 16
      %v649 = vrot.slane %v647, 5
      %v650 = vor.u32 %v646, %v649
      %v651 = vrot.slane %v650, 4
      %v653 = vshll.u32 %v553, 16
      %v655 = vrot.slane %v653, 5
      %v656 = vsel %vm558, %v651, %v655
      %v658 = vshrl.u32 %v554, 16
      %v660 = vrot.slane %v658, 4
      %v661 = vshll.u32 %v554, 16
      %v663 = vrot.slane %v661, 5
      %v664 = vor.u32 %v660, %v663
      %v665 = vrot.slane %v664, 4
      %v667 = vshll.u32 %v555, 16
      %v669 = vrot.slane %v667, 5
      %v670 = vsel %vm558, %v665, %v669
      %s671 = scalar_lea.vmem %s1, 128
      %v672 = vld [vmem:[%s671] sm:$0xf]
      %v673 = vld [vmem:[%s671 + $0x4] sm:$0xf]
      %v674 = vld [vmem:[%s671 + $0x8] sm:$0xf]
      %v675 = vld [vmem:[%s671 + $0xc] sm:$0xf]
      %v676 = vld [vmem:[%s671 + $0x10] sm:$0xf]
      %v677 = vld [vmem:[%s671 + $0x14] sm:$0xf]
      %v678 = vld [vmem:[%s671 + $0x18] sm:$0xf]
      %v679 = vld [vmem:[%s671 + $0x1c] sm:$0xf]
      %v680 = vld [vmem:[%s671 + $0x20] sm:$0xf]
      %v681 = vld [vmem:[%s671 + $0x24] sm:$0xf]
      %v682 = vld [vmem:[%s671 + $0x28] sm:$0xf]
      %v683 = vld [vmem:[%s671 + $0x2c] sm:$0xf]
      %v684 = vld [vmem:[%s671 + $0x30] sm:$0xf]
      %v685 = vld [vmem:[%s671 + $0x34] sm:$0xf]
      %v686 = vld [vmem:[%s671 + $0x38] sm:$0xf]
      %v687 = vld [vmem:[%s671 + $0x3c] sm:$0xf]
      %v688 = vunpack.c.l.b16 %v572
      %v689 = vunpack.c.l.b16 %v586
      %v690 = vunpack.c.l.b16 %v600
      %v691 = vunpack.c.l.b16 %v614
      %v692 = vunpack.c.l.b16 %v628
      %v693 = vunpack.c.l.b16 %v642
      %v694 = vunpack.c.l.b16 %v656
      %v695 = vunpack.c.l.b16 %v670
      %v696 = vpack.c.b16 %v689, %v688
      %v697 = vpack.c.b16 %v691, %v690
      %v698 = vpack.c.b16 %v693, %v692
      %v699 = vpack.c.b16 %v695, %v694
      %v720 = vunpack.c.l.b16 %v672
      %v721 = vunpack.c.l.b16 %v673
      %v722 = vunpack.c.l.b16 %v674
      %v723 = vunpack.c.l.b16 %v675
      %v724 = vunpack.c.l.b16 %v676
      %v725 = vunpack.c.l.b16 %v677
      %v726 = vunpack.c.l.b16 %v678
      %v727 = vunpack.c.l.b16 %v679
      %v728 = vunpack.c.l.b16 %v680
      %v729 = vunpack.c.l.b16 %v681
      %v730 = vunpack.c.l.b16 %v682
      %v731 = vunpack.c.l.b16 %v683
      %v732 = vunpack.c.l.b16 %v684
      %v733 = vunpack.c.l.b16 %v685
      %v734 = vunpack.c.l.b16 %v686
      %v735 = vunpack.c.l.b16 %v687
      %v736 = vpack.c.b16 %v721, %v720
      %v737 = vpack.c.b16 %v723, %v722
      %v738 = vpack.c.b16 %v725, %v724
      %v739 = vpack.c.b16 %v727, %v726
      %v740 = vpack.c.b16 %v729, %v728
      %v741 = vpack.c.b16 %v731, %v730
      %v742 = vpack.c.b16 %v733, %v732
      %v743 = vpack.c.b16 %v735, %v734
      %752 = vmatprep.subr.bf16.mxu0 0
      %753 = vmatpush1.bf16.msra.mxu0 %v736
      %754 = vmatprep.subr.bf16.mxu0 0
      %755 = vmatpush1.bf16.msra.mxu0 %v737
      %756 = vmatprep.subr.bf16.mxu0 0
      %757 = vmatpush1.bf16.msra.mxu0 %v738
      %758 = vmatprep.subr.bf16.mxu0 0
      %759 = vmatpush1.bf16.msra.mxu0 %v739
      %760 = vmatprep.subr.bf16.mxu0 0
      %761 = vmatpush1.bf16.msra.mxu0 %v740
      %762 = vmatprep.subr.bf16.mxu0 0
      %763 = vmatpush1.bf16.msra.mxu0 %v741
      %764 = vmatprep.subr.bf16.mxu0 0
      %765 = vmatpush1.bf16.msra.mxu0 %v742
      %766 = vmatprep.subr.bf16.mxu0 0
      %767 = vmatpush1.bf16.msra.mxu0 %v743
      %768 = vmatprep.subr.bf16.mxu0 0
      %769 = vmatpush1.bf16.msra.mxu0 0
      %770 = vmatprep.subr.bf16.mxu0 0
      %771 = vmatpush1.bf16.msra.mxu0 0
      %772 = vmatprep.subr.bf16.mxu0 0
      %773 = vmatpush1.bf16.msra.mxu0 0
      %774 = vmatprep.subr.bf16.mxu0 0
      %775 = vmatpush1.bf16.msra.mxu0 0
      %776 = vmatprep.subr.bf16.mxu0 0
      %777 = vmatpush1.bf16.msra.mxu0 0
      %778 = vmatprep.subr.bf16.mxu0 0
      %779 = vmatpush1.bf16.msra.mxu0 0
      %780 = vmatprep.subr.bf16.mxu0 0
      %781 = vmatpush1.bf16.msra.mxu0 0
      %782 = vmatprep.subr.bf16.mxu0 0
      %783 = vmatpush1.bf16.msra.mxu0 0
      %784 = vmatprep.mubr.bf16.mxu0 0
      %785 = vmatmul.mubr.bf16.gmra.mrb[0].mxu0 %v696
      %v786 = vpop.f32.mrb[0].mxu0
      %v787 = vadd.f32 0.0, %v786
      %v788 = vpop.f32.mrb[0].mxu0
      %v789 = vpop.f32.mrb[0].mxu0
      %v790 = vadd.f32 0.0, %v789
      %v791 = vpop.f32.mrb[0].mxu0
      %792 = vmatprep.mubr.bf16.mxu0 0
      %793 = vmatmul.mubr.bf16.gmra.mrb[0].mxu0 %v697
      %v794 = vpop.f32.mrb[0].mxu0
      %v795 = vadd.f32 0.0, %v794
      %v796 = vpop.f32.mrb[0].mxu0
      %v797 = vpop.f32.mrb[0].mxu0
      %v798 = vadd.f32 0.0, %v797
      %v799 = vpop.f32.mrb[0].mxu0
      %800 = vmatprep.mubr.bf16.mxu0 0
      %801 = vmatmul.mubr.bf16.gmra.mrb[0].mxu0 %v698
      %v802 = vpop.f32.mrb[0].mxu0
      %v803 = vadd.f32 0.0, %v802
      %v804 = vpop.f32.mrb[0].mxu0
      %v805 = vpop.f32.mrb[0].mxu0
      %v806 = vadd.f32 0.0, %v805
      %v807 = vpop.f32.mrb[0].mxu0
      %808 = vmatprep.mubr.bf16.mxu0 0
      %809 = vmatmul.mubr.bf16.gmra.mrb[0].mxu0 %v699
      %v810 = vpop.f32.mrb[0].mxu0
      %v811 = vadd.f32 0.0, %v810
      %v812 = vpop.f32.mrb[0].mxu0
      %v813 = vpop.f32.mrb[0].mxu0
      %v814 = vadd.f32 0.0, %v813
      %v815 = vpop.f32.mrb[0].mxu0
      %816 = vdwg.mxu0
      %v817 = vadd.f32 %v510, %v787
      %v818 = vadd.f32 %v513, %v790
      %v819 = vadd.f32 %v518, %v795
      %v820 = vadd.f32 %v521, %v798
      %v821 = vadd.f32 %v526, %v803
      %v822 = vadd.f32 %v529, %v806
      %v823 = vadd.f32 %v534, %v811
      %v824 = vadd.f32 %v537, %v814
      %s825 = scalar_lea.vmem %s203, 144
      %v826 = vld [vmem:[%s825] sm:$0xf]
      %v827 = vld [vmem:[%s825 + $0x8] sm:$0xf]
      %v828 = vld [vmem:[%s825 + $0x10] sm:$0xf]
      %v829 = vld [vmem:[%s825 + $0x18] sm:$0xf]
      %v830 = vld [vmem:[%s825 + $0x20] sm:$0xf]
      %v831 = vld [vmem:[%s825 + $0x28] sm:$0xf]
      %v832 = vld [vmem:[%s825 + $0x30] sm:$0xf]
      %v833 = vld [vmem:[%s825 + $0x38] sm:$0xf]
      %s834 = scalar_lea.vmem %s1, 192
      %v835 = vld [vmem:[%s834] sm:$0xf]
      %v836 = vld [vmem:[%s834 + $0x4] sm:$0xf]
      %v837 = vld [vmem:[%s834 + $0x8] sm:$0xf]
      %v838 = vld [vmem:[%s834 + $0xc] sm:$0xf]
      %v839 = vld [vmem:[%s834 + $0x10] sm:$0xf]
      %v840 = vld [vmem:[%s834 + $0x14] sm:$0xf]
      %v841 = vld [vmem:[%s834 + $0x18] sm:$0xf]
      %v842 = vld [vmem:[%s834 + $0x1c] sm:$0xf]
      %v843 = vld [vmem:[%s834 + $0x20] sm:$0xf]
      %v844 = vld [vmem:[%s834 + $0x24] sm:$0xf]
      %v845 = vld [vmem:[%s834 + $0x28] sm:$0xf]
      %v846 = vld [vmem:[%s834 + $0x2c] sm:$0xf]
      %v847 = vld [vmem:[%s834 + $0x30] sm:$0xf]
      %v848 = vld [vmem:[%s834 + $0x34] sm:$0xf]
      %v849 = vld [vmem:[%s834 + $0x38] sm:$0xf]
      %v850 = vld [vmem:[%s834 + $0x3c] sm:$0xf]
      %v859 = vunpack.c.l.b16 %v826
      %v860 = vunpack.c.l.b16 %v827
      %v861 = vunpack.c.l.b16 %v828
      %v862 = vunpack.c.l.b16 %v829
      %v863 = vunpack.c.l.b16 %v830
      %v864 = vunpack.c.l.b16 %v831
      %v865 = vunpack.c.l.b16 %v832
      %v866 = vunpack.c.l.b16 %v833
      %v867 = vpack.c.b16 %v860, %v859
      %v868 = vpack.c.b16 %v862, %v861
      %v869 = vpack.c.b16 %v864, %v863
      %v870 = vpack.c.b16 %v866, %v865
      %v891 = vunpack.c.l.b16 %v835
      %v892 = vunpack.c.l.b16 %v836
      %v893 = vunpack.c.l.b16 %v837
      %v894 = vunpack.c.l.b16 %v838
      %v895 = vunpack.c.l.b16 %v839
      %v896 = vunpack.c.l.b16 %v840
      %v897 = vunpack.c.l.b16 %v841
      %v898 = vunpack.c.l.b16 %v842
      %v899 = vunpack.c.l.b16 %v843
      %v900 = vunpack.c.l.b16 %v844
      %v901 = vunpack.c.l.b16 %v845
      %v902 = vunpack.c.l.b16 %v846
      %v903 = vunpack.c.l.b16 %v847
      %v904 = vunpack.c.l.b16 %v848
      %v905 = vunpack.c.l.b16 %v849
      %v906 = vunpack.c.l.b16 %v850
      %v907 = vpack.c.b16 %v892, %v891
      %v908 = vpack.c.b16 %v894, %v893
      %v909 = vpack.c.b16 %v896, %v895
      %v910 = vpack.c.b16 %v898, %v897
      %v911 = vpack.c.b16 %v900, %v899
      %v912 = vpack.c.b16 %v902, %v901
      %v913 = vpack.c.b16 %v904, %v903
      %v914 = vpack.c.b16 %v906, %v905
      %923 = vmatprep.subr.bf16.mxu0 0
      %924 = vmatpush1.bf16.msra.mxu0 %v907
      %925 = vmatprep.subr.bf16.mxu0 0
      %926 = vmatpush1.bf16.msra.mxu0 %v908
      %927 = vmatprep.subr.bf16.mxu0 0
      %928 = vmatpush1.bf16.msra.mxu0 %v909
      %929 = vmatprep.subr.bf16.mxu0 0
      %930 = vmatpush1.bf16.msra.mxu0 %v910
      %931 = vmatprep.subr.bf16.mxu0 0
      %932 = vmatpush1.bf16.msra.mxu0 %v911
      %933 = vmatprep.subr.bf16.mxu0 0
      %934 = vmatpush1.bf16.msra.mxu0 %v912
      %935 = vmatprep.subr.bf16.mxu0 0
      %936 = vmatpush1.bf16.msra.mxu0 %v913
      %937 = vmatprep.subr.bf16.mxu0 0
      %938 = vmatpush1.bf16.msra.mxu0 %v914
      %939 = vmatprep.subr.bf16.mxu0 0
      %940 = vmatpush1.bf16.msra.mxu0 0
      %941 = vmatprep.subr.bf16.mxu0 0
      %942 = vmatpush1.bf16.msra.mxu0 0
      %943 = vmatprep.subr.bf16.mxu0 0
      %944 = vmatpush1.bf16.msra.mxu0 0
      %945 = vmatprep.subr.bf16.mxu0 0
      %946 = vmatpush1.bf16.msra.mxu0 0
      %947 = vmatprep.subr.bf16.mxu0 0
      %948 = vmatpush1.bf16.msra.mxu0 0
      %949 = vmatprep.subr.bf16.mxu0 0
      %950 = vmatpush1.bf16.msra.mxu0 0
      %951 = vmatprep.subr.bf16.mxu0 0
      %952 = vmatpush1.bf16.msra.mxu0 0
      %953 = vmatprep.subr.bf16.mxu0 0
      %954 = vmatpush1.bf16.msra.mxu0 0
      %955 = vmatprep.mubr.bf16.mxu0 0
      %956 = vmatmul.mubr.bf16.gmra.mrb[0].mxu0 %v867
      %v957 = vpop.f32.mrb[0].mxu0
      %v958 = vadd.f32 0.0, %v957
      %v959 = vpop.f32.mrb[0].mxu0
      %v960 = vpop.f32.mrb[0].mxu0
      %v961 = vadd.f32 0.0, %v960
      %v962 = vpop.f32.mrb[0].mxu0
      %963 = vmatprep.mubr.bf16.mxu0 0
      %964 = vmatmul.mubr.bf16.gmra.mrb[0].mxu0 %v868
      %v965 = vpop.f32.mrb[0].mxu0
      %v966 = vadd.f32 0.0, %v965
      %v967 = vpop.f32.mrb[0].mxu0
      %v968 = vpop.f32.mrb[0].mxu0
      %v969 = vadd.f32 0.0, %v968
      %v970 = vpop.f32.mrb[0].mxu0
      %971 = vmatprep.mubr.bf16.mxu0 0
      %972 = vmatmul.mubr.bf16.gmra.mrb[0].mxu0 %v869
      %v973 = vpop.f32.mrb[0].mxu0
      %v974 = vadd.f32 0.0, %v973
      %v975 = vpop.f32.mrb[0].mxu0
      %v976 = vpop.f32.mrb[0].mxu0
      %v977 = vadd.f32 0.0, %v976
      %v978 = vpop.f32.mrb[0].mxu0
      %979 = vmatprep.mubr.bf16.mxu0 0
      %980 = vmatmul.mubr.bf16.gmra.mrb[0].mxu0 %v870
      %v981 = vpop.f32.mrb[0].mxu0
      %v982 = vadd.f32 0.0, %v981
      %v983 = vpop.f32.mrb[0].mxu0
      %v984 = vpop.f32.mrb[0].mxu0
      %v985 = vadd.f32 0.0, %v984
      %v986 = vpop.f32.mrb[0].mxu0
      %987 = vdwg.mxu0
      %v988 = vadd.f32 %v817, %v958
      %v989 = vadd.f32 %v818, %v961
      %v990 = vadd.f32 %v819, %v966
      %v991 = vadd.f32 %v820, %v969
      %v992 = vadd.f32 %v821, %v974
      %v993 = vadd.f32 %v822, %v977
      %v994 = vadd.f32 %v823, %v982
      %v995 = vadd.f32 %v824, %v985
      %s996 = scalar_lea.vmem %s203, 216
      %v997 = vld [vmem:[%s996] sm:$0xf]
      %v998 = vld [vmem:[%s996 + $0x8] sm:$0xf]
      %v999 = vld [vmem:[%s996 + $0x10] sm:$0xf]
      %v1000 = vld [vmem:[%s996 + $0x18] sm:$0xf]
      %v1001 = vld [vmem:[%s996 + $0x20] sm:$0xf]
      %v1002 = vld [vmem:[%s996 + $0x28] sm:$0xf]
      %v1003 = vld [vmem:[%s996 + $0x30] sm:$0xf]
      %v1004 = vld [vmem:[%s996 + $0x38] sm:$0xf]
      %s1005 = scalar_lea.vmem %s1, 256
      %v1006 = vld [vmem:[%s1005] sm:$0xf]
      %v1007 = vld [vmem:[%s1005 + $0x4] sm:$0xf]
      %v1008 = vld [vmem:[%s1005 + $0x8] sm:$0xf]
      %v1009 = vld [vmem:[%s1005 + $0xc] sm:$0xf]
      %v1010 = vld [vmem:[%s1005 + $0x10] sm:$0xf]
      %v1011 = vld [vmem:[%s1005 + $0x14] sm:$0xf]
      %v1012 = vld [vmem:[%s1005 + $0x18] sm:$0xf]
      %v1013 = vld [vmem:[%s1005 + $0x1c] sm:$0xf]
      %v1014 = vld [vmem:[%s1005 + $0x20] sm:$0xf]
      %v1015 = vld [vmem:[%s1005 + $0x24] sm:$0xf]
      %v1016 = vld [vmem:[%s1005 + $0x28] sm:$0xf]
      %v1017 = vld [vmem:[%s1005 + $0x2c] sm:$0xf]
      %v1018 = vld [vmem:[%s1005 + $0x30] sm:$0xf]
      %v1019 = vld [vmem:[%s1005 + $0x34] sm:$0xf]
      %v1020 = vld [vmem:[%s1005 + $0x38] sm:$0xf]
      %v1021 = vld [vmem:[%s1005 + $0x3c] sm:$0xf]
      %v1030 = vunpack.c.l.b16 %v997
      %v1031 = vunpack.c.l.b16 %v998
      %v1032 = vunpack.c.l.b16 %v999
      %v1033 = vunpack.c.l.b16 %v1000
      %v1034 = vunpack.c.l.b16 %v1001
      %v1035 = vunpack.c.l.b16 %v1002
      %v1036 = vunpack.c.l.b16 %v1003
      %v1037 = vunpack.c.l.b16 %v1004
      %v1038 = vpack.c.b16 %v1031, %v1030
      %v1039 = vpack.c.b16 %v1033, %v1032
      %v1040 = vpack.c.b16 %v1035, %v1034
      %v1041 = vpack.c.b16 %v1037, %v1036
      %v1062 = vunpack.c.l.b16 %v1006
      %v1063 = vunpack.c.l.b16 %v1007
      %v1064 = vunpack.c.l.b16 %v1008
      %v1065 = vunpack.c.l.b16 %v1009
      %v1066 = vunpack.c.l.b16 %v1010
      %v1067 = vunpack.c.l.b16 %v1011
      %v1068 = vunpack.c.l.b16 %v1012
      %v1069 = vunpack.c.l.b16 %v1013
      %v1070 = vunpack.c.l.b16 %v1014
      %v1071 = vunpack.c.l.b16 %v1015
      %v1072 = vunpack.c.l.b16 %v1016
      %v1073 = vunpack.c.l.b16 %v1017
      %v1074 = vunpack.c.l.b16 %v1018
      %v1075 = vunpack.c.l.b16 %v1019
      %v1076 = vunpack.c.l.b16 %v1020
      %v1077 = vunpack.c.l.b16 %v1021
      %v1078 = vpack.c.b16 %v1063, %v1062
      %v1079 = vpack.c.b16 %v1065, %v1064
      %v1080 = vpack.c.b16 %v1067, %v1066
      %v1081 = vpack.c.b16 %v1069, %v1068
      %v1082 = vpack.c.b16 %v1071, %v1070
      %v1083 = vpack.c.b16 %v1073, %v1072
      %v1084 = vpack.c.b16 %v1075, %v1074
      %v1085 = vpack.c.b16 %v1077, %v1076
      %1094 = vmatprep.subr.bf16.mxu0 0
      %1095 = vmatpush1.bf16.msra.mxu0 %v1078
      %1096 = vmatprep.subr.bf16.mxu0 0
      %1097 = vmatpush1.bf16.msra.mxu0 %v1079
      %1098 = vmatprep.subr.bf16.mxu0 0
      %1099 = vmatpush1.bf16.msra.mxu0 %v1080
      %1100 = vmatprep.subr.bf16.mxu0 0
      %1101 = vmatpush1.bf16.msra.mxu0 %v1081
      %1102 = vmatprep.subr.bf16.mxu0 0
      %1103 = vmatpush1.bf16.msra.mxu0 %v1082
      %1104 = vmatprep.subr.bf16.mxu0 0
      %1105 = vmatpush1.bf16.msra.mxu0 %v1083
      %1106 = vmatprep.subr.bf16.mxu0 0
      %1107 = vmatpush1.bf16.msra.mxu0 %v1084
      %1108 = vmatprep.subr.bf16.mxu0 0
      %1109 = vmatpush1.bf16.msra.mxu0 %v1085
      %1110 = vmatprep.subr.bf16.mxu0 0
      %1111 = vmatpush1.bf16.msra.mxu0 0
      %1112 = vmatprep.subr.bf16.mxu0 0
      %1113 = vmatpush1.bf16.msra.mxu0 0
      %1114 = vmatprep.subr.bf16.mxu0 0
      %1115 = vmatpush1.bf16.msra.mxu0 0
      %1116 = vmatprep.subr.bf16.mxu0 0
      %1117 = vmatpush1.bf16.msra.mxu0 0
      %1118 = vmatprep.subr.bf16.mxu0 0
      %1119 = vmatpush1.bf16.msra.mxu0 0
      %1120 = vmatprep.subr.bf16.mxu0 0
      %1121 = vmatpush1.bf16.msra.mxu0 0
      %1122 = vmatprep.subr.bf16.mxu0 0
      %1123 = vmatpush1.bf16.msra.mxu0 0
      %1124 = vmatprep.subr.bf16.mxu0 0
      %1125 = vmatpush1.bf16.msra.mxu0 0
      %1126 = vmatprep.mubr.bf16.mxu0 0
      %1127 = vmatmul.mubr.bf16.gmra.mrb[0].mxu0 %v1038
      %v1128 = vpop.f32.mrb[0].mxu0
      %v1129 = vadd.f32 0.0, %v1128
      %v1130 = vpop.f32.mrb[0].mxu0
      %v1131 = vpop.f32.mrb[0].mxu0
      %v1132 = vadd.f32 0.0, %v1131
      %v1133 = vpop.f32.mrb[0].mxu0
      %1134 = vmatprep.mubr.bf16.mxu0 0
      %1135 = vmatmul.mubr.bf16.gmra.mrb[0].mxu0 %v1039
      %v1136 = vpop.f32.mrb[0].mxu0
      %v1137 = vadd.f32 0.0, %v1136
      %v1138 = vpop.f32.mrb[0].mxu0
      %v1139 = vpop.f32.mrb[0].mxu0
      %v1140 = vadd.f32 0.0, %v1139
      %v1141 = vpop.f32.mrb[0].mxu0
      %1142 = vmatprep.mubr.bf16.mxu0 0
      %1143 = vmatmul.mubr.bf16.gmra.mrb[0].mxu0 %v1040
      %v1144 = vpop.f32.mrb[0].mxu0
      %v1145 = vadd.f32 0.0, %v1144
      %v1146 = vpop.f32.mrb[0].mxu0
      %v1147 = vpop.f32.mrb[0].mxu0
      %v1148 = vadd.f32 0.0, %v1147
      %v1149 = vpop.f32.mrb[0].mxu0
      %1150 = vmatprep.mubr.bf16.mxu0 0
      %1151 = vmatmul.mubr.bf16.gmra.mrb[0].mxu0 %v1041
      %v1152 = vpop.f32.mrb[0].mxu0
      %v1153 = vadd.f32 0.0, %v1152
      %v1154 = vpop.f32.mrb[0].mxu0
      %v1155 = vpop.f32.mrb[0].mxu0
      %v1156 = vadd.f32 0.0, %v1155
      %v1157 = vpop.f32.mrb[0].mxu0
      %1158 = vdwg.mxu0
      %v1159 = vadd.f32 %v988, %v1129
      %v1160 = vadd.f32 %v989, %v1132
      %v1161 = vadd.f32 %v990, %v1137
      %v1162 = vadd.f32 %v991, %v1140
      %v1163 = vadd.f32 %v992, %v1145
      %v1164 = vadd.f32 %v993, %v1148
      %v1165 = vadd.f32 %v994, %v1153
      %v1166 = vadd.f32 %v995, %v1156
      %v1167 = vld [vmem:[%s825] sm:$0xf]
      %v1168 = vld [vmem:[%s825 + $0x4] sm:$0x1]
      %v1169 = vld [vmem:[%s825 + $0x8] sm:$0xf]
      %v1170 = vld [vmem:[%s825 + $0xc] sm:$0x1]
      %v1171 = vld [vmem:[%s825 + $0x10] sm:$0xf]
      %v1172 = vld [vmem:[%s825 + $0x14] sm:$0x1]
      %v1173 = vld [vmem:[%s825 + $0x18] sm:$0xf]
      %v1174 = vld [vmem:[%s825 + $0x1c] sm:$0x1]
      %v1175 = vld [vmem:[%s825 + $0x20] sm:$0xf]
      %v1176 = vld [vmem:[%s825 + $0x24] sm:$0x1]
      %v1177 = vld [vmem:[%s825 + $0x28] sm:$0xf]
      %v1178 = vld [vmem:[%s825 + $0x2c] sm:$0x1]
      %v1179 = vld [vmem:[%s825 + $0x30] sm:$0xf]
      %v1180 = vld [vmem:[%s825 + $0x34] sm:$0x1]
      %v1181 = vld [vmem:[%s825 + $0x38] sm:$0xf]
      %v1182 = vld [vmem:[%s825 + $0x3c] sm:$0x1]
      %v1184 = vshrl.u32 %v1167, 16
      %v1186 = vrot.slane %v1184, 4
      %v1187 = vshll.u32 %v1167, 16
      %v1189 = vrot.slane %v1187, 5
      %v1190 = vor.u32 %v1186, %v1189
      %v1191 = vrot.slane %v1190, 4
      %v1193 = vshll.u32 %v1168, 16
      %v1195 = vrot.slane %v1193, 5
      %v1196 = vsel %vm558, %v1191, %v1195
      %v1198 = vshrl.u32 %v1169, 16
      %v1200 = vrot.slane %v1198, 4
      %v1201 = vshll.u32 %v1169, 16
      %v1203 = vrot.slane %v1201, 5
      %v1204 = vor.u32 %v1200, %v1203
      %v1205 = vrot.slane %v1204, 4
      %v1207 = vshll.u32 %v1170, 16
      %v1209 = vrot.slane %v1207, 5
      %v1210 = vsel %vm558, %v1205, %v1209
      %v1212 = vshrl.u32 %v1171, 16
      %v1214 = vrot.slane %v1212, 4
      %v1215 = vshll.u32 %v1171, 16
      %v1217 = vrot.slane %v1215, 5
      %v1218 = vor.u32 %v1214, %v1217
      %v1219 = vrot.slane %v1218, 4
      %v1221 = vshll.u32 %v1172, 16
      %v1223 = vrot.slane %v1221, 5
      %v1224 = vsel %vm558, %v1219, %v1223
      %v1226 = vshrl.u32 %v1173, 16
      %v1228 = vrot.slane %v1226, 4
      %v1229 = vshll.u32 %v1173, 16
      %v1231 = vrot.slane %v1229, 5
      %v1232 = vor.u32 %v1228, %v1231
      %v1233 = vrot.slane %v1232, 4
      %v1235 = vshll.u32 %v1174, 16
      %v1237 = vrot.slane %v1235, 5
      %v1238 = vsel %vm558, %v1233, %v1237
      %v1240 = vshrl.u32 %v1175, 16
      %v1242 = vrot.slane %v1240, 4
      %v1243 = vshll.u32 %v1175, 16
      %v1245 = vrot.slane %v1243, 5
      %v1246 = vor.u32 %v1242, %v1245
      %v1247 = vrot.slane %v1246, 4
      %v1249 = vshll.u32 %v1176, 16
      %v1251 = vrot.slane %v1249, 5
      %v1252 = vsel %vm558, %v1247, %v1251
      %v1254 = vshrl.u32 %v1177, 16
      %v1256 = vrot.slane %v1254, 4
      %v1257 = vshll.u32 %v1177, 16
      %v1259 = vrot.slane %v1257, 5
      %v1260 = vor.u32 %v1256, %v1259
      %v1261 = vrot.slane %v1260, 4
      %v1263 = vshll.u32 %v1178, 16
      %v1265 = vrot.slane %v1263, 5
      %v1266 = vsel %vm558, %v1261, %v1265
      %v1268 = vshrl.u32 %v1179, 16
      %v1270 = vrot.slane %v1268, 4
      %v1271 = vshll.u32 %v1179, 16
      %v1273 = vrot.slane %v1271, 5
      %v1274 = vor.u32 %v1270, %v1273
      %v1275 = vrot.slane %v1274, 4
      %v1277 = vshll.u32 %v1180, 16
      %v1279 = vrot.slane %v1277, 5
      %v1280 = vsel %vm558, %v1275, %v1279
      %v1282 = vshrl.u32 %v1181, 16
      %v1284 = vrot.slane %v1282, 4
      %v1285 = vshll.u32 %v1181, 16
      %v1287 = vrot.slane %v1285, 5
      %v1288 = vor.u32 %v1284, %v1287
      %v1289 = vrot.slane %v1288, 4
      %v1291 = vshll.u32 %v1182, 16
      %v1293 = vrot.slane %v1291, 5
      %v1294 = vsel %vm558, %v1289, %v1293
      %s1295 = scalar_lea.vmem %s1, 320
      %v1296 = vld [vmem:[%s1295] sm:$0xf]
      %v1297 = vld [vmem:[%s1295 + $0x4] sm:$0xf]
      %v1298 = vld [vmem:[%s1295 + $0x8] sm:$0xf]
      %v1299 = vld [vmem:[%s1295 + $0xc] sm:$0xf]
      %v1300 = vld [vmem:[%s1295 + $0x10] sm:$0xf]
      %v1301 = vld [vmem:[%s1295 + $0x14] sm:$0xf]
      %v1302 = vld [vmem:[%s1295 + $0x18] sm:$0xf]
      %v1303 = vld [vmem:[%s1295 + $0x1c] sm:$0xf]
      %v1304 = vld [vmem:[%s1295 + $0x20] sm:$0xf]
      %v1305 = vld [vmem:[%s1295 + $0x24] sm:$0xf]
      %v1306 = vld [vmem:[%s1295 + $0x28] sm:$0xf]
      %v1307 = vld [vmem:[%s1295 + $0x2c] sm:$0xf]
      %v1308 = vld [vmem:[%s1295 + $0x30] sm:$0xf]
      %v1309 = vld [vmem:[%s1295 + $0x34] sm:$0xf]
      %v1310 = vld [vmem:[%s1295 + $0x38] sm:$0xf]
      %v1311 = vld [vmem:[%s1295 + $0x3c] sm:$0xf]
      %v1312 = vunpack.c.l.b16 %v1196
      %v1313 = vunpack.c.l.b16 %v1210
      %v1314 = vunpack.c.l.b16 %v1224
      %v1315 = vunpack.c.l.b16 %v1238
      %v1316 = vunpack.c.l.b16 %v1252
      %v1317 = vunpack.c.l.b16 %v1266
      %v1318 = vunpack.c.l.b16 %v1280
      %v1319 = vunpack.c.l.b16 %v1294
      %v1320 = vpack.c.b16 %v1313, %v1312
      %v1321 = vpack.c.b16 %v1315, %v1314
      %v1322 = vpack.c.b16 %v1317, %v1316
      %v1323 = vpack.c.b16 %v1319, %v1318
      %v1344 = vunpack.c.l.b16 %v1296
      %v1345 = vunpack.c.l.b16 %v1297
      %v1346 = vunpack.c.l.b16 %v1298
      %v1347 = vunpack.c.l.b16 %v1299
      %v1348 = vunpack.c.l.b16 %v1300
      %v1349 = vunpack.c.l.b16 %v1301
      %v1350 = vunpack.c.l.b16 %v1302
      %v1351 = vunpack.c.l.b16 %v1303
      %v1352 = vunpack.c.l.b16 %v1304
      %v1353 = vunpack.c.l.b16 %v1305
      %v1354 = vunpack.c.l.b16 %v1306
      %v1355 = vunpack.c.l.b16 %v1307
      %v1356 = vunpack.c.l.b16 %v1308
      %v1357 = vunpack.c.l.b16 %v1309
      %v1358 = vunpack.c.l.b16 %v1310
      %v1359 = vunpack.c.l.b16 %v1311
      %v1360 = vpack.c.b16 %v1345, %v1344
      %v1361 = vpack.c.b16 %v1347, %v1346
      %v1362 = vpack.c.b16 %v1349, %v1348
      %v1363 = vpack.c.b16 %v1351, %v1350
      %v1364 = vpack.c.b16 %v1353, %v1352
      %v1365 = vpack.c.b16 %v1355, %v1354
      %v1366 = vpack.c.b16 %v1357, %v1356
      %v1367 = vpack.c.b16 %v1359, %v1358
      %1376 = vmatprep.subr.bf16.mxu0 0
      %1377 = vmatpush1.bf16.msra.mxu0 %v1360
      %1378 = vmatprep.subr.bf16.mxu0 0
      %1379 = vmatpush1.bf16.msra.mxu0 %v1361
      %1380 = vmatprep.subr.bf16.mxu0 0
      %1381 = vmatpush1.bf16.msra.mxu0 %v1362
      %1382 = vmatprep.subr.bf16.mxu0 0
      %1383 = vmatpush1.bf16.msra.mxu0 %v1363
      %1384 = vmatprep.subr.bf16.mxu0 0
      %1385 = vmatpush1.bf16.msra.mxu0 %v1364
      %1386 = vmatprep.subr.bf16.mxu0 0
      %1387 = vmatpush1.bf16.msra.mxu0 %v1365
      %1388 = vmatprep.subr.bf16.mxu0 0
      %1389 = vmatpush1.bf16.msra.mxu0 %v1366
      %1390 = vmatprep.subr.bf16.mxu0 0
      %1391 = vmatpush1.bf16.msra.mxu0 %v1367
      %1392 = vmatprep.subr.bf16.mxu0 0
      %1393 = vmatpush1.bf16.msra.mxu0 0
      %1394 = vmatprep.subr.bf16.mxu0 0
      %1395 = vmatpush1.bf16.msra.mxu0 0
      %1396 = vmatprep.subr.bf16.mxu0 0
      %1397 = vmatpush1.bf16.msra.mxu0 0
      %1398 = vmatprep.subr.bf16.mxu0 0
      %1399 = vmatpush1.bf16.msra.mxu0 0
      %1400 = vmatprep.subr.bf16.mxu0 0
      %1401 = vmatpush1.bf16.msra.mxu0 0
      %1402 = vmatprep.subr.bf16.mxu0 0
      %1403 = vmatpush1.bf16.msra.mxu0 0
      %1404 = vmatprep.subr.bf16.mxu0 0
      %1405 = vmatpush1.bf16.msra.mxu0 0
      %1406 = vmatprep.subr.bf16.mxu0 0
      %1407 = vmatpush1.bf16.msra.mxu0 0
      %1408 = vmatprep.mubr.bf16.mxu0 0
      %1409 = vmatmul.mubr.bf16.gmra.mrb[0].mxu0 %v1320
      %v1410 = vpop.f32.mrb[0].mxu0
      %v1411 = vadd.f32 0.0, %v1410
      %v1412 = vpop.f32.mrb[0].mxu0
      %v1413 = vpop.f32.mrb[0].mxu0
      %v1414 = vadd.f32 0.0, %v1413
      %v1415 = vpop.f32.mrb[0].mxu0
      %1416 = vmatprep.mubr.bf16.mxu0 0
      %1417 = vmatmul.mubr.bf16.gmra.mrb[0].mxu0 %v1321
      %v1418 = vpop.f32.mrb[0].mxu0
      %v1419 = vadd.f32 0.0, %v1418
      %v1420 = vpop.f32.mrb[0].mxu0
      %v1421 = vpop.f32.mrb[0].mxu0
      %v1422 = vadd.f32 0.0, %v1421
      %v1423 = vpop.f32.mrb[0].mxu0
      %1424 = vmatprep.mubr.bf16.mxu0 0
      %1425 = vmatmul.mubr.bf16.gmra.mrb[0].mxu0 %v1322
      %v1426 = vpop.f32.mrb[0].mxu0
      %v1427 = vadd.f32 0.0, %v1426
      %v1428 = vpop.f32.mrb[0].mxu0
      %v1429 = vpop.f32.mrb[0].mxu0
      %v1430 = vadd.f32 0.0, %v1429
      %v1431 = vpop.f32.mrb[0].mxu0
      %1432 = vmatprep.mubr.bf16.mxu0 0
      %1433 = vmatmul.mubr.bf16.gmra.mrb[0].mxu0 %v1323
      %v1434 = vpop.f32.mrb[0].mxu0
      %v1435 = vadd.f32 0.0, %v1434
      %v1436 = vpop.f32.mrb[0].mxu0
      %v1437 = vpop.f32.mrb[0].mxu0
      %v1438 = vadd.f32 0.0, %v1437
      %v1439 = vpop.f32.mrb[0].mxu0
      %1440 = vdwg.mxu0
      %v1441 = vadd.f32 %v1159, %v1411
      %v1442 = vadd.f32 %v1160, %v1414
      %v1443 = vadd.f32 %v1161, %v1419
      %v1444 = vadd.f32 %v1162, %v1422
      %v1445 = vadd.f32 %v1163, %v1427
      %v1446 = vadd.f32 %v1164, %v1430
      %v1447 = vadd.f32 %v1165, %v1435
      %v1448 = vadd.f32 %v1166, %v1438
      %s1449 = scalar_lea.vmem %s203, 8
      %v1450 = vld [vmem:[%s1449] sm:$0xf]
      %v1451 = vld [vmem:[%s1449 + $0x8] sm:$0xf]
      %v1452 = vld [vmem:[%s1449 + $0x10] sm:$0xf]
      %v1453 = vld [vmem:[%s1449 + $0x18] sm:$0xf]
      %v1454 = vld [vmem:[%s1449 + $0x20] sm:$0xf]
      %v1455 = vld [vmem:[%s1449 + $0x28] sm:$0xf]
      %v1456 = vld [vmem:[%s1449 + $0x30] sm:$0xf]
      %v1457 = vld [vmem:[%s1449 + $0x38] sm:$0xf]
      %s1458 = scalar_lea.vmem %s1, 384
      %v1459 = vld [vmem:[%s1458] sm:$0xf]
      %v1460 = vld [vmem:[%s1458 + $0x4] sm:$0xf]
      %v1461 = vld [vmem:[%s1458 + $0x8] sm:$0xf]
      %v1462 = vld [vmem:[%s1458 + $0xc] sm:$0xf]
      %v1463 = vld [vmem:[%s1458 + $0x10] sm:$0xf]
      %v1464 = vld [vmem:[%s1458 + $0x14] sm:$0xf]
      %v1465 = vld [vmem:[%s1458 + $0x18] sm:$0xf]
      %v1466 = vld [vmem:[%s1458 + $0x1c] sm:$0xf]
      %v1467 = vld [vmem:[%s1458 + $0x20] sm:$0xf]
      %v1468 = vld [vmem:[%s1458 + $0x24] sm:$0xf]
      %v1469 = vld [vmem:[%s1458 + $0x28] sm:$0xf]
      %v1470 = vld [vmem:[%s1458 + $0x2c] sm:$0xf]
      %v1471 = vld [vmem:[%s1458 + $0x30] sm:$0xf]
      %v1472 = vld [vmem:[%s1458 + $0x34] sm:$0xf]
      %v1473 = vld [vmem:[%s1458 + $0x38] sm:$0xf]
      %v1474 = vld [vmem:[%s1458 + $0x3c] sm:$0xf]
      %v1483 = vunpack.c.l.b16 %v1450
      %v1484 = vunpack.c.l.b16 %v1451
      %v1485 = vunpack.c.l.b16 %v1452
      %v1486 = vunpack.c.l.b16 %v1453
      %v1487 = vunpack.c.l.b16 %v1454
      %v1488 = vunpack.c.l.b16 %v1455
      %v1489 = vunpack.c.l.b16 %v1456
      %v1490 = vunpack.c.l.b16 %v1457
      %v1491 = vpack.c.b16 %v1484, %v1483
      %v1492 = vpack.c.b16 %v1486, %v1485
      %v1493 = vpack.c.b16 %v1488, %v1487
      %v1494 = vpack.c.b16 %v1490, %v1489
      %v1515 = vunpack.c.l.b16 %v1459
      %v1516 = vunpack.c.l.b16 %v1460
      %v1517 = vunpack.c.l.b16 %v1461
      %v1518 = vunpack.c.l.b16 %v1462
      %v1519 = vunpack.c.l.b16 %v1463
      %v1520 = vunpack.c.l.b16 %v1464
      %v1521 = vunpack.c.l.b16 %v1465
      %v1522 = vunpack.c.l.b16 %v1466
      %v1523 = vunpack.c.l.b16 %v1467
      %v1524 = vunpack.c.l.b16 %v1468
      %v1525 = vunpack.c.l.b16 %v1469
      %v1526 = vunpack.c.l.b16 %v1470
      %v1527 = vunpack.c.l.b16 %v1471
      %v1528 = vunpack.c.l.b16 %v1472
      %v1529 = vunpack.c.l.b16 %v1473
      %v1530 = vunpack.c.l.b16 %v1474
      %v1531 = vpack.c.b16 %v1516, %v1515
      %v1532 = vpack.c.b16 %v1518, %v1517
      %v1533 = vpack.c.b16 %v1520, %v1519
      %v1534 = vpack.c.b16 %v1522, %v1521
      %v1535 = vpack.c.b16 %v1524, %v1523
      %v1536 = vpack.c.b16 %v1526, %v1525
      %v1537 = vpack.c.b16 %v1528, %v1527
      %v1538 = vpack.c.b16 %v1530, %v1529
      %1547 = vmatprep.subr.bf16.mxu0 0
      %1548 = vmatpush1.bf16.msra.mxu0 %v1531
      %1549 = vmatprep.subr.bf16.mxu0 0
      %1550 = vmatpush1.bf16.msra.mxu0 %v1532
      %1551 = vmatprep.subr.bf16.mxu0 0
      %1552 = vmatpush1.bf16.msra.mxu0 %v1533
      %1553 = vmatprep.subr.bf16.mxu0 0
      %1554 = vmatpush1.bf16.msra.mxu0 %v1534
      %1555 = vmatprep.subr.bf16.mxu0 0
      %1556 = vmatpush1.bf16.msra.mxu0 %v1535
      %1557 = vmatprep.subr.bf16.mxu0 0
      %1558 = vmatpush1.bf16.msra.mxu0 %v1536
      %1559 = vmatprep.subr.bf16.mxu0 0
      %1560 = vmatpush1.bf16.msra.mxu0 %v1537
      %1561 = vmatprep.subr.bf16.mxu0 0
      %1562 = vmatpush1.bf16.msra.mxu0 %v1538
      %1563 = vmatprep.subr.bf16.mxu0 0
      %1564 = vmatpush1.bf16.msra.mxu0 0
      %1565 = vmatprep.subr.bf16.mxu0 0
      %1566 = vmatpush1.bf16.msra.mxu0 0
      %1567 = vmatprep.subr.bf16.mxu0 0
      %1568 = vmatpush1.bf16.msra.mxu0 0
      %1569 = vmatprep.subr.bf16.mxu0 0
      %1570 = vmatpush1.bf16.msra.mxu0 0
      %1571 = vmatprep.subr.bf16.mxu0 0
      %1572 = vmatpush1.bf16.msra.mxu0 0
      %1573 = vmatprep.subr.bf16.mxu0 0
      %1574 = vmatpush1.bf16.msra.mxu0 0
      %1575 = vmatprep.subr.bf16.mxu0 0
      %1576 = vmatpush1.bf16.msra.mxu0 0
      %1577 = vmatprep.subr.bf16.mxu0 0
      %1578 = vmatpush1.bf16.msra.mxu0 0
      %1579 = vmatprep.mubr.bf16.mxu0 0
      %1580 = vmatmul.mubr.bf16.gmra.mrb[0].mxu0 %v1491
      %v1581 = vpop.f32.mrb[0].mxu0
      %v1582 = vadd.f32 0.0, %v1581
      %v1583 = vpop.f32.mrb[0].mxu0
      %v1584 = vpop.f32.mrb[0].mxu0
      %v1585 = vadd.f32 0.0, %v1584
      %v1586 = vpop.f32.mrb[0].mxu0
      %1587 = vmatprep.mubr.bf16.mxu0 0
      %1588 = vmatmul.mubr.bf16.gmra.mrb[0].mxu0 %v1492
      %v1589 = vpop.f32.mrb[0].mxu0
      %v1590 = vadd.f32 0.0, %v1589
      %v1591 = vpop.f32.mrb[0].mxu0
      %v1592 = vpop.f32.mrb[0].mxu0
      %v1593 = vadd.f32 0.0, %v1592
      %v1594 = vpop.f32.mrb[0].mxu0
      %1595 = vmatprep.mubr.bf16.mxu0 0
      %1596 = vmatmul.mubr.bf16.gmra.mrb[0].mxu0 %v1493
      %v1597 = vpop.f32.mrb[0].mxu0
      %v1598 = vadd.f32 0.0, %v1597
      %v1599 = vpop.f32.mrb[0].mxu0
      %v1600 = vpop.f32.mrb[0].mxu0
      %v1601 = vadd.f32 0.0, %v1600
      %v1602 = vpop.f32.mrb[0].mxu0
      %1603 = vmatprep.mubr.bf16.mxu0 0
      %1604 = vmatmul.mubr.bf16.gmra.mrb[0].mxu0 %v1494
      %v1605 = vpop.f32.mrb[0].mxu0
      %v1606 = vadd.f32 0.0, %v1605
      %v1607 = vpop.f32.mrb[0].mxu0
      %v1608 = vpop.f32.mrb[0].mxu0
      %v1609 = vadd.f32 0.0, %v1608
      %v1610 = vpop.f32.mrb[0].mxu0
      %1611 = vdwg.mxu0
      %v1612 = vadd.f32 %v1441, %v1582
      %v1613 = vadd.f32 %v1442, %v1585
      %v1614 = vadd.f32 %v1443, %v1590
      %v1615 = vadd.f32 %v1444, %v1593
      %v1616 = vadd.f32 %v1445, %v1598
      %v1617 = vadd.f32 %v1446, %v1601
      %v1618 = vadd.f32 %v1447, %v1606
      %v1619 = vadd.f32 %v1448, %v1609
      %s1620 = scalar_lea.vmem %s203, 80
      %v1621 = vld [vmem:[%s1620] sm:$0xf]
      %v1622 = vld [vmem:[%s1620 + $0x8] sm:$0xf]
      %v1623 = vld [vmem:[%s1620 + $0x10] sm:$0xf]
      %v1624 = vld [vmem:[%s1620 + $0x18] sm:$0xf]
      %v1625 = vld [vmem:[%s1620 + $0x20] sm:$0xf]
      %v1626 = vld [vmem:[%s1620 + $0x28] sm:$0xf]
      %v1627 = vld [vmem:[%s1620 + $0x30] sm:$0xf]
      %v1628 = vld [vmem:[%s1620 + $0x38] sm:$0xf]
      %s1629 = scalar_lea.vmem %s1, 448
      %v1630 = vld [vmem:[%s1629] sm:$0xf]
      %v1631 = vld [vmem:[%s1629 + $0x4] sm:$0xf]
      %v1632 = vld [vmem:[%s1629 + $0x8] sm:$0xf]
      %v1633 = vld [vmem:[%s1629 + $0xc] sm:$0xf]
      %v1634 = vld [vmem:[%s1629 + $0x10] sm:$0xf]
      %v1635 = vld [vmem:[%s1629 + $0x14] sm:$0xf]
      %v1636 = vld [vmem:[%s1629 + $0x18] sm:$0xf]
      %v1637 = vld [vmem:[%s1629 + $0x1c] sm:$0xf]
      %v1638 = vld [vmem:[%s1629 + $0x20] sm:$0xf]
      %v1639 = vld [vmem:[%s1629 + $0x24] sm:$0xf]
      %v1640 = vld [vmem:[%s1629 + $0x28] sm:$0xf]
      %v1641 = vld [vmem:[%s1629 + $0x2c] sm:$0xf]
      %v1642 = vld [vmem:[%s1629 + $0x30] sm:$0xf]
      %v1643 = vld [vmem:[%s1629 + $0x34] sm:$0xf]
      %v1644 = vld [vmem:[%s1629 + $0x38] sm:$0xf]
      %v1645 = vld [vmem:[%s1629 + $0x3c] sm:$0xf]
      %v1654 = vunpack.c.l.b16 %v1621
      %v1655 = vunpack.c.l.b16 %v1622
      %v1656 = vunpack.c.l.b16 %v1623
      %v1657 = vunpack.c.l.b16 %v1624
      %v1658 = vunpack.c.l.b16 %v1625
      %v1659 = vunpack.c.l.b16 %v1626
      %v1660 = vunpack.c.l.b16 %v1627
      %v1661 = vunpack.c.l.b16 %v1628
      %v1662 = vpack.c.b16 %v1655, %v1654
      %v1663 = vpack.c.b16 %v1657, %v1656
      %v1664 = vpack.c.b16 %v1659, %v1658
      %v1665 = vpack.c.b16 %v1661, %v1660
      %v1686 = vunpack.c.l.b16 %v1630
      %v1687 = vunpack.c.l.b16 %v1631
      %v1688 = vunpack.c.l.b16 %v1632
      %v1689 = vunpack.c.l.b16 %v1633
      %v1690 = vunpack.c.l.b16 %v1634
      %v1691 = vunpack.c.l.b16 %v1635
      %v1692 = vunpack.c.l.b16 %v1636
      %v1693 = vunpack.c.l.b16 %v1637
      %v1694 = vunpack.c.l.b16 %v1638
      %v1695 = vunpack.c.l.b16 %v1639
      %v1696 = vunpack.c.l.b16 %v1640
      %v1697 = vunpack.c.l.b16 %v1641
      %v1698 = vunpack.c.l.b16 %v1642
      %v1699 = vunpack.c.l.b16 %v1643
      %v1700 = vunpack.c.l.b16 %v1644
      %v1701 = vunpack.c.l.b16 %v1645
      %v1702 = vpack.c.b16 %v1687, %v1686
      %v1703 = vpack.c.b16 %v1689, %v1688
      %v1704 = vpack.c.b16 %v1691, %v1690
      %v1705 = vpack.c.b16 %v1693, %v1692
      %v1706 = vpack.c.b16 %v1695, %v1694
      %v1707 = vpack.c.b16 %v1697, %v1696
      %v1708 = vpack.c.b16 %v1699, %v1698
      %v1709 = vpack.c.b16 %v1701, %v1700
      %1718 = vmatprep.subr.bf16.mxu0 0
      %1719 = vmatpush1.bf16.msra.mxu0 %v1702
      %1720 = vmatprep.subr.bf16.mxu0 0
      %1721 = vmatpush1.bf16.msra.mxu0 %v1703
      %1722 = vmatprep.subr.bf16.mxu0 0
      %1723 = vmatpush1.bf16.msra.mxu0 %v1704
      %1724 = vmatprep.subr.bf16.mxu0 0
      %1725 = vmatpush1.bf16.msra.mxu0 %v1705
      %1726 = vmatprep.subr.bf16.mxu0 0
      %1727 = vmatpush1.bf16.msra.mxu0 %v1706
      %1728 = vmatprep.subr.bf16.mxu0 0
      %1729 = vmatpush1.bf16.msra.mxu0 %v1707
      %1730 = vmatprep.subr.bf16.mxu0 0
      %1731 = vmatpush1.bf16.msra.mxu0 %v1708
      %1732 = vmatprep.subr.bf16.mxu0 0
      %1733 = vmatpush1.bf16.msra.mxu0 %v1709
      %1734 = vmatprep.subr.bf16.mxu0 0
      %1735 = vmatpush1.bf16.msra.mxu0 0
      %1736 = vmatprep.subr.bf16.mxu0 0
      %1737 = vmatpush1.bf16.msra.mxu0 0
      %1738 = vmatprep.subr.bf16.mxu0 0
      %1739 = vmatpush1.bf16.msra.mxu0 0
      %1740 = vmatprep.subr.bf16.mxu0 0
      %1741 = vmatpush1.bf16.msra.mxu0 0
      %1742 = vmatprep.subr.bf16.mxu0 0
      %1743 = vmatpush1.bf16.msra.mxu0 0
      %1744 = vmatprep.subr.bf16.mxu0 0
      %1745 = vmatpush1.bf16.msra.mxu0 0
      %1746 = vmatprep.subr.bf16.mxu0 0
      %1747 = vmatpush1.bf16.msra.mxu0 0
      %1748 = vmatprep.subr.bf16.mxu0 0
      %1749 = vmatpush1.bf16.msra.mxu0 0
      %1750 = vmatprep.mubr.bf16.mxu0 0
      %1751 = vmatmul.mubr.bf16.gmra.mrb[0].mxu0 %v1662
      %v1752 = vpop.f32.mrb[0].mxu0
      %v1753 = vadd.f32 0.0, %v1752
      %v1754 = vpop.f32.mrb[0].mxu0
      %v1755 = vpop.f32.mrb[0].mxu0
      %v1756 = vadd.f32 0.0, %v1755
      %v1757 = vpop.f32.mrb[0].mxu0
      %1758 = vmatprep.mubr.bf16.mxu0 0
      %1759 = vmatmul.mubr.bf16.gmra.mrb[0].mxu0 %v1663
      %v1760 = vpop.f32.mrb[0].mxu0
      %v1761 = vadd.f32 0.0, %v1760
      %v1762 = vpop.f32.mrb[0].mxu0
      %v1763 = vpop.f32.mrb[0].mxu0
      %v1764 = vadd.f32 0.0, %v1763
      %v1765 = vpop.f32.mrb[0].mxu0
      %1766 = vmatprep.mubr.bf16.mxu0 0
      %1767 = vmatmul.mubr.bf16.gmra.mrb[0].mxu0 %v1664
      %v1768 = vpop.f32.mrb[0].mxu0
      %v1769 = vadd.f32 0.0, %v1768
      %v1770 = vpop.f32.mrb[0].mxu0
      %v1771 = vpop.f32.mrb[0].mxu0
      %v1772 = vadd.f32 0.0, %v1771
      %v1773 = vpop.f32.mrb[0].mxu0
      %1774 = vmatprep.mubr.bf16.mxu0 0
      %1775 = vmatmul.mubr.bf16.gmra.mrb[0].mxu0 %v1665
      %v1776 = vpop.f32.mrb[0].mxu0
      %v1777 = vadd.f32 0.0, %v1776
      %v1778 = vpop.f32.mrb[0].mxu0
      %v1779 = vpop.f32.mrb[0].mxu0
      %v1780 = vadd.f32 0.0, %v1779
      %v1781 = vpop.f32.mrb[0].mxu0
      %1782 = vdwg.mxu0
      %v1783 = vadd.f32 %v1612, %v1753
      %v1784 = vadd.f32 %v1613, %v1756
      %v1785 = vadd.f32 %v1614, %v1761
      %v1786 = vadd.f32 %v1615, %v1764
      %v1787 = vadd.f32 %v1616, %v1769
      %v1788 = vadd.f32 %v1617, %v1772
      %v1789 = vadd.f32 %v1618, %v1777
      %v1790 = vadd.f32 %v1619, %v1780
      %v1791 = vld [vmem:[%s1449] sm:$0xf]
      %v1792 = vld [vmem:[%s1449 + $0x4] sm:$0x1]
      %v1793 = vld [vmem:[%s1449 + $0x8] sm:$0xf]
      %v1794 = vld [vmem:[%s1449 + $0xc] sm:$0x1]
      %v1795 = vld [vmem:[%s1449 + $0x10] sm:$0xf]
      %v1796 = vld [vmem:[%s1449 + $0x14] sm:$0x1]
      %v1797 = vld [vmem:[%s1449 + $0x18] sm:$0xf]
      %v1798 = vld [vmem:[%s1449 + $0x1c] sm:$0x1]
      %v1799 = vld [vmem:[%s1449 + $0x20] sm:$0xf]
      %v1800 = vld [vmem:[%s1449 + $0x24] sm:$0x1]
      %v1801 = vld [vmem:[%s1449 + $0x28] sm:$0xf]
      %v1802 = vld [vmem:[%s1449 + $0x2c] sm:$0x1]
      %v1803 = vld [vmem:[%s1449 + $0x30] sm:$0xf]
      %v1804 = vld [vmem:[%s1449 + $0x34] sm:$0x1]
      %v1805 = vld [vmem:[%s1449 + $0x38] sm:$0xf]
      %v1806 = vld [vmem:[%s1449 + $0x3c] sm:$0x1]
      %v1808 = vshrl.u32 %v1791, 16
      %v1810 = vrot.slane %v1808, 4
      %v1811 = vshll.u32 %v1791, 16
      %v1813 = vrot.slane %v1811, 5
      %v1814 = vor.u32 %v1810, %v1813
      %v1815 = vrot.slane %v1814, 4
      %v1817 = vshll.u32 %v1792, 16
      %v1819 = vrot.slane %v1817, 5
      %v1820 = vsel %vm558, %v1815, %v1819
      %v1822 = vshrl.u32 %v1793, 16
      %v1824 = vrot.slane %v1822, 4
      %v1825 = vshll.u32 %v1793, 16
      %v1827 = vrot.slane %v1825, 5
      %v1828 = vor.u32 %v1824, %v1827
      %v1829 = vrot.slane %v1828, 4
      %v1831 = vshll.u32 %v1794, 16
      %v1833 = vrot.slane %v1831, 5
      %v1834 = vsel %vm558, %v1829, %v1833
      %v1836 = vshrl.u32 %v1795, 16
      %v1838 = vrot.slane %v1836, 4
      %v1839 = vshll.u32 %v1795, 16
      %v1841 = vrot.slane %v1839, 5
      %v1842 = vor.u32 %v1838, %v1841
      %v1843 = vrot.slane %v1842, 4
      %v1845 = vshll.u32 %v1796, 16
      %v1847 = vrot.slane %v1845, 5
      %v1848 = vsel %vm558, %v1843, %v1847
      %v1850 = vshrl.u32 %v1797, 16
      %v1852 = vrot.slane %v1850, 4
      %v1853 = vshll.u32 %v1797, 16
      %v1855 = vrot.slane %v1853, 5
      %v1856 = vor.u32 %v1852, %v1855
      %v1857 = vrot.slane %v1856, 4
      %v1859 = vshll.u32 %v1798, 16
      %v1861 = vrot.slane %v1859, 5
      %v1862 = vsel %vm558, %v1857, %v1861
      %v1864 = vshrl.u32 %v1799, 16
      %v1866 = vrot.slane %v1864, 4
      %v1867 = vshll.u32 %v1799, 16
      %v1869 = vrot.slane %v1867, 5
      %v1870 = vor.u32 %v1866, %v1869
      %v1871 = vrot.slane %v1870, 4
      %v1873 = vshll.u32 %v1800, 16
      %v1875 = vrot.slane %v1873, 5
      %v1876 = vsel %vm558, %v1871, %v1875
      %v1878 = vshrl.u32 %v1801, 16
      %v1880 = vrot.slane %v1878, 4
      %v1881 = vshll.u32 %v1801, 16
      %v1883 = vrot.slane %v1881, 5
      %v1884 = vor.u32 %v1880, %v1883
      %v1885 = vrot.slane %v1884, 4
      %v1887 = vshll.u32 %v1802, 16
      %v1889 = vrot.slane %v1887, 5
      %v1890 = vsel %vm558, %v1885, %v1889
      %v1892 = vshrl.u32 %v1803, 16
      %v1894 = vrot.slane %v1892, 4
      %v1895 = vshll.u32 %v1803, 16
      %v1897 = vrot.slane %v1895, 5
      %v1898 = vor.u32 %v1894, %v1897
      %v1899 = vrot.slane %v1898, 4
      %v1901 = vshll.u32 %v1804, 16
      %v1903 = vrot.slane %v1901, 5
      %v1904 = vsel %vm558, %v1899, %v1903
      %v1906 = vshrl.u32 %v1805, 16
      %v1908 = vrot.slane %v1906, 4
      %v1909 = vshll.u32 %v1805, 16
      %v1911 = vrot.slane %v1909, 5
      %v1912 = vor.u32 %v1908, %v1911
      %v1913 = vrot.slane %v1912, 4
      %v1915 = vshll.u32 %v1806, 16
      %v1917 = vrot.slane %v1915, 5
      %v1918 = vsel %vm558, %v1913, %v1917
      %s1919 = scalar_lea.vmem %s1, 512
      %v1920 = vld [vmem:[%s1919] sm:$0xf]
      %v1921 = vld [vmem:[%s1919 + $0x4] sm:$0xf]
      %v1922 = vld [vmem:[%s1919 + $0x8] sm:$0xf]
      %v1923 = vld [vmem:[%s1919 + $0xc] sm:$0xf]
      %v1924 = vld [vmem:[%s1919 + $0x10] sm:$0xf]
      %v1925 = vld [vmem:[%s1919 + $0x14] sm:$0xf]
      %v1926 = vld [vmem:[%s1919 + $0x18] sm:$0xf]
      %v1927 = vld [vmem:[%s1919 + $0x1c] sm:$0xf]
      %v1928 = vld [vmem:[%s1919 + $0x20] sm:$0xf]
      %v1929 = vld [vmem:[%s1919 + $0x24] sm:$0xf]
      %v1930 = vld [vmem:[%s1919 + $0x28] sm:$0xf]
      %v1931 = vld [vmem:[%s1919 + $0x2c] sm:$0xf]
      %v1932 = vld [vmem:[%s1919 + $0x30] sm:$0xf]
      %v1933 = vld [vmem:[%s1919 + $0x34] sm:$0xf]
      %v1934 = vld [vmem:[%s1919 + $0x38] sm:$0xf]
      %v1935 = vld [vmem:[%s1919 + $0x3c] sm:$0xf]
      %v1936 = vunpack.c.l.b16 %v1820
      %v1937 = vunpack.c.l.b16 %v1834
      %v1938 = vunpack.c.l.b16 %v1848
      %v1939 = vunpack.c.l.b16 %v1862
      %v1940 = vunpack.c.l.b16 %v1876
      %v1941 = vunpack.c.l.b16 %v1890
      %v1942 = vunpack.c.l.b16 %v1904
      %v1943 = vunpack.c.l.b16 %v1918
      %v1944 = vpack.c.b16 %v1937, %v1936
      %v1945 = vpack.c.b16 %v1939, %v1938
      %v1946 = vpack.c.b16 %v1941, %v1940
      %v1947 = vpack.c.b16 %v1943, %v1942
      %v1968 = vunpack.c.l.b16 %v1920
      %v1969 = vunpack.c.l.b16 %v1921
      %v1970 = vunpack.c.l.b16 %v1922
      %v1971 = vunpack.c.l.b16 %v1923
      %v1972 = vunpack.c.l.b16 %v1924
      %v1973 = vunpack.c.l.b16 %v1925
      %v1974 = vunpack.c.l.b16 %v1926
      %v1975 = vunpack.c.l.b16 %v1927
      %v1976 = vunpack.c.l.b16 %v1928
      %v1977 = vunpack.c.l.b16 %v1929
      %v1978 = vunpack.c.l.b16 %v1930
      %v1979 = vunpack.c.l.b16 %v1931
      %v1980 = vunpack.c.l.b16 %v1932
      %v1981 = vunpack.c.l.b16 %v1933
      %v1982 = vunpack.c.l.b16 %v1934
      %v1983 = vunpack.c.l.b16 %v1935
      %v1984 = vpack.c.b16 %v1969, %v1968
      %v1985 = vpack.c.b16 %v1971, %v1970
      %v1986 = vpack.c.b16 %v1973, %v1972
      %v1987 = vpack.c.b16 %v1975, %v1974
      %v1988 = vpack.c.b16 %v1977, %v1976
      %v1989 = vpack.c.b16 %v1979, %v1978
      %v1990 = vpack.c.b16 %v1981, %v1980
      %v1991 = vpack.c.b16 %v1983, %v1982
      %2000 = vmatprep.subr.bf16.mxu0 0
      %2001 = vmatpush1.bf16.msra.mxu0 %v1984
      %2002 = vmatprep.subr.bf16.mxu0 0
      %2003 = vmatpush1.bf16.msra.mxu0 %v1985
      %2004 = vmatprep.subr.bf16.mxu0 0
      %2005 = vmatpush1.bf16.msra.mxu0 %v1986
      %2006 = vmatprep.subr.bf16.mxu0 0
      %2007 = vmatpush1.bf16.msra.mxu0 %v1987
      %2008 = vmatprep.subr.bf16.mxu0 0
      %2009 = vmatpush1.bf16.msra.mxu0 %v1988
      %2010 = vmatprep.subr.bf16.mxu0 0
      %2011 = vmatpush1.bf16.msra.mxu0 %v1989
      %2012 = vmatprep.subr.bf16.mxu0 0
      %2013 = vmatpush1.bf16.msra.mxu0 %v1990
      %2014 = vmatprep.subr.bf16.mxu0 0
      %2015 = vmatpush1.bf16.msra.mxu0 %v1991
      %2016 = vmatprep.subr.bf16.mxu0 0
      %2017 = vmatpush1.bf16.msra.mxu0 0
      %2018 = vmatprep.subr.bf16.mxu0 0
      %2019 = vmatpush1.bf16.msra.mxu0 0
      %2020 = vmatprep.subr.bf16.mxu0 0
      %2021 = vmatpush1.bf16.msra.mxu0 0
      %2022 = vmatprep.subr.bf16.mxu0 0
      %2023 = vmatpush1.bf16.msra.mxu0 0
      %2024 = vmatprep.subr.bf16.mxu0 0
      %2025 = vmatpush1.bf16.msra.mxu0 0
      %2026 = vmatprep.subr.bf16.mxu0 0
      %2027 = vmatpush1.bf16.msra.mxu0 0
      %2028 = vmatprep.subr.bf16.mxu0 0
      %2029 = vmatpush1.bf16.msra.mxu0 0
      %2030 = vmatprep.subr.bf16.mxu0 0
      %2031 = vmatpush1.bf16.msra.mxu0 0
      %2032 = vmatprep.mubr.bf16.mxu0 0
      %2033 = vmatmul.mubr.bf16.gmra.mrb[0].mxu0 %v1944
      %v2034 = vpop.f32.mrb[0].mxu0
      %v2035 = vadd.f32 0.0, %v2034
      %v2036 = vpop.f32.mrb[0].mxu0
      %v2037 = vpop.f32.mrb[0].mxu0
      %v2038 = vadd.f32 0.0, %v2037
      %v2039 = vpop.f32.mrb[0].mxu0
      %2040 = vmatprep.mubr.bf16.mxu0 0
      %2041 = vmatmul.mubr.bf16.gmra.mrb[0].mxu0 %v1945
      %v2042 = vpop.f32.mrb[0].mxu0
      %v2043 = vadd.f32 0.0, %v2042
      %v2044 = vpop.f32.mrb[0].mxu0
      %v2045 = vpop.f32.mrb[0].mxu0
      %v2046 = vadd.f32 0.0, %v2045
      %v2047 = vpop.f32.mrb[0].mxu0
      %2048 = vmatprep.mubr.bf16.mxu0 0
      %2049 = vmatmul.mubr.bf16.gmra.mrb[0].mxu0 %v1946
      %v2050 = vpop.f32.mrb[0].mxu0
      %v2051 = vadd.f32 0.0, %v2050
      %v2052 = vpop.f32.mrb[0].mxu0
      %v2053 = vpop.f32.mrb[0].mxu0
      %v2054 = vadd.f32 0.0, %v2053
      %v2055 = vpop.f32.mrb[0].mxu0
      %2056 = vmatprep.mubr.bf16.mxu0 0
      %2057 = vmatmul.mubr.bf16.gmra.mrb[0].mxu0 %v1947
      %v2058 = vpop.f32.mrb[0].mxu0
      %v2059 = vadd.f32 0.0, %v2058
      %v2060 = vpop.f32.mrb[0].mxu0
      %v2061 = vpop.f32.mrb[0].mxu0
      %v2062 = vadd.f32 0.0, %v2061
      %v2063 = vpop.f32.mrb[0].mxu0
      %2064 = vdwg.mxu0
      %v2065 = vadd.f32 %v1783, %v2035
      %v2066 = vadd.f32 %v1784, %v2038
      %v2067 = vadd.f32 %v1785, %v2043
      %v2068 = vadd.f32 %v1786, %v2046
      %v2069 = vadd.f32 %v1787, %v2051
      %v2070 = vadd.f32 %v1788, %v2054
      %v2071 = vadd.f32 %v1789, %v2059
      %v2072 = vadd.f32 %v1790, %v2062
      %v2073 = vpack.c.bf16 %v2065, %v2065
      %v2074 = vpack.c.bf16 %v2066, %v2066
      %v2075 = vpack.c.bf16 %v2067, %v2067
      %v2076 = vpack.c.bf16 %v2068, %v2068
      %v2077 = vpack.c.bf16 %v2069, %v2069
      %v2078 = vpack.c.bf16 %v2070, %v2070
      %v2079 = vpack.c.bf16 %v2071, %v2071
      %v2080 = vpack.c.bf16 %v2072, %v2072
      %2081 = vst [vmem:[%s208] sm:$0xf] %v2073
      %2082 = vst [vmem:[%s208 + $0x4] sm:$0xf] %v2074
      %2083 = vst [vmem:[%s208 + $0x8] sm:$0xf] %v2075
      %2084 = vst [vmem:[%s208 + $0xc] sm:$0xf] %v2076
      %2085 = vst [vmem:[%s208 + $0x10] sm:$0xf] %v2077
      %2086 = vst [vmem:[%s208 + $0x14] sm:$0xf] %v2078
      %2087 = vst [vmem:[%s208 + $0x18] sm:$0xf] %v2079
      %2088 = vst [vmem:[%s208 + $0x1c] sm:$0xf] %v2080
      %v2089 = vadd.f32 %v2065, %v2066
      %v2090 = vadd.f32 %v2089, %v2067
      %v2091 = vadd.f32 %v2090, %v2068
      %v2092 = vadd.f32 %v2091, %v2069
      %v2093 = vadd.f32 %v2092, %v2070
      %v2094 = vadd.f32 %v2093, %v2071
      %v2095 = vadd.f32 %v2094, %v2072
      %v2096 = vrot.slane %v2095, 4
      %v2097 = vadd.f32 %v2095, %v2096
      %v2098 = vrot.slane %v2097, 2
      %v2099 = vadd.f32 %v2097, %v2098
      %v2100 = vrot.slane %v2099, 1
      %v2101 = vadd.f32 %v2099, %v2100
      %2102 = vst [vmem:[%s211] sm:$0x1] %v2101
      %v2103 = vmul.f32 %v2065, %v2065
      %v2104 = vmul.f32 %v2066, %v2066
      %v2105 = vmul.f32 %v2067, %v2067
      %v2106 = vmul.f32 %v2068, %v2068
      %v2107 = vmul.f32 %v2069, %v2069
      %v2108 = vmul.f32 %v2070, %v2070
      %v2109 = vmul.f32 %v2071, %v2071
      %v2110 = vmul.f32 %v2072, %v2072
      %v2111 = vadd.f32 %v2103, %v2104
      %v2112 = vadd.f32 %v2111, %v2105
      %v2113 = vadd.f32 %v2112, %v2106
      %v2114 = vadd.f32 %v2113, %v2107
      %v2115 = vadd.f32 %v2114, %v2108
      %v2116 = vadd.f32 %v2115, %v2109
      %v2117 = vadd.f32 %v2116, %v2110
      %v2118 = vrot.slane %v2117, 4
      %v2119 = vadd.f32 %v2117, %v2118
      %v2120 = vrot.slane %v2119, 2
      %v2121 = vadd.f32 %v2119, %v2120
      %v2122 = vrot.slane %v2121, 1
      %v2123 = vadd.f32 %v2121, %v2122
      %2124 = vst [vmem:[%s214] sm:$0x1] %v2123
      %p2125 = scmp.lt.s32.totalorder %s16, 1
      %s2126 = scalar_select %p2125, %s16, 1
      %s2127 = smul.addr %s2126, 8
      %s2128 = smul.addr %s2127, 4
      %s2129 = scalar_lea.vmem %s2, %s2128
      %p2130 = scmp.lt.s32.totalorder %s16, 1
      %s2131 = scalar_select %p2130, %s16, 1
      %s2132 = scalar_lea.vmem %s3, %s2131
      %p2133 = scmp.lt.s32.totalorder %s16, 1
      %s2134 = scalar_select %p2133, %s16, 1
      %s2135 = scalar_lea.vmem %s4, %s2134
      // Predicated region
      $region29: #{bottleneck_forward.7} parent=27 // pred_check
        %p2136 = pneg %p81
      $region30: #{bottleneck_forward.7} parent=27 // pred_check_branch
        %2138 = sbr.rel (%p2136) target = $region32
      $region31: #{bottleneck_forward.7} parent=27 // pred_region
        _
      $region32: #{bottleneck_forward.7} parent=27 // pred_fallthru
        _
      // Predicated region
      $region33: #{bottleneck_forward.7} parent=27 // pred_check
        %p2139 = pneg %p107
      $region34: #{bottleneck_forward.7} parent=27 // pred_check_branch
        %2141 = sbr.rel (%p2139) target = $region36
      $region35: #{bottleneck_forward.7} parent=27 // pred_region
        _
      $region36: #{bottleneck_forward.7} parent=27 // pred_fallthru
        _
      // Predicated region
      $region37: #{bottleneck_forward.7} parent=27 // pred_check
        %p2142 = pneg %p133
      $region38: #{bottleneck_forward.7} parent=27 // pred_check_branch
        %2144 = sbr.rel (%p2142) target = $region40
      $region39: #{bottleneck_forward.7} parent=27 // pred_region
        _
      $region40: #{bottleneck_forward.7} parent=27 // pred_fallthru
        _
    $region28: #{bottleneck_forward.7} parent=5 // pred_fallthru
      _
    %p2145 = scmp.le.s32.totalorder 2, %s11
    // Predicated region
    $region41: #{bottleneck_forward.7} parent=5 // pred_check
      %p2146 = pneg %p2145
    $region42: #{bottleneck_forward.7} parent=5 // pred_check_branch
      %2148 = sbr.rel (%p2146) target = $region44
    $region43: #{bottleneck_forward.7} parent=5 // pred_region
      %s2149 = ssub.s32 %s11, 2
      // Predicated region
      $region45: #{bottleneck_forward.7} parent=43 // pred_check
        %p2150 = pneg %p87
      $region46: #{bottleneck_forward.7} parent=43 // pred_check_branch
        %2152 = sbr.rel (%p2150) target = $region48
      $region47: #{bottleneck_forward.7} parent=43 // pred_region
        %p2153 = scmp.lt.s32.totalorder %s17, 1
        %s2154 = scalar_select %p2153, %s17, 1
        %s2155 = smul.addr %s2154, 8
        %s2156 = smul.addr %s2155, 4
        %s2157 = scalar_lea.vmem %s2, %s2156
      $region48: #{bottleneck_forward.7} parent=43 // pred_fallthru
        _
      // Predicated region
      $region49: #{bottleneck_forward.7} parent=43 // pred_check
        %p2158 = pneg %p113
      $region50: #{bottleneck_forward.7} parent=43 // pred_check_branch
        %2160 = sbr.rel (%p2158) target = $region52
      $region51: #{bottleneck_forward.7} parent=43 // pred_region
        %p2161 = scmp.lt.s32.totalorder %s17, 1
        %s2162 = scalar_select %p2161, %s17, 1
        %s2163 = scalar_lea.vmem %s3, %s2162
      $region52: #{bottleneck_forward.7} parent=43 // pred_fallthru
        _
      // Predicated region
      $region53: #{bottleneck_forward.7} parent=43 // pred_check
        %p2164 = pneg %p139
      $region54: #{bottleneck_forward.7} parent=43 // pred_check_branch
        %2166 = sbr.rel (%p2164) target = $region56
      $region55: #{bottleneck_forward.7} parent=43 // pred_region
        %p2167 = scmp.lt.s32.totalorder %s17, 1
        %s2168 = scalar_select %p2167, %s17, 1
        %s2169 = scalar_lea.vmem %s4, %s2168
      $region56: #{bottleneck_forward.7} parent=43 // pred_fallthru
        _
    $region44: #{bottleneck_forward.7} parent=5 // pred_fallthru
      _
  $region6: #{bottleneck_forward.7} parent=0 // loop_footer
    %s15 = sadd.s32 1, %s11
  $region7: #{bottleneck_forward.7} parent=0 // loop_footer_branch
    %10 = sbr.rel target = $region3
  $region8: #{bottleneck_forward.7} parent=0 // loop_exit
    _

// kernel: bottleneck_forward.8
$region0: #{bottleneck_forward.8}
  #allocation0 [shape = 'u32[]', space=smem, size = 0x4, offset = 0x4, fixed_abs, tag = 'smem constant byte address 0x4 - core index']
  #allocation1 [shape = 'u32[144,128]{1,0:T(1,128)}', space=vmem, size = 0x12000, scoped, tag = 'internal scratch']
  %s0 = inlined_call_operand.vmem [shape: bf16[128,128], index: 0, kind: input, shape index: {}]
  %s1 = inlined_call_operand.vmem [shape: f32[1,128], index: 1, kind: input, shape index: {}]
  %s2 = inlined_call_operand.vmem [shape: f32[1,128], index: 2, kind: input, shape index: {}]
  %s3 = inlined_call_operand.vmem [shape: bf16[128,128], index: 3, kind: input, shape index: {}]
  %s4 = inlined_call_operand.vmem [shape: bf16[128,128], index: 4, kind: input, shape index: {}]
  %s5 = inlined_call_operand.vmem [shape: bf16[128,128], index: 5, kind: input, shape index: {}]
  %s6 = inlined_call_operand.vmem [shape: bf16[128,128], index: 6, kind: output, shape index: {0}]
  %s7 = inlined_call_operand.vmem [shape: bf16[128,128], index: 7, kind: output, shape index: {1}]
  %s8 = inlined_call_operand.vmem [shape: f32[1,1,128], index: 8, kind: output, shape index: {2}]
  %s9 = inlined_call_operand.vmem [shape: f32[1,1,128], index: 9, kind: output, shape index: {3}]
  %s10 = inlined_call_operand.vmem [shape: f32[1,1,128], index: 10, kind: output, shape index: {4}]
  %s11 = inlined_call_operand.vmem [shape: f32[1,1,128], index: 11, kind: output, shape index: {5}]
  %12 = xla_tuple %s6, %s7, %s8, %s9, %s10, %s11
  %s13 = sld [smem:[#allocation0]]
  $region74: #{bottleneck_forward.8} parent=0
    _
  %s15 = ssub.s32 1, %s13
  %s16 = scalar_select 0, %s15, %s13
  // Predicated region
  $region2: #{bottleneck_forward.8} parent=0 // pred_check
    _
  $region3: #{bottleneck_forward.8} parent=0 // pred_check_branch
    %18 = sbr.rel (0) target = $region5
  $region4: #{bottleneck_forward.8} parent=0 // pred_region
    _
  $region5: #{bottleneck_forward.8} parent=0 // pred_fallthru
    _
  // Predicated region
  $region6: #{bottleneck_forward.8} parent=0 // pred_check
    _
  $region7: #{bottleneck_forward.8} parent=0 // pred_check_branch
    %20 = sbr.rel (0) target = $region9
  $region8: #{bottleneck_forward.8} parent=0 // pred_region
    _
  $region9: #{bottleneck_forward.8} parent=0 // pred_fallthru
    _
  // Predicated region
  $region10: #{bottleneck_forward.8} parent=0 // pred_check
    _
  $region11: #{bottleneck_forward.8} parent=0 // pred_check_branch
    %22 = sbr.rel (0) target = $region13
  $region12: #{bottleneck_forward.8} parent=0 // pred_region
    _
  $region13: #{bottleneck_forward.8} parent=0 // pred_fallthru
    _
  // Predicated region
  $region14: #{bottleneck_forward.8} parent=0 // pred_check
    _
  $region15: #{bottleneck_forward.8} parent=0 // pred_check_branch
    %24 = sbr.rel (0) target = $region17
  $region16: #{bottleneck_forward.8} parent=0 // pred_region
    _
  $region17: #{bottleneck_forward.8} parent=0 // pred_fallthru
    _
  // Predicated region
  $region18: #{bottleneck_forward.8} parent=0 // pred_check
    _
  $region19: #{bottleneck_forward.8} parent=0 // pred_check_branch
    %26 = sbr.rel (0) target = $region21
  $region20: #{bottleneck_forward.8} parent=0 // pred_region
    _
  $region21: #{bottleneck_forward.8} parent=0 // pred_fallthru
    _
  // Predicated region
  $region22: #{bottleneck_forward.8} parent=0 // pred_check
    _
  $region23: #{bottleneck_forward.8} parent=0 // pred_check_branch
    %28 = sbr.rel (0) target = $region25
  $region24: #{bottleneck_forward.8} parent=0 // pred_region
    _
  $region25: #{bottleneck_forward.8} parent=0 // pred_fallthru
    _
  %v30 = vld [vmem:[%s0] sm:$0xf]
  %v31 = vld [vmem:[%s0 + $0x4] sm:$0xf]
  %v32 = vld [vmem:[%s0 + $0x8] sm:$0xf]
  %v33 = vld [vmem:[%s0 + $0xc] sm:$0xf]
  %v34 = vld [vmem:[%s0 + $0x10] sm:$0xf]
  %v35 = vld [vmem:[%s0 + $0x14] sm:$0xf]
  %v36 = vld [vmem:[%s0 + $0x18] sm:$0xf]
  %v37 = vld [vmem:[%s0 + $0x1c] sm:$0xf]
  %v38 = vld [vmem:[%s0 + $0x20] sm:$0xf]
  %v39 = vld [vmem:[%s0 + $0x24] sm:$0xf]
  %v40 = vld [vmem:[%s0 + $0x28] sm:$0xf]
  %v41 = vld [vmem:[%s0 + $0x2c] sm:$0xf]
  %v42 = vld [vmem:[%s0 + $0x30] sm:$0xf]
  %v43 = vld [vmem:[%s0 + $0x34] sm:$0xf]
  %v44 = vld [vmem:[%s0 + $0x38] sm:$0xf]
  %v45 = vld [vmem:[%s0 + $0x3c] sm:$0xf]
  %v46 = vunpack.c.l.bf16 %v30
  %v47 = vunpack.c.l.bf16 %v31
  %v48 = vunpack.c.l.bf16 %v32
  %v49 = vunpack.c.l.bf16 %v33
  %v50 = vunpack.c.l.bf16 %v34
  %v51 = vunpack.c.l.bf16 %v35
  %v52 = vunpack.c.l.bf16 %v36
  %v53 = vunpack.c.l.bf16 %v37
  %v54 = vunpack.c.l.bf16 %v38
  %v55 = vunpack.c.l.bf16 %v39
  %v56 = vunpack.c.l.bf16 %v40
  %v57 = vunpack.c.l.bf16 %v41
  %v58 = vunpack.c.l.bf16 %v42
  %v59 = vunpack.c.l.bf16 %v43
  %v60 = vunpack.c.l.bf16 %v44
  %v61 = vunpack.c.l.bf16 %v45
  %v62 = vld [vmem:[%s1] sm:$0x1]
  %v64 = vlaneseq
  %v65 = vshrl.u32 %v64, 7
  %v66 = vsub.s32 0, %v65
  %v67 = vrot.slane %v62, %v66
  %v69 = vmul.f32 %v46, %v67
  %v70 = vmul.f32 %v47, %v67
  %v71 = vmul.f32 %v48, %v67
  %v72 = vmul.f32 %v49, %v67
  %v73 = vmul.f32 %v50, %v67
  %v74 = vmul.f32 %v51, %v67
  %v75 = vmul.f32 %v52, %v67
  %v76 = vmul.f32 %v53, %v67
  %v77 = vmul.f32 %v54, %v67
  %v78 = vmul.f32 %v55, %v67
  %v79 = vmul.f32 %v56, %v67
  %v80 = vmul.f32 %v57, %v67
  %v81 = vmul.f32 %v58, %v67
  %v82 = vmul.f32 %v59, %v67
  %v83 = vmul.f32 %v60, %v67
  %v84 = vmul.f32 %v61, %v67
  %v85 = vld [vmem:[%s2] sm:$0x1]
  %v87 = vlaneseq
  %v88 = vshrl.u32 %v87, 7
  %v89 = vsub.s32 0, %v88
  %v90 = vrot.slane %v85, %v89
  %v92 = vadd.f32 %v69, %v90
  %v93 = vadd.f32 %v70, %v90
  %v94 = vadd.f32 %v71, %v90
  %v95 = vadd.f32 %v72, %v90
  %v96 = vadd.f32 %v73, %v90
  %v97 = vadd.f32 %v74, %v90
  %v98 = vadd.f32 %v75, %v90
  %v99 = vadd.f32 %v76, %v90
  %v100 = vadd.f32 %v77, %v90
  %v101 = vadd.f32 %v78, %v90
  %v102 = vadd.f32 %v79, %v90
  %v103 = vadd.f32 %v80, %v90
  %v104 = vadd.f32 %v81, %v90
  %v105 = vadd.f32 %v82, %v90
  %v106 = vadd.f32 %v83, %v90
  %v107 = vadd.f32 %v84, %v90
  %v108 = vmax.f32 %v92, 0.0
  %v109 = vmax.f32 %v93, 0.0
  %v110 = vmax.f32 %v94, 0.0
  %v111 = vmax.f32 %v95, 0.0
  %v112 = vmax.f32 %v96, 0.0
  %v113 = vmax.f32 %v97, 0.0
  %v114 = vmax.f32 %v98, 0.0
  %v115 = vmax.f32 %v99, 0.0
  %v116 = vmax.f32 %v100, 0.0
  %v117 = vmax.f32 %v101, 0.0
  %v118 = vmax.f32 %v102, 0.0
  %v119 = vmax.f32 %v103, 0.0
  %v120 = vmax.f32 %v104, 0.0
  %v121 = vmax.f32 %v105, 0.0
  %v122 = vmax.f32 %v106, 0.0
  %v123 = vmax.f32 %v107, 0.0
  %v124 = vpack.c.bf16 %v109, %v108
  %v125 = vpack.c.bf16 %v111, %v110
  %v126 = vpack.c.bf16 %v113, %v112
  %v127 = vpack.c.bf16 %v115, %v114
  %v128 = vpack.c.bf16 %v117, %v116
  %v129 = vpack.c.bf16 %v119, %v118
  %v130 = vpack.c.bf16 %v121, %v120
  %v131 = vpack.c.bf16 %v123, %v122
  %v132 = vld [vmem:[%s3] sm:$0xf]
  %v133 = vld [vmem:[%s3 + $0x4] sm:$0xf]
  %v134 = vld [vmem:[%s3 + $0x8] sm:$0xf]
  %v135 = vld [vmem:[%s3 + $0xc] sm:$0xf]
  %v136 = vld [vmem:[%s3 + $0x10] sm:$0xf]
  %v137 = vld [vmem:[%s3 + $0x14] sm:$0xf]
  %v138 = vld [vmem:[%s3 + $0x18] sm:$0xf]
  %v139 = vld [vmem:[%s3 + $0x1c] sm:$0xf]
  %v140 = vld [vmem:[%s3 + $0x20] sm:$0xf]
  %v141 = vld [vmem:[%s3 + $0x24] sm:$0xf]
  %v142 = vld [vmem:[%s3 + $0x28] sm:$0xf]
  %v143 = vld [vmem:[%s3 + $0x2c] sm:$0xf]
  %v144 = vld [vmem:[%s3 + $0x30] sm:$0xf]
  %v145 = vld [vmem:[%s3 + $0x34] sm:$0xf]
  %v146 = vld [vmem:[%s3 + $0x38] sm:$0xf]
  %v147 = vld [vmem:[%s3 + $0x3c] sm:$0xf]
  %v164 = vunpack.c.l.b16 %v132
  %v165 = vunpack.c.l.b16 %v133
  %v166 = vunpack.c.l.b16 %v134
  %v167 = vunpack.c.l.b16 %v135
  %v168 = vunpack.c.l.b16 %v136
  %v169 = vunpack.c.l.b16 %v137
  %v170 = vunpack.c.l.b16 %v138
  %v171 = vunpack.c.l.b16 %v139
  %v172 = vunpack.c.l.b16 %v140
  %v173 = vunpack.c.l.b16 %v141
  %v174 = vunpack.c.l.b16 %v142
  %v175 = vunpack.c.l.b16 %v143
  %v176 = vunpack.c.l.b16 %v144
  %v177 = vunpack.c.l.b16 %v145
  %v178 = vunpack.c.l.b16 %v146
  %v179 = vunpack.c.l.b16 %v147
  %v180 = vpack.c.b16 %v165, %v164
  %v181 = vpack.c.b16 %v167, %v166
  %v182 = vpack.c.b16 %v169, %v168
  %v183 = vpack.c.b16 %v171, %v170
  %v184 = vpack.c.b16 %v173, %v172
  %v185 = vpack.c.b16 %v175, %v174
  %v186 = vpack.c.b16 %v177, %v176
  %v187 = vpack.c.b16 %v179, %v178
  %196 = vmatprep.subr.bf16.mxu0 0
  %197 = vmatpush1.bf16.msra.mxu0 %v180
  %198 = vmatprep.subr.bf16.mxu0 0
  %199 = vmatpush1.bf16.msra.mxu0 %v181
  %200 = vmatprep.subr.bf16.mxu0 0
  %201 = vmatpush1.bf16.msra.mxu0 %v182
  %202 = vmatprep.subr.bf16.mxu0 0
  %203 = vmatpush1.bf16.msra.mxu0 %v183
  %204 = vmatprep.subr.bf16.mxu0 0
  %205 = vmatpush1.bf16.msra.mxu0 %v184
  %206 = vmatprep.subr.bf16.mxu0 0
  %207 = vmatpush1.bf16.msra.mxu0 %v185
  %208 = vmatprep.subr.bf16.mxu0 0
  %209 = vmatpush1.bf16.msra.mxu0 %v186
  %210 = vmatprep.subr.bf16.mxu0 0
  %211 = vmatpush1.bf16.msra.mxu0 %v187
  %212 = vmatprep.subr.bf16.mxu0 0
  %213 = vmatpush1.bf16.msra.mxu0 0
  %214 = vmatprep.subr.bf16.mxu0 0
  %215 = vmatpush1.bf16.msra.mxu0 0
  %216 = vmatprep.subr.bf16.mxu0 0
  %217 = vmatpush1.bf16.msra.mxu0 0
  %218 = vmatprep.subr.bf16.mxu0 0
  %219 = vmatpush1.bf16.msra.mxu0 0
  %220 = vmatprep.subr.bf16.mxu0 0
  %221 = vmatpush1.bf16.msra.mxu0 0
  %222 = vmatprep.subr.bf16.mxu0 0
  %223 = vmatpush1.bf16.msra.mxu0 0
  %224 = vmatprep.subr.bf16.mxu0 0
  %225 = vmatpush1.bf16.msra.mxu0 0
  %226 = vmatprep.subr.bf16.mxu0 0
  %227 = vmatpush1.bf16.msra.mxu0 0
  %228 = vmatprep.mubr.bf16.mxu0 0
  %229 = vmatmul.mubr.bf16.gmra.mrb[0].mxu0 %v124
  %v230 = vpop.f32.mrb[0].mxu0
  %v231 = vadd.f32 0.0, %v230
  %v232 = vpop.f32.mrb[0].mxu0
  %v233 = vpop.f32.mrb[0].mxu0
  %v234 = vadd.f32 0.0, %v233
  %v235 = vpop.f32.mrb[0].mxu0
  %236 = vmatprep.mubr.bf16.mxu0 0
  %237 = vmatmul.mubr.bf16.gmra.mrb[0].mxu0 %v125
  %v238 = vpop.f32.mrb[0].mxu0
  %v239 = vadd.f32 0.0, %v238
  %v240 = vpop.f32.mrb[0].mxu0
  %v241 = vpop.f32.mrb[0].mxu0
  %v242 = vadd.f32 0.0, %v241
  %v243 = vpop.f32.mrb[0].mxu0
  %244 = vmatprep.mubr.bf16.mxu0 0
  %245 = vmatmul.mubr.bf16.gmra.mrb[0].mxu0 %v126
  %v246 = vpop.f32.mrb[0].mxu0
  %v247 = vadd.f32 0.0, %v246
  %v248 = vpop.f32.mrb[0].mxu0
  %v249 = vpop.f32.mrb[0].mxu0
  %v250 = vadd.f32 0.0, %v249
  %v251 = vpop.f32.mrb[0].mxu0
  %252 = vmatprep.mubr.bf16.mxu0 0
  %253 = vmatmul.mubr.bf16.gmra.mrb[0].mxu0 %v127
  %v254 = vpop.f32.mrb[0].mxu0
  %v255 = vadd.f32 0.0, %v254
  %v256 = vpop.f32.mrb[0].mxu0
  %v257 = vpop.f32.mrb[0].mxu0
  %v258 = vadd.f32 0.0, %v257
  %v259 = vpop.f32.mrb[0].mxu0
  %260 = vmatprep.mubr.bf16.mxu0 0
  %261 = vmatmul.mubr.bf16.gmra.mrb[0].mxu0 %v128
  %v262 = vpop.f32.mrb[0].mxu0
  %v263 = vadd.f32 0.0, %v262
  %v264 = vpop.f32.mrb[0].mxu0
  %v265 = vpop.f32.mrb[0].mxu0
  %v266 = vadd.f32 0.0, %v265
  %v267 = vpop.f32.mrb[0].mxu0
  %268 = vmatprep.mubr.bf16.mxu0 0
  %269 = vmatmul.mubr.bf16.gmra.mrb[0].mxu0 %v129
  %v270 = vpop.f32.mrb[0].mxu0
  %v271 = vadd.f32 0.0, %v270
  %v272 = vpop.f32.mrb[0].mxu0
  %v273 = vpop.f32.mrb[0].mxu0
  %v274 = vadd.f32 0.0, %v273
  %v275 = vpop.f32.mrb[0].mxu0
  %276 = vmatprep.mubr.bf16.mxu0 0
  %277 = vmatmul.mubr.bf16.gmra.mrb[0].mxu0 %v130
  %v278 = vpop.f32.mrb[0].mxu0
  %v279 = vadd.f32 0.0, %v278
  %v280 = vpop.f32.mrb[0].mxu0
  %v281 = vpop.f32.mrb[0].mxu0
  %v282 = vadd.f32 0.0, %v281
  %v283 = vpop.f32.mrb[0].mxu0
  %284 = vmatprep.mubr.bf16.mxu0 0
  %285 = vmatmul.mubr.bf16.gmra.mrb[0].mxu0 %v131
  %v286 = vpop.f32.mrb[0].mxu0
  %v287 = vadd.f32 0.0, %v286
  %v288 = vpop.f32.mrb[0].mxu0
  %v289 = vpop.f32.mrb[0].mxu0
  %v290 = vadd.f32 0.0, %v289
  %v291 = vpop.f32.mrb[0].mxu0
  %292 = vdwg.mxu0
  %v293 = vld [vmem:[%s4] sm:$0xf]
  %v294 = vld [vmem:[%s4 + $0x4] sm:$0xf]
  %v295 = vld [vmem:[%s4 + $0x8] sm:$0xf]
  %v296 = vld [vmem:[%s4 + $0xc] sm:$0xf]
  %v297 = vld [vmem:[%s4 + $0x10] sm:$0xf]
  %v298 = vld [vmem:[%s4 + $0x14] sm:$0xf]
  %v299 = vld [vmem:[%s4 + $0x18] sm:$0xf]
  %v300 = vld [vmem:[%s4 + $0x1c] sm:$0xf]
  %v301 = vld [vmem:[%s4 + $0x20] sm:$0xf]
  %v302 = vld [vmem:[%s4 + $0x24] sm:$0xf]
  %v303 = vld [vmem:[%s4 + $0x28] sm:$0xf]
  %v304 = vld [vmem:[%s4 + $0x2c] sm:$0xf]
  %v305 = vld [vmem:[%s4 + $0x30] sm:$0xf]
  %v306 = vld [vmem:[%s4 + $0x34] sm:$0xf]
  %v307 = vld [vmem:[%s4 + $0x38] sm:$0xf]
  %v308 = vld [vmem:[%s4 + $0x3c] sm:$0xf]
  %v309 = vld [vmem:[%s5] sm:$0xf]
  %v310 = vld [vmem:[%s5 + $0x4] sm:$0xf]
  %v311 = vld [vmem:[%s5 + $0x8] sm:$0xf]
  %v312 = vld [vmem:[%s5 + $0xc] sm:$0xf]
  %v313 = vld [vmem:[%s5 + $0x10] sm:$0xf]
  %v314 = vld [vmem:[%s5 + $0x14] sm:$0xf]
  %v315 = vld [vmem:[%s5 + $0x18] sm:$0xf]
  %v316 = vld [vmem:[%s5 + $0x1c] sm:$0xf]
  %v317 = vld [vmem:[%s5 + $0x20] sm:$0xf]
  %v318 = vld [vmem:[%s5 + $0x24] sm:$0xf]
  %v319 = vld [vmem:[%s5 + $0x28] sm:$0xf]
  %v320 = vld [vmem:[%s5 + $0x2c] sm:$0xf]
  %v321 = vld [vmem:[%s5 + $0x30] sm:$0xf]
  %v322 = vld [vmem:[%s5 + $0x34] sm:$0xf]
  %v323 = vld [vmem:[%s5 + $0x38] sm:$0xf]
  %v324 = vld [vmem:[%s5 + $0x3c] sm:$0xf]
  %v341 = vunpack.c.l.b16 %v293
  %v342 = vunpack.c.l.b16 %v294
  %v343 = vunpack.c.l.b16 %v295
  %v344 = vunpack.c.l.b16 %v296
  %v345 = vunpack.c.l.b16 %v297
  %v346 = vunpack.c.l.b16 %v298
  %v347 = vunpack.c.l.b16 %v299
  %v348 = vunpack.c.l.b16 %v300
  %v349 = vunpack.c.l.b16 %v301
  %v350 = vunpack.c.l.b16 %v302
  %v351 = vunpack.c.l.b16 %v303
  %v352 = vunpack.c.l.b16 %v304
  %v353 = vunpack.c.l.b16 %v305
  %v354 = vunpack.c.l.b16 %v306
  %v355 = vunpack.c.l.b16 %v307
  %v356 = vunpack.c.l.b16 %v308
  %v357 = vpack.c.b16 %v342, %v341
  %v358 = vpack.c.b16 %v344, %v343
  %v359 = vpack.c.b16 %v346, %v345
  %v360 = vpack.c.b16 %v348, %v347
  %v361 = vpack.c.b16 %v350, %v349
  %v362 = vpack.c.b16 %v352, %v351
  %v363 = vpack.c.b16 %v354, %v353
  %v364 = vpack.c.b16 %v356, %v355
  %v389 = vunpack.c.l.b16 %v309
  %v390 = vunpack.c.l.b16 %v310
  %v391 = vunpack.c.l.b16 %v311
  %v392 = vunpack.c.l.b16 %v312
  %v393 = vunpack.c.l.b16 %v313
  %v394 = vunpack.c.l.b16 %v314
  %v395 = vunpack.c.l.b16 %v315
  %v396 = vunpack.c.l.b16 %v316
  %v397 = vunpack.c.l.b16 %v317
  %v398 = vunpack.c.l.b16 %v318
  %v399 = vunpack.c.l.b16 %v319
  %v400 = vunpack.c.l.b16 %v320
  %v401 = vunpack.c.l.b16 %v321
  %v402 = vunpack.c.l.b16 %v322
  %v403 = vunpack.c.l.b16 %v323
  %v404 = vunpack.c.l.b16 %v324
  %v405 = vpack.c.b16 %v390, %v389
  %v406 = vpack.c.b16 %v392, %v391
  %v407 = vpack.c.b16 %v394, %v393
  %v408 = vpack.c.b16 %v396, %v395
  %v409 = vpack.c.b16 %v398, %v397
  %v410 = vpack.c.b16 %v400, %v399
  %v411 = vpack.c.b16 %v402, %v401
  %v412 = vpack.c.b16 %v404, %v403
  %421 = vmatprep.subr.bf16.mxu0 0
  %422 = vmatpush1.bf16.msra.mxu0 %v405
  %423 = vmatprep.subr.bf16.mxu0 0
  %424 = vmatpush1.bf16.msra.mxu0 %v406
  %425 = vmatprep.subr.bf16.mxu0 0
  %426 = vmatpush1.bf16.msra.mxu0 %v407
  %427 = vmatprep.subr.bf16.mxu0 0
  %428 = vmatpush1.bf16.msra.mxu0 %v408
  %429 = vmatprep.subr.bf16.mxu0 0
  %430 = vmatpush1.bf16.msra.mxu0 %v409
  %431 = vmatprep.subr.bf16.mxu0 0
  %432 = vmatpush1.bf16.msra.mxu0 %v410
  %433 = vmatprep.subr.bf16.mxu0 0
  %434 = vmatpush1.bf16.msra.mxu0 %v411
  %435 = vmatprep.subr.bf16.mxu0 0
  %436 = vmatpush1.bf16.msra.mxu0 %v412
  %437 = vmatprep.subr.bf16.mxu0 0
  %438 = vmatpush1.bf16.msra.mxu0 0
  %439 = vmatprep.subr.bf16.mxu0 0
  %440 = vmatpush1.bf16.msra.mxu0 0
  %441 = vmatprep.subr.bf16.mxu0 0
  %442 = vmatpush1.bf16.msra.mxu0 0
  %443 = vmatprep.subr.bf16.mxu0 0
  %444 = vmatpush1.bf16.msra.mxu0 0
  %445 = vmatprep.subr.bf16.mxu0 0
  %446 = vmatpush1.bf16.msra.mxu0 0
  %447 = vmatprep.subr.bf16.mxu0 0
  %448 = vmatpush1.bf16.msra.mxu0 0
  %449 = vmatprep.subr.bf16.mxu0 0
  %450 = vmatpush1.bf16.msra.mxu0 0
  %451 = vmatprep.subr.bf16.mxu0 0
  %452 = vmatpush1.bf16.msra.mxu0 0
  %453 = vmatprep.mubr.bf16.mxu0 0
  %454 = vmatmul.mubr.bf16.gmra.mrb[0].mxu0 %v357
  %v455 = vpop.f32.mrb[0].mxu0
  %v456 = vadd.f32 0.0, %v455
  %v457 = vpop.f32.mrb[0].mxu0
  %v458 = vpop.f32.mrb[0].mxu0
  %v459 = vadd.f32 0.0, %v458
  %v460 = vpop.f32.mrb[0].mxu0
  %461 = vmatprep.mubr.bf16.mxu0 0
  %462 = vmatmul.mubr.bf16.gmra.mrb[0].mxu0 %v358
  %v463 = vpop.f32.mrb[0].mxu0
  %v464 = vadd.f32 0.0, %v463
  %v465 = vpop.f32.mrb[0].mxu0
  %v466 = vpop.f32.mrb[0].mxu0
  %v467 = vadd.f32 0.0, %v466
  %v468 = vpop.f32.mrb[0].mxu0
  %469 = vmatprep.mubr.bf16.mxu0 0
  %470 = vmatmul.mubr.bf16.gmra.mrb[0].mxu0 %v359
  %v471 = vpop.f32.mrb[0].mxu0
  %v472 = vadd.f32 0.0, %v471
  %v473 = vpop.f32.mrb[0].mxu0
  %v474 = vpop.f32.mrb[0].mxu0
  %v475 = vadd.f32 0.0, %v474
  %v476 = vpop.f32.mrb[0].mxu0
  %477 = vmatprep.mubr.bf16.mxu0 0
  %478 = vmatmul.mubr.bf16.gmra.mrb[0].mxu0 %v360
  %v479 = vpop.f32.mrb[0].mxu0
  %v480 = vadd.f32 0.0, %v479
  %v481 = vpop.f32.mrb[0].mxu0
  %v482 = vpop.f32.mrb[0].mxu0
  %v483 = vadd.f32 0.0, %v482
  %v484 = vpop.f32.mrb[0].mxu0
  %485 = vmatprep.mubr.bf16.mxu0 0
  %486 = vmatmul.mubr.bf16.gmra.mrb[0].mxu0 %v361
  %v487 = vpop.f32.mrb[0].mxu0
  %v488 = vadd.f32 0.0, %v487
  %v489 = vpop.f32.mrb[0].mxu0
  %v490 = vpop.f32.mrb[0].mxu0
  %v491 = vadd.f32 0.0, %v490
  %v492 = vpop.f32.mrb[0].mxu0
  %493 = vmatprep.mubr.bf16.mxu0 0
  %494 = vmatmul.mubr.bf16.gmra.mrb[0].mxu0 %v362
  %v495 = vpop.f32.mrb[0].mxu0
  %v496 = vadd.f32 0.0, %v495
  %v497 = vpop.f32.mrb[0].mxu0
  %v498 = vpop.f32.mrb[0].mxu0
  %v499 = vadd.f32 0.0, %v498
  %v500 = vpop.f32.mrb[0].mxu0
  %501 = vmatprep.mubr.bf16.mxu0 0
  %502 = vmatmul.mubr.bf16.gmra.mrb[0].mxu0 %v363
  %v503 = vpop.f32.mrb[0].mxu0
  %v504 = vadd.f32 0.0, %v503
  %v505 = vpop.f32.mrb[0].mxu0
  %v506 = vpop.f32.mrb[0].mxu0
  %v507 = vadd.f32 0.0, %v506
  %v508 = vpop.f32.mrb[0].mxu0
  %509 = vmatprep.mubr.bf16.mxu0 0
  %510 = vmatmul.mubr.bf16.gmra.mrb[0].mxu0 %v364
  %v511 = vpop.f32.mrb[0].mxu0
  %v512 = vadd.f32 0.0, %v511
  %v513 = vpop.f32.mrb[0].mxu0
  %v514 = vpop.f32.mrb[0].mxu0
  %v515 = vadd.f32 0.0, %v514
  %v516 = vpop.f32.mrb[0].mxu0
  %517 = vdwg.mxu0
  %v518 = vpack.c.bf16 %v234, %v231
  %v519 = vpack.c.bf16 %v242, %v239
  %v520 = vpack.c.bf16 %v250, %v247
  %v521 = vpack.c.bf16 %v258, %v255
  %v522 = vpack.c.bf16 %v266, %v263
  %v523 = vpack.c.bf16 %v274, %v271
  %v524 = vpack.c.bf16 %v282, %v279
  %v525 = vpack.c.bf16 %v290, %v287
  %v534 = vunpack.c.l.b16 %v518
  %v535 = vunpack.c.h.b16 %v518
  %v536 = vunpack.c.l.b16 %v519
  %v537 = vunpack.c.h.b16 %v519
  %v538 = vunpack.c.l.b16 %v520
  %v539 = vunpack.c.h.b16 %v520
  %v540 = vunpack.c.l.b16 %v521
  %v541 = vunpack.c.h.b16 %v521
  %v542 = vunpack.c.l.b16 %v522
  %v543 = vunpack.c.h.b16 %v522
  %v544 = vunpack.c.l.b16 %v523
  %v545 = vunpack.c.h.b16 %v523
  %v546 = vunpack.c.l.b16 %v524
  %v547 = vunpack.c.h.b16 %v524
  %v548 = vunpack.c.l.b16 %v525
  %v549 = vunpack.c.h.b16 %v525
  %v550 = vpack.c.b16 %v534, %v534
  %v551 = vpack.c.b16 %v535, %v535
  %v552 = vpack.c.b16 %v536, %v536
  %v553 = vpack.c.b16 %v537, %v537
  %v554 = vpack.c.b16 %v538, %v538
  %v555 = vpack.c.b16 %v539, %v539
  %v556 = vpack.c.b16 %v540, %v540
  %v557 = vpack.c.b16 %v541, %v541
  %v558 = vpack.c.b16 %v542, %v542
  %v559 = vpack.c.b16 %v543, %v543
  %v560 = vpack.c.b16 %v544, %v544
  %v561 = vpack.c.b16 %v545, %v545
  %v562 = vpack.c.b16 %v546, %v546
  %v563 = vpack.c.b16 %v547, %v547
  %v564 = vpack.c.b16 %v548, %v548
  %v565 = vpack.c.b16 %v549, %v549
  %582 = vst [vmem:[%s6] sm:$0xf] %v550
  %583 = vst [vmem:[%s6 + $0x4] sm:$0xf] %v551
  %584 = vst [vmem:[%s6 + $0x8] sm:$0xf] %v552
  %585 = vst [vmem:[%s6 + $0xc] sm:$0xf] %v553
  %586 = vst [vmem:[%s6 + $0x10] sm:$0xf] %v554
  %587 = vst [vmem:[%s6 + $0x14] sm:$0xf] %v555
  %588 = vst [vmem:[%s6 + $0x18] sm:$0xf] %v556
  %589 = vst [vmem:[%s6 + $0x1c] sm:$0xf] %v557
  %590 = vst [vmem:[%s6 + $0x20] sm:$0xf] %v558
  %591 = vst [vmem:[%s6 + $0x24] sm:$0xf] %v559
  %592 = vst [vmem:[%s6 + $0x28] sm:$0xf] %v560
  %593 = vst [vmem:[%s6 + $0x2c] sm:$0xf] %v561
  %594 = vst [vmem:[%s6 + $0x30] sm:$0xf] %v562
  %595 = vst [vmem:[%s6 + $0x34] sm:$0xf] %v563
  %596 = vst [vmem:[%s6 + $0x38] sm:$0xf] %v564
  %597 = vst [vmem:[%s6 + $0x3c] sm:$0xf] %v565
  %v598 = vpack.c.bf16 %v459, %v456
  %v599 = vpack.c.bf16 %v467, %v464
  %v600 = vpack.c.bf16 %v475, %v472
  %v601 = vpack.c.bf16 %v483, %v480
  %v602 = vpack.c.bf16 %v491, %v488
  %v603 = vpack.c.bf16 %v499, %v496
  %v604 = vpack.c.bf16 %v507, %v504
  %v605 = vpack.c.bf16 %v515, %v512
  %v614 = vunpack.c.l.b16 %v598
  %v615 = vunpack.c.h.b16 %v598
  %v616 = vunpack.c.l.b16 %v599
  %v617 = vunpack.c.h.b16 %v599
  %v618 = vunpack.c.l.b16 %v600
  %v619 = vunpack.c.h.b16 %v600
  %v620 = vunpack.c.l.b16 %v601
  %v621 = vunpack.c.h.b16 %v601
  %v622 = vunpack.c.l.b16 %v602
  %v623 = vunpack.c.h.b16 %v602
  %v624 = vunpack.c.l.b16 %v603
  %v625 = vunpack.c.h.b16 %v603
  %v626 = vunpack.c.l.b16 %v604
  %v627 = vunpack.c.h.b16 %v604
  %v628 = vunpack.c.l.b16 %v605
  %v629 = vunpack.c.h.b16 %v605
  %v630 = vpack.c.b16 %v614, %v614
  %v631 = vpack.c.b16 %v615, %v615
  %v632 = vpack.c.b16 %v616, %v616
  %v633 = vpack.c.b16 %v617, %v617
  %v634 = vpack.c.b16 %v618, %v618
  %v635 = vpack.c.b16 %v619, %v619
  %v636 = vpack.c.b16 %v620, %v620
  %v637 = vpack.c.b16 %v621, %v621
  %v638 = vpack.c.b16 %v622, %v622
  %v639 = vpack.c.b16 %v623, %v623
  %v640 = vpack.c.b16 %v624, %v624
  %v641 = vpack.c.b16 %v625, %v625
  %v642 = vpack.c.b16 %v626, %v626
  %v643 = vpack.c.b16 %v627, %v627
  %v644 = vpack.c.b16 %v628, %v628
  %v645 = vpack.c.b16 %v629, %v629
  %662 = vst [vmem:[%s7] sm:$0xf] %v630
  %663 = vst [vmem:[%s7 + $0x4] sm:$0xf] %v631
  %664 = vst [vmem:[%s7 + $0x8] sm:$0xf] %v632
  %665 = vst [vmem:[%s7 + $0xc] sm:$0xf] %v633
  %666 = vst [vmem:[%s7 + $0x10] sm:$0xf] %v634
  %667 = vst [vmem:[%s7 + $0x14] sm:$0xf] %v635
  %668 = vst [vmem:[%s7 + $0x18] sm:$0xf] %v636
  %669 = vst [vmem:[%s7 + $0x1c] sm:$0xf] %v637
  %670 = vst [vmem:[%s7 + $0x20] sm:$0xf] %v638
  %671 = vst [vmem:[%s7 + $0x24] sm:$0xf] %v639
  %672 = vst [vmem:[%s7 + $0x28] sm:$0xf] %v640
  %673 = vst [vmem:[%s7 + $0x2c] sm:$0xf] %v641
  %674 = vst [vmem:[%s7 + $0x30] sm:$0xf] %v642
  %675 = vst [vmem:[%s7 + $0x34] sm:$0xf] %v643
  %676 = vst [vmem:[%s7 + $0x38] sm:$0xf] %v644
  %677 = vst [vmem:[%s7 + $0x3c] sm:$0xf] %v645
  %v678 = vadd.f32 %v231, %v234
  %v679 = vadd.f32 %v678, %v239
  %v680 = vadd.f32 %v679, %v242
  %v681 = vadd.f32 %v680, %v247
  %v682 = vadd.f32 %v681, %v250
  %v683 = vadd.f32 %v682, %v255
  %v684 = vadd.f32 %v683, %v258
  %v685 = vadd.f32 %v684, %v263
  %v686 = vadd.f32 %v685, %v266
  %v687 = vadd.f32 %v686, %v271
  %v688 = vadd.f32 %v687, %v274
  %v689 = vadd.f32 %v688, %v279
  %v690 = vadd.f32 %v689, %v282
  %v691 = vadd.f32 %v690, %v287
  %v692 = vadd.f32 %v691, %v290
  %v693 = vrot.slane %v692, 4
  %v694 = vadd.f32 %v692, %v693
  %v695 = vrot.slane %v694, 2
  %v696 = vadd.f32 %v694, %v695
  %v697 = vrot.slane %v696, 1
  %v698 = vadd.f32 %v696, %v697
  %699 = vst [vmem:[%s8] sm:$0x1] %v698
  %v700 = vmul.f32 %v231, %v231
  %v701 = vmul.f32 %v234, %v234
  %v702 = vmul.f32 %v239, %v239
  %v703 = vmul.f32 %v242, %v242
  %v704 = vmul.f32 %v247, %v247
  %v705 = vmul.f32 %v250, %v250
  %v706 = vmul.f32 %v255, %v255
  %v707 = vmul.f32 %v258, %v258
  %v708 = vmul.f32 %v263, %v263
  %v709 = vmul.f32 %v266, %v266
  %v710 = vmul.f32 %v271, %v271
  %v711 = vmul.f32 %v274, %v274
  %v712 = vmul.f32 %v279, %v279
  %v713 = vmul.f32 %v282, %v282
  %v714 = vmul.f32 %v287, %v287
  %v715 = vmul.f32 %v290, %v290
  %v716 = vadd.f32 %v700, %v701
  %v717 = vadd.f32 %v716, %v702
  %v718 = vadd.f32 %v717, %v703
  %v719 = vadd.f32 %v718, %v704
  %v720 = vadd.f32 %v719, %v705
  %v721 = vadd.f32 %v720, %v706
  %v722 = vadd.f32 %v721, %v707
  %v723 = vadd.f32 %v722, %v708
  %v724 = vadd.f32 %v723, %v709
  %v725 = vadd.f32 %v724, %v710
  %v726 = vadd.f32 %v725, %v711
  %v727 = vadd.f32 %v726, %v712
  %v728 = vadd.f32 %v727, %v713
  %v729 = vadd.f32 %v728, %v714
  %v730 = vadd.f32 %v729, %v715
  %v731 = vrot.slane %v730, 4
  %v732 = vadd.f32 %v730, %v731
  %v733 = vrot.slane %v732, 2
  %v734 = vadd.f32 %v732, %v733
  %v735 = vrot.slane %v734, 1
  %v736 = vadd.f32 %v734, %v735
  %737 = vst [vmem:[%s9] sm:$0x1] %v736
  %v738 = vadd.f32 %v456, %v459
  %v739 = vadd.f32 %v738, %v464
  %v740 = vadd.f32 %v739, %v467
  %v741 = vadd.f32 %v740, %v472
  %v742 = vadd.f32 %v741, %v475
  %v743 = vadd.f32 %v742, %v480
  %v744 = vadd.f32 %v743, %v483
  %v745 = vadd.f32 %v744, %v488
  %v746 = vadd.f32 %v745, %v491
  %v747 = vadd.f32 %v746, %v496
  %v748 = vadd.f32 %v747, %v499
  %v749 = vadd.f32 %v748, %v504
  %v750 = vadd.f32 %v749, %v507
  %v751 = vadd.f32 %v750, %v512
  %v752 = vadd.f32 %v751, %v515
  %v753 = vrot.slane %v752, 4
  %v754 = vadd.f32 %v752, %v753
  %v755 = vrot.slane %v754, 2
  %v756 = vadd.f32 %v754, %v755
  %v757 = vrot.slane %v756, 1
  %v758 = vadd.f32 %v756, %v757
  %759 = vst [vmem:[%s10] sm:$0x1] %v758
  %v760 = vmul.f32 %v456, %v456
  %v761 = vmul.f32 %v459, %v459
  %v762 = vmul.f32 %v464, %v464
  %v763 = vmul.f32 %v467, %v467
  %v764 = vmul.f32 %v472, %v472
  %v765 = vmul.f32 %v475, %v475
  %v766 = vmul.f32 %v480, %v480
  %v767 = vmul.f32 %v483, %v483
  %v768 = vmul.f32 %v488, %v488
  %v769 = vmul.f32 %v491, %v491
  %v770 = vmul.f32 %v496, %v496
  %v771 = vmul.f32 %v499, %v499
  %v772 = vmul.f32 %v504, %v504
  %v773 = vmul.f32 %v507, %v507
  %v774 = vmul.f32 %v512, %v512
  %v775 = vmul.f32 %v515, %v515
  %v776 = vadd.f32 %v760, %v761
  %v777 = vadd.f32 %v776, %v762
  %v778 = vadd.f32 %v777, %v763
  %v779 = vadd.f32 %v778, %v764
  %v780 = vadd.f32 %v779, %v765
  %v781 = vadd.f32 %v780, %v766
  %v782 = vadd.f32 %v781, %v767
  %v783 = vadd.f32 %v782, %v768
  %v784 = vadd.f32 %v783, %v769
  %v785 = vadd.f32 %v784, %v770
  %v786 = vadd.f32 %v785, %v771
  %v787 = vadd.f32 %v786, %v772
  %v788 = vadd.f32 %v787, %v773
  %v789 = vadd.f32 %v788, %v774
  %v790 = vadd.f32 %v789, %v775
  %v791 = vrot.slane %v790, 4
  %v792 = vadd.f32 %v790, %v791
  %v793 = vrot.slane %v792, 2
  %v794 = vadd.f32 %v792, %v793
  %v795 = vrot.slane %v794, 1
  %v796 = vadd.f32 %v794, %v795
  %797 = vst [vmem:[%s11] sm:$0x1] %v796
  // Predicated region
  $region26: #{bottleneck_forward.8} parent=0 // pred_check
    _
  $region27: #{bottleneck_forward.8} parent=0 // pred_check_branch
    %799 = sbr.rel (0) target = $region29
  $region28: #{bottleneck_forward.8} parent=0 // pred_region
    _
  $region29: #{bottleneck_forward.8} parent=0 // pred_fallthru
    _
  // Predicated region
  $region30: #{bottleneck_forward.8} parent=0 // pred_check
    _
  $region31: #{bottleneck_forward.8} parent=0 // pred_check_branch
    %801 = sbr.rel (0) target = $region33
  $region32: #{bottleneck_forward.8} parent=0 // pred_region
    _
  $region33: #{bottleneck_forward.8} parent=0 // pred_fallthru
    _
  // Predicated region
  $region34: #{bottleneck_forward.8} parent=0 // pred_check
    _
  $region35: #{bottleneck_forward.8} parent=0 // pred_check_branch
    %803 = sbr.rel (0) target = $region37
  $region36: #{bottleneck_forward.8} parent=0 // pred_region
    _
  $region37: #{bottleneck_forward.8} parent=0 // pred_fallthru
    _
  // Predicated region
  $region38: #{bottleneck_forward.8} parent=0 // pred_check
    _
  $region39: #{bottleneck_forward.8} parent=0 // pred_check_branch
    %805 = sbr.rel (0) target = $region41
  $region40: #{bottleneck_forward.8} parent=0 // pred_region
    _
  $region41: #{bottleneck_forward.8} parent=0 // pred_fallthru
    _
  // Predicated region
  $region42: #{bottleneck_forward.8} parent=0 // pred_check
    _
  $region43: #{bottleneck_forward.8} parent=0 // pred_check_branch
    %807 = sbr.rel (0) target = $region45
  $region44: #{bottleneck_forward.8} parent=0 // pred_region
    _
  $region45: #{bottleneck_forward.8} parent=0 // pred_fallthru
    _
  // Predicated region
  $region46: #{bottleneck_forward.8} parent=0 // pred_check
    _
  $region47: #{bottleneck_forward.8} parent=0 // pred_check_branch
    %809 = sbr.rel (0) target = $region49
  $region48: #{bottleneck_forward.8} parent=0 // pred_region
    _
  $region49: #{bottleneck_forward.8} parent=0 // pred_fallthru
    _
  // Predicated region
  $region50: #{bottleneck_forward.8} parent=0 // pred_check
    _
  $region51: #{bottleneck_forward.8} parent=0 // pred_check_branch
    %811 = sbr.rel (0) target = $region53
  $region52: #{bottleneck_forward.8} parent=0 // pred_region
    _
  $region53: #{bottleneck_forward.8} parent=0 // pred_fallthru
    _
  // Predicated region
  $region54: #{bottleneck_forward.8} parent=0 // pred_check
    _
  $region55: #{bottleneck_forward.8} parent=0 // pred_check_branch
    %813 = sbr.rel (0) target = $region57
  $region56: #{bottleneck_forward.8} parent=0 // pred_region
    _
  $region57: #{bottleneck_forward.8} parent=0 // pred_fallthru
    _
  // Predicated region
  $region58: #{bottleneck_forward.8} parent=0 // pred_check
    _
  $region59: #{bottleneck_forward.8} parent=0 // pred_check_branch
    %815 = sbr.rel (0) target = $region61
  $region60: #{bottleneck_forward.8} parent=0 // pred_region
    _
  $region61: #{bottleneck_forward.8} parent=0 // pred_fallthru
    _
  // Predicated region
  $region62: #{bottleneck_forward.8} parent=0 // pred_check
    _
  $region63: #{bottleneck_forward.8} parent=0 // pred_check_branch
    %817 = sbr.rel (0) target = $region65
  $region64: #{bottleneck_forward.8} parent=0 // pred_region
    _
  $region65: #{bottleneck_forward.8} parent=0 // pred_fallthru
    _
  // Predicated region
  $region66: #{bottleneck_forward.8} parent=0 // pred_check
    _
  $region67: #{bottleneck_forward.8} parent=0 // pred_check_branch
    %819 = sbr.rel (0) target = $region69
  $region68: #{bottleneck_forward.8} parent=0 // pred_region
    _
  $region69: #{bottleneck_forward.8} parent=0 // pred_fallthru
    _
  // Predicated region
  $region70: #{bottleneck_forward.8} parent=0 // pred_check
    _
  $region71: #{bottleneck_forward.8} parent=0 // pred_check_branch
    %821 = sbr.rel (0) target = $region73
  $region72: #{bottleneck_forward.8} parent=0 // pred_region
    _
  $region73: #{bottleneck_forward.8} parent=0 // pred_fallthru
    _

// kernel: bottleneck_forward.9
$region0: #{bottleneck_forward.9}
  #allocation0 [shape = 'u32[]', space=smem, size = 0x4, offset = 0x4, fixed_abs, tag = 'smem constant byte address 0x4 - core index']
  #allocation1 [shape = 'u32[144,128]{1,0:T(1,128)}', space=vmem, size = 0x12000, scoped, tag = 'internal scratch']
  %s0 = inlined_call_operand.vmem [shape: bf16[128,128], index: 0, kind: input, shape index: {}]
  %s1 = inlined_call_operand.vmem [shape: bf16[128,128], index: 1, kind: input, shape index: {}]
  %s2 = inlined_call_operand.vmem [shape: f32[1,128], index: 2, kind: input, shape index: {}]
  %s3 = inlined_call_operand.vmem [shape: f32[1,128], index: 3, kind: input, shape index: {}]
  %s4 = inlined_call_operand.vmem [shape: f32[1,128], index: 4, kind: input, shape index: {}]
  %s5 = inlined_call_operand.vmem [shape: f32[1,128], index: 5, kind: input, shape index: {}]
  %s6 = inlined_call_operand.vmem [shape: f32[128,128], index: 6, kind: output, shape index: {}]
  %s7 = sld [smem:[#allocation0]]
  $region34: #{bottleneck_forward.9} parent=0
    _
  %s9 = ssub.s32 1, %s7
  %s10 = scalar_select 0, %s9, %s7
  // Predicated region
  $region2: #{bottleneck_forward.9} parent=0 // pred_check
    _
  $region3: #{bottleneck_forward.9} parent=0 // pred_check_branch
    %12 = sbr.rel (0) target = $region5
  $region4: #{bottleneck_forward.9} parent=0 // pred_region
    _
  $region5: #{bottleneck_forward.9} parent=0 // pred_fallthru
    _
  // Predicated region
  $region6: #{bottleneck_forward.9} parent=0 // pred_check
    _
  $region7: #{bottleneck_forward.9} parent=0 // pred_check_branch
    %14 = sbr.rel (0) target = $region9
  $region8: #{bottleneck_forward.9} parent=0 // pred_region
    _
  $region9: #{bottleneck_forward.9} parent=0 // pred_fallthru
    _
  // Predicated region
  $region10: #{bottleneck_forward.9} parent=0 // pred_check
    _
  $region11: #{bottleneck_forward.9} parent=0 // pred_check_branch
    %16 = sbr.rel (0) target = $region13
  $region12: #{bottleneck_forward.9} parent=0 // pred_region
    _
  $region13: #{bottleneck_forward.9} parent=0 // pred_fallthru
    _
  // Predicated region
  $region14: #{bottleneck_forward.9} parent=0 // pred_check
    _
  $region15: #{bottleneck_forward.9} parent=0 // pred_check_branch
    %18 = sbr.rel (0) target = $region17
  $region16: #{bottleneck_forward.9} parent=0 // pred_region
    _
  $region17: #{bottleneck_forward.9} parent=0 // pred_fallthru
    _
  // Predicated region
  $region18: #{bottleneck_forward.9} parent=0 // pred_check
    _
  $region19: #{bottleneck_forward.9} parent=0 // pred_check_branch
    %20 = sbr.rel (0) target = $region21
  $region20: #{bottleneck_forward.9} parent=0 // pred_region
    _
  $region21: #{bottleneck_forward.9} parent=0 // pred_fallthru
    _
  // Predicated region
  $region22: #{bottleneck_forward.9} parent=0 // pred_check
    _
  $region23: #{bottleneck_forward.9} parent=0 // pred_check_branch
    %22 = sbr.rel (0) target = $region25
  $region24: #{bottleneck_forward.9} parent=0 // pred_region
    _
  $region25: #{bottleneck_forward.9} parent=0 // pred_fallthru
    _
  %v23 = vld [vmem:[%s0] sm:$0xf]
  %v24 = vld [vmem:[%s0 + $0x4] sm:$0xf]
  %v25 = vld [vmem:[%s0 + $0x8] sm:$0xf]
  %v26 = vld [vmem:[%s0 + $0xc] sm:$0xf]
  %v27 = vld [vmem:[%s0 + $0x10] sm:$0xf]
  %v28 = vld [vmem:[%s0 + $0x14] sm:$0xf]
  %v29 = vld [vmem:[%s0 + $0x18] sm:$0xf]
  %v30 = vld [vmem:[%s0 + $0x1c] sm:$0xf]
  %v31 = vld [vmem:[%s0 + $0x20] sm:$0xf]
  %v32 = vld [vmem:[%s0 + $0x24] sm:$0xf]
  %v33 = vld [vmem:[%s0 + $0x28] sm:$0xf]
  %v34 = vld [vmem:[%s0 + $0x2c] sm:$0xf]
  %v35 = vld [vmem:[%s0 + $0x30] sm:$0xf]
  %v36 = vld [vmem:[%s0 + $0x34] sm:$0xf]
  %v37 = vld [vmem:[%s0 + $0x38] sm:$0xf]
  %v38 = vld [vmem:[%s0 + $0x3c] sm:$0xf]
  %v39 = vunpack.c.l.bf16 %v23
  %v40 = vunpack.c.l.bf16 %v24
  %v41 = vunpack.c.l.bf16 %v25
  %v42 = vunpack.c.l.bf16 %v26
  %v43 = vunpack.c.l.bf16 %v27
  %v44 = vunpack.c.l.bf16 %v28
  %v45 = vunpack.c.l.bf16 %v29
  %v46 = vunpack.c.l.bf16 %v30
  %v47 = vunpack.c.l.bf16 %v31
  %v48 = vunpack.c.l.bf16 %v32
  %v49 = vunpack.c.l.bf16 %v33
  %v50 = vunpack.c.l.bf16 %v34
  %v51 = vunpack.c.l.bf16 %v35
  %v52 = vunpack.c.l.bf16 %v36
  %v53 = vunpack.c.l.bf16 %v37
  %v54 = vunpack.c.l.bf16 %v38
  %v55 = vld [vmem:[%s2] sm:$0x1]
  %v57 = vlaneseq
  %v58 = vshrl.u32 %v57, 7
  %v59 = vsub.s32 0, %v58
  %v60 = vrot.slane %v55, %v59
  %v62 = vmul.f32 %v39, %v60
  %v63 = vmul.f32 %v40, %v60
  %v64 = vmul.f32 %v41, %v60
  %v65 = vmul.f32 %v42, %v60
  %v66 = vmul.f32 %v43, %v60
  %v67 = vmul.f32 %v44, %v60
  %v68 = vmul.f32 %v45, %v60
  %v69 = vmul.f32 %v46, %v60
  %v70 = vmul.f32 %v47, %v60
  %v71 = vmul.f32 %v48, %v60
  %v72 = vmul.f32 %v49, %v60
  %v73 = vmul.f32 %v50, %v60
  %v74 = vmul.f32 %v51, %v60
  %v75 = vmul.f32 %v52, %v60
  %v76 = vmul.f32 %v53, %v60
  %v77 = vmul.f32 %v54, %v60
  %v78 = vld [vmem:[%s3] sm:$0x1]
  %v80 = vlaneseq
  %v81 = vshrl.u32 %v80, 7
  %v82 = vsub.s32 0, %v81
  %v83 = vrot.slane %v78, %v82
  %v85 = vadd.f32 %v62, %v83
  %v86 = vadd.f32 %v63, %v83
  %v87 = vadd.f32 %v64, %v83
  %v88 = vadd.f32 %v65, %v83
  %v89 = vadd.f32 %v66, %v83
  %v90 = vadd.f32 %v67, %v83
  %v91 = vadd.f32 %v68, %v83
  %v92 = vadd.f32 %v69, %v83
  %v93 = vadd.f32 %v70, %v83
  %v94 = vadd.f32 %v71, %v83
  %v95 = vadd.f32 %v72, %v83
  %v96 = vadd.f32 %v73, %v83
  %v97 = vadd.f32 %v74, %v83
  %v98 = vadd.f32 %v75, %v83
  %v99 = vadd.f32 %v76, %v83
  %v100 = vadd.f32 %v77, %v83
  %v101 = vld [vmem:[%s1] sm:$0xf]
  %v102 = vld [vmem:[%s1 + $0x4] sm:$0xf]
  %v103 = vld [vmem:[%s1 + $0x8] sm:$0xf]
  %v104 = vld [vmem:[%s1 + $0xc] sm:$0xf]
  %v105 = vld [vmem:[%s1 + $0x10] sm:$0xf]
  %v106 = vld [vmem:[%s1 + $0x14] sm:$0xf]
  %v107 = vld [vmem:[%s1 + $0x18] sm:$0xf]
  %v108 = vld [vmem:[%s1 + $0x1c] sm:$0xf]
  %v109 = vld [vmem:[%s1 + $0x20] sm:$0xf]
  %v110 = vld [vmem:[%s1 + $0x24] sm:$0xf]
  %v111 = vld [vmem:[%s1 + $0x28] sm:$0xf]
  %v112 = vld [vmem:[%s1 + $0x2c] sm:$0xf]
  %v113 = vld [vmem:[%s1 + $0x30] sm:$0xf]
  %v114 = vld [vmem:[%s1 + $0x34] sm:$0xf]
  %v115 = vld [vmem:[%s1 + $0x38] sm:$0xf]
  %v116 = vld [vmem:[%s1 + $0x3c] sm:$0xf]
  %v117 = vunpack.c.l.bf16 %v101
  %v118 = vunpack.c.l.bf16 %v102
  %v119 = vunpack.c.l.bf16 %v103
  %v120 = vunpack.c.l.bf16 %v104
  %v121 = vunpack.c.l.bf16 %v105
  %v122 = vunpack.c.l.bf16 %v106
  %v123 = vunpack.c.l.bf16 %v107
  %v124 = vunpack.c.l.bf16 %v108
  %v125 = vunpack.c.l.bf16 %v109
  %v126 = vunpack.c.l.bf16 %v110
  %v127 = vunpack.c.l.bf16 %v111
  %v128 = vunpack.c.l.bf16 %v112
  %v129 = vunpack.c.l.bf16 %v113
  %v130 = vunpack.c.l.bf16 %v114
  %v131 = vunpack.c.l.bf16 %v115
  %v132 = vunpack.c.l.bf16 %v116
  %v133 = vld [vmem:[%s4] sm:$0x1]
  %v135 = vlaneseq
  %v136 = vshrl.u32 %v135, 7
  %v137 = vsub.s32 0, %v136
  %v138 = vrot.slane %v133, %v137
  %v140 = vmul.f32 %v117, %v138
  %v141 = vmul.f32 %v118, %v138
  %v142 = vmul.f32 %v119, %v138
  %v143 = vmul.f32 %v120, %v138
  %v144 = vmul.f32 %v121, %v138
  %v145 = vmul.f32 %v122, %v138
  %v146 = vmul.f32 %v123, %v138
  %v147 = vmul.f32 %v124, %v138
  %v148 = vmul.f32 %v125, %v138
  %v149 = vmul.f32 %v126, %v138
  %v150 = vmul.f32 %v127, %v138
  %v151 = vmul.f32 %v128, %v138
  %v152 = vmul.f32 %v129, %v138
  %v153 = vmul.f32 %v130, %v138
  %v154 = vmul.f32 %v131, %v138
  %v155 = vmul.f32 %v132, %v138
  %v156 = vld [vmem:[%s5] sm:$0x1]
  %v158 = vlaneseq
  %v159 = vshrl.u32 %v158, 7
  %v160 = vsub.s32 0, %v159
  %v161 = vrot.slane %v156, %v160
  %v163 = vadd.f32 %v140, %v161
  %v164 = vadd.f32 %v141, %v161
  %v165 = vadd.f32 %v142, %v161
  %v166 = vadd.f32 %v143, %v161
  %v167 = vadd.f32 %v144, %v161
  %v168 = vadd.f32 %v145, %v161
  %v169 = vadd.f32 %v146, %v161
  %v170 = vadd.f32 %v147, %v161
  %v171 = vadd.f32 %v148, %v161
  %v172 = vadd.f32 %v149, %v161
  %v173 = vadd.f32 %v150, %v161
  %v174 = vadd.f32 %v151, %v161
  %v175 = vadd.f32 %v152, %v161
  %v176 = vadd.f32 %v153, %v161
  %v177 = vadd.f32 %v154, %v161
  %v178 = vadd.f32 %v155, %v161
  %v179 = vadd.f32 %v85, %v163
  %v180 = vadd.f32 %v86, %v164
  %v181 = vadd.f32 %v87, %v165
  %v182 = vadd.f32 %v88, %v166
  %v183 = vadd.f32 %v89, %v167
  %v184 = vadd.f32 %v90, %v168
  %v185 = vadd.f32 %v91, %v169
  %v186 = vadd.f32 %v92, %v170
  %v187 = vadd.f32 %v93, %v171
  %v188 = vadd.f32 %v94, %v172
  %v189 = vadd.f32 %v95, %v173
  %v190 = vadd.f32 %v96, %v174
  %v191 = vadd.f32 %v97, %v175
  %v192 = vadd.f32 %v98, %v176
  %v193 = vadd.f32 %v99, %v177
  %v194 = vadd.f32 %v100, %v178
  %v195 = vmax.f32 %v179, 0.0
  %v196 = vmax.f32 %v180, 0.0
  %v197 = vmax.f32 %v181, 0.0
  %v198 = vmax.f32 %v182, 0.0
  %v199 = vmax.f32 %v183, 0.0
  %v200 = vmax.f32 %v184, 0.0
  %v201 = vmax.f32 %v185, 0.0
  %v202 = vmax.f32 %v186, 0.0
  %v203 = vmax.f32 %v187, 0.0
  %v204 = vmax.f32 %v188, 0.0
  %v205 = vmax.f32 %v189, 0.0
  %v206 = vmax.f32 %v190, 0.0
  %v207 = vmax.f32 %v191, 0.0
  %v208 = vmax.f32 %v192, 0.0
  %v209 = vmax.f32 %v193, 0.0
  %v210 = vmax.f32 %v194, 0.0
  %211 = vst [vmem:[%s6] sm:$0xff] %v195
  %212 = vst [vmem:[%s6 + $0x8] sm:$0xff] %v196
  %213 = vst [vmem:[%s6 + $0x10] sm:$0xff] %v197
  %214 = vst [vmem:[%s6 + $0x18] sm:$0xff] %v198
  %215 = vst [vmem:[%s6 + $0x20] sm:$0xff] %v199
  %216 = vst [vmem:[%s6 + $0x28] sm:$0xff] %v200
  %217 = vst [vmem:[%s6 + $0x30] sm:$0xff] %v201
  %218 = vst [vmem:[%s6 + $0x38] sm:$0xff] %v202
  %219 = vst [vmem:[%s6 + $0x40] sm:$0xff] %v203
  %220 = vst [vmem:[%s6 + $0x48] sm:$0xff] %v204
  %221 = vst [vmem:[%s6 + $0x50] sm:$0xff] %v205
  %222 = vst [vmem:[%s6 + $0x58] sm:$0xff] %v206
  %223 = vst [vmem:[%s6 + $0x60] sm:$0xff] %v207
  %224 = vst [vmem:[%s6 + $0x68] sm:$0xff] %v208
  %225 = vst [vmem:[%s6 + $0x70] sm:$0xff] %v209
  %226 = vst [vmem:[%s6 + $0x78] sm:$0xff] %v210
  // Predicated region
  $region26: #{bottleneck_forward.9} parent=0 // pred_check
    _
  $region27: #{bottleneck_forward.9} parent=0 // pred_check_branch
    %228 = sbr.rel (0) target = $region29
  $region28: #{bottleneck_forward.9} parent=0 // pred_region
    _
  $region29: #{bottleneck_forward.9} parent=0 // pred_fallthru
    _
  // Predicated region
  $region30: #{bottleneck_forward.9} parent=0 // pred_check
    _
  $region31: #{bottleneck_forward.9} parent=0 // pred_check_branch
    %230 = sbr.rel (0) target = $region33
  $region32: #{bottleneck_forward.9} parent=0 // pred_region
    _
  $region33: #{bottleneck_forward.9} parent=0 // pred_fallthru
    _

</llo_original>
